<compile_context>
chip_gen: v7x
topology: tpu7x:2x2x1
jax: 0.10.0
libtpu: 0.0.40
codegen_flags: <defaults>
</compile_context>

<pallas_src>
import jax
import jax.numpy as jnp
from jax import lax
from jax.experimental import pallas as pl
from jax.experimental.pallas import tpu as pltpu

N_CLASSES = 12
C = 64
H_IN, W_IN = 49, 10        # standard DS-CNN MFCC input
H, W = 25, 5               # spatial dims after the (10,4)/stride(2,2)/pad(5,1) conv
HW = H * W                 # 125
KIN = 40                   # 10*4 input-conv taps
PAD = 8                    # sublane-aligned halo rows in the depthwise scratch
NUM_BLOCKS = 4
EPS = 1e-5


# ------------------------------------------------------------------ kernel ---

def _dscnn_kernel(patches_ref, w_in_ref, b_in_ref, dw_w_ref, dw_b_ref,
                  pw_w_ref, pw_b_ref, wl_ref, bl_ref, out_ref, xpad_ref):
    """Whole DS-CNN forward for one batch element; activation stays in VMEM.

    patches_ref : (1, 125, 40)    im2col patches of the strided input conv
    w_in_ref    : (40, 64)        input conv weight  (BN0 folded)
    b_in_ref    : (1, 64)         input conv bias    (BN0 folded)
    dw_w_ref    : (4, 9, 125, 64) depthwise tap weights (BN + boundary mask folded)
    dw_b_ref    : (4, 1, 64)
    pw_w_ref    : (4, 64, 64)     pointwise weights (BN folded into columns)
    pw_b_ref    : (4, 1, 64)
    wl_ref      : (64, 12),  bl_ref : (1, 12)
    out_ref     : (1, 1, 12)
    xpad_ref    : (PAD+125+PAD, 64) VMEM scratch; rows [PAD, PAD+125) hold the
                  activation, halo rows stay zero (= conv zero padding).
    """
    # Zero the scratch every grid step so halo rows read as zero padding;
    # unconditional so it stays correct under megacore "parallel" sharding.
    xpad_ref[...] = jnp.zeros_like(xpad_ref)

    # --- input conv: im2col matmul on the MXU, folded BN + ReLU --------------
    y = jnp.dot(patches_ref[0], w_in_ref[...], preferred_element_type=jnp.float32)
    y = jnp.maximum(y + b_in_ref[...], 0.0)                        # (125, 64)
    # dropout1: identity (inference)

    # --- 4 depthwise-separable blocks (statically unrolled) ------------------
    for i in range(NUM_BLOCKS):
        # 3x3 depthwise conv: activation -> padded slab, 9 shifted VPU MACs.
        # Boundary masks are pre-folded into dw_w, so invalid positions read
        # whatever is in the slab but contribute exactly zero.
        xpad_ref[PAD:PAD + HW, :] = y
        acc = xpad_ref[PAD - 6:PAD - 6 + HW, :] * dw_w_ref[i, 0]   # tap (0,0)
        for t in range(1, 9):
            kh, kw = t // 3, t % 3
            off = PAD + 5 * (kh - 1) + (kw - 1)
            acc = acc + xpad_ref[off:off + HW, :] * dw_w_ref[i, t]
        yd = jnp.maximum(acc + dw_b_ref[i], 0.0)                   # folded BN + ReLU
        # 1x1 pointwise conv on the MXU, folded BN + ReLU.
        y = jnp.dot(yd, pw_w_ref[i], preferred_element_type=jnp.float32)
        y = jnp.maximum(y + pw_b_ref[i], 0.0)                      # (125, 64)
    # dropout2: identity (inference)

    # --- global average pool (25x5) + Linear(64 -> 12) -----------------------
    m = jnp.sum(y, axis=0, keepdims=True) * (1.0 / HW)             # (1, 64)
    out_ref[0] = (jnp.dot(m, wl_ref[...], preferred_element_type=jnp.float32)
                  + bl_ref[...])


# ------------------------------------------------------- host-side folding ---

def _bn_fold(bn):
    s = bn["gamma"] / jnp.sqrt(bn["var"] + EPS)
    return s, bn["beta"] - bn["mean"] * s


def _dw_boundary_mask():
    """(9, 125) validity mask of the 3x3 'same' conv on a 25x5 grid."""
    h = jnp.arange(H)[None, :] + jnp.arange(3)[:, None] - 1        # (3, 25)
    w = jnp.arange(W)[None, :] + jnp.arange(3)[:, None] - 1        # (3, 5)
    h_ok = (h >= 0) & (h < H)
    w_ok = (w >= 0) & (w < W)
    valid = h_ok[:, None, :, None] & w_ok[None, :, None, :]        # (3,3,25,5)
    return valid.reshape(9, HW).astype(jnp.float32)


def _fold_params(params):
    """Fold conv biases + eval-mode BN (+ depthwise boundary masks) into weights."""
    s0, t0 = _bn_fold(params["bn0"])
    w_in = (params["conv_in_w"].reshape(C, KIN) * s0[:, None]).T   # (40, 64)
    b_in = (params["conv_in_b"] * s0 + t0).reshape(1, C)

    mask = _dw_boundary_mask()                                     # (9, 125)
    dw_w, dw_b, pw_w, pw_b = [], [], [], []
    for i in range(1, NUM_BLOCKS + 1):
        s1, t1 = _bn_fold(params[f"bn{i}1"])
        w9 = (params[f"dw{i}_w"].reshape(C, 9) * s1[:, None]).T    # (9, 64)
        dw_w.append(mask[:, :, None] * w9[:, None, :])             # (9, 125, 64)
        dw_b.append((params[f"dw{i}_b"] * s1 + t1).reshape(1, C))
        s2, t2 = _bn_fold(params[f"bn{i}2"])
        pw_w.append(params[f"pw{i}_w"].reshape(C, C).T * s2[None, :])
        pw_b.append((params[f"pw{i}_b"] * s2 + t2).reshape(1, C))

    return (w_in, b_in, jnp.stack(dw_w), jnp.stack(dw_b),
            jnp.stack(pw_w), jnp.stack(pw_b),
            params["lin_w"].T, params["lin_b"].reshape(1, N_CLASSES))


def _im2col(x_nchw):
    """(n,1,49,10) -> (n, 125, 40) patches of the (10,4)/s(2,2)/p(5,1) conv."""
    n = x_nchw.shape[0]
    xp = jnp.pad(x_nchw[:, 0], ((0, 0), (5, 5), (1, 1)))           # (n, 59, 12)
    rows = (2 * jnp.arange(H)[:, None, None, None]
            + jnp.arange(10)[None, None, :, None])                 # (25,1,10,1)
    cols = (2 * jnp.arange(W)[None, :, None, None]
            + jnp.arange(4)[None, None, None, :])                  # (1,5,1,4)
    return xp[:, rows, cols].reshape(n, HW, KIN)                   # single gather


# ------------------------------------------------------------ Pallas model ---

def dscnn_forward_pallas(params, x_nchw):
    n = x_nchw.shape[0]
    patches = _im2col(x_nchw)
    operands = _fold_params(params)

    def full_spec(arr):
        nd = arr.ndim
        return pl.BlockSpec(arr.shape, lambda b, _nd=nd: (0,) * _nd)

    flops = 2 * n * (HW * KIN * C + NUM_BLOCKS * HW * C * (9 + C) + C * N_CLASSES)
    bytes_accessed = 4 * (patches.size + sum(int(o.size) for o in operands)
                          + n * N_CLASSES)

    out = pl.pallas_call(
        _dscnn_kernel,
        out_shape=jax.ShapeDtypeStruct((n, 1, N_CLASSES), jnp.float32),
        grid_spec=pltpu.PrefetchScalarGridSpec(
            num_scalar_prefetch=0,
            grid=(n,),
            in_specs=[pl.BlockSpec((1, HW, KIN), lambda b: (b, 0, 0))]
                     + [full_spec(o) for o in operands],
            out_specs=pl.BlockSpec((1, 1, N_CLASSES), lambda b: (b, 0, 0)),
            scratch_shapes=[pltpu.VMEM((PAD + HW + PAD, C), jnp.float32)],
        ),
        compiler_params=pltpu.CompilerParams(
            dimension_semantics=("parallel",),
            vmem_limit_bytes=32 * 1024 * 1024,
        ),
        cost_estimate=pl.CostEstimate(
            flops=flops, transcendentals=0, bytes_accessed=bytes_accessed),
    )(patches, *operands)
    return out.reshape(n, N_CLASSES)


# ------------------------------------------------------------- parameters ----

def init_params(key):
    keys = iter(jax.random.split(key, 64))

    def nrm(shape, scale=0.1):
        return scale * jax.random.normal(next(keys), shape, jnp.float32)

    def bn_params():
        return dict(
            gamma=1.0 + 0.1 * jax.random.normal(next(keys), (C,), jnp.float32),
            beta=nrm((C,)),
            mean=nrm((C,)),
            var=jnp.abs(1.0 + 0.1 * jax.random.normal(next(keys), (C,), jnp.float32)),
        )

    p = {}
    p["conv_in_w"] = nrm((C, 1, 10, 4))          # OIHW (PyTorch layout)
    p["conv_in_b"] = nrm((C,))
    p["bn0"] = bn_params()
    for i in range(1, NUM_BLOCKS + 1):
        p[f"dw{i}_w"] = nrm((C, 1, 3, 3))        # depthwise, groups=C
        p[f"dw{i}_b"] = nrm((C,))
        p[f"bn{i}1"] = bn_params()
        p[f"pw{i}_w"] = nrm((C, C, 1, 1))        # pointwise 1x1
        p[f"pw{i}_b"] = nrm((C,))
        p[f"bn{i}2"] = bn_params()
    p["lin_w"] = nrm((N_CLASSES, C))             # PyTorch Linear: (out, in)
    p["lin_b"] = nrm((N_CLASSES,))
    return p


# --------------------------------------------------- pure-JAX reference ------

def dscnn_forward_ref(params, x_nchw):
    def conv(x, w, b, stride, pad, groups=1):
        y = lax.conv_general_dilated(
            x, w, window_strides=stride, padding=pad,
            dimension_numbers=("NCHW", "OIHW", "NCHW"),
            feature_group_count=groups)
        return y + b.reshape(1, -1, 1, 1)

    def bn(x, d):
        s = d["gamma"] / jnp.sqrt(d["var"] + EPS)
        t = d["beta"] - d["mean"] * s
        return x * s.reshape(1, -1, 1, 1) + t.reshape(1, -1, 1, 1)

    relu = lambda v: jnp.maximum(v, 0.0)
    x = conv(x_nchw, params["conv_in_w"], params["conv_in_b"], (2, 2), ((5, 5), (1, 1)))
    x = relu(bn(x, params["bn0"]))
    for i in range(1, NUM_BLOCKS + 1):
        x = conv(x, params[f"dw{i}_w"], params[f"dw{i}_b"], (1, 1), ((1, 1), (1, 1)),
                 groups=C)
        x = relu(bn(x, params[f"bn{i}1"]))
        x = conv(x, params[f"pw{i}_w"], params[f"pw{i}_b"], (1, 1), ((0, 0), (0, 0)))
        x = relu(bn(x, params[f"bn{i}2"]))
    x = jnp.mean(x, axis=(2, 3))                         # AvgPool2d((25,5)) + flatten
    return x @ params["lin_w"].T + params["lin_b"]


if __name__ == "__main__":
    key = jax.random.PRNGKey(0)
    pkey, xkey = jax.random.split(key)
    params = init_params(pkey)
    x = jax.random.normal(xkey, (2, 1, H_IN, W_IN), jnp.float32)   # NCHW like PyTorch

    fwd = jax.jit(dscnn_forward_pallas)
    out = jax.block_until_ready(fwd(params, x))
    ref = jax.block_until_ready(jax.jit(dscnn_forward_ref)(params, x))

    assert out.shape == (2, N_CLASSES), out.shape
    err = float(jnp.max(jnp.abs(out - ref)))
    assert jnp.allclose(out, ref, rtol=1e-4, atol=1e-4), err
    print("KERNEL_OK")
</pallas_src>

<mosaic_0001>
module attributes {stable_mosaic.version = 11 : i64} {
  func.func @_dscnn_kernel(%arg0: i32, %arg1: memref<1x125x40xf32, #tpu.memory_space<vmem>>, %arg2: memref<40x64xf32, #tpu.memory_space<vmem>>, %arg3: memref<1x64xf32, #tpu.memory_space<vmem>>, %arg4: memref<4x9x125x64xf32, #tpu.memory_space<vmem>>, %arg5: memref<4x1x64xf32, #tpu.memory_space<vmem>>, %arg6: memref<4x64x64xf32, #tpu.memory_space<vmem>>, %arg7: memref<4x1x64xf32, #tpu.memory_space<vmem>>, %arg8: memref<64x12xf32, #tpu.memory_space<vmem>>, %arg9: memref<1x12xf32, #tpu.memory_space<vmem>>, %arg10: memref<1x1x12xf32, #tpu.memory_space<vmem>>, %arg11: memref<141x64xf32, #tpu.memory_space<vmem>>) attributes {dimension_semantics = [#tpu.dimension_semantics<parallel>], iteration_bounds = array<i64: 2>, scalar_prefetch = 0 : i64, scratch_operands = 1 : i64, tpu.core_type = #tpu.core_type<tc>, window_params = [{transform_indices = @transform_0, window_bounds = array<i64: 1, 125, 40>}, {pipeline_mode = #tpu.pipeline_mode<synchronous>, transform_indices = @transform_1, window_bounds = array<i64: 40, 64>}, {pipeline_mode = #tpu.pipeline_mode<synchronous>, transform_indices = @transform_2, window_bounds = array<i64: 1, 64>}, {pipeline_mode = #tpu.pipeline_mode<synchronous>, transform_indices = @transform_3, window_bounds = array<i64: 4, 9, 125, 64>}, {pipeline_mode = #tpu.pipeline_mode<synchronous>, transform_indices = @transform_4, window_bounds = array<i64: 4, 1, 64>}, {pipeline_mode = #tpu.pipeline_mode<synchronous>, transform_indices = @transform_5, window_bounds = array<i64: 4, 64, 64>}, {pipeline_mode = #tpu.pipeline_mode<synchronous>, transform_indices = @transform_6, window_bounds = array<i64: 4, 1, 64>}, {pipeline_mode = #tpu.pipeline_mode<synchronous>, transform_indices = @transform_7, window_bounds = array<i64: 64, 12>}, {pipeline_mode = #tpu.pipeline_mode<synchronous>, transform_indices = @transform_8, window_bounds = array<i64: 1, 12>}, {transform_indices = @transform_9, window_bounds = array<i64: 1, 1, 12>}]} {
    %cst = arith.constant 0.000000e+00 : f32
    %0 = vector.broadcast %cst : f32 to vector<141x64xf32>
    %c0 = arith.constant 0 : index
    %c0_0 = arith.constant 0 : index
    %1 = vector.load %arg11[%c0, %c0_0] : memref<141x64xf32, #tpu.memory_space<vmem>>, vector<141x64xf32>
    tpu.vector_store %arg11[%c0, %c0_0], %0 {strides = array<i32>} : memref<141x64xf32, #tpu.memory_space<vmem>>, vector<141x64xf32>,
    %c0_1 = arith.constant 0 : index
    %c0_2 = arith.constant 0 : index
    %c0_3 = arith.constant 0 : index
    %2 = vector.load %arg1[%c0_1, %c0_2, %c0_3] : memref<1x125x40xf32, #tpu.memory_space<vmem>>, vector<1x125x40xf32>
    %3 = vector.shape_cast %2 : vector<1x125x40xf32> to vector<125x40xf32>
    %c0_4 = arith.constant 0 : index
    %c0_5 = arith.constant 0 : index
    %4 = vector.load %arg2[%c0_4, %c0_5] : memref<40x64xf32, #tpu.memory_space<vmem>>, vector<40x64xf32>
    %cst_6 = arith.constant dense<0.000000e+00> : vector<125x64xf32>
    %5 = tpu.matmul %3, %4, %cst_6 {dimension_numbers = #tpu.dot_dimension_numbers<[1], [0], [0], [1], [0, 0, 1, 1], [], []>} : vector<125x40xf32>, vector<40x64xf32>, vector<125x64xf32> -> vector<125x64xf32>
    %c0_7 = arith.constant 0 : index
    %c0_8 = arith.constant 0 : index
    %6 = vector.load %arg3[%c0_7, %c0_8] : memref<1x64xf32, #tpu.memory_space<vmem>>, vector<1x64xf32>
    %7 = vector.broadcast %6 : vector<1x64xf32> to vector<125x64xf32>
    %8 = arith.addf %5, %7 : vector<125x64xf32>
    %cst_9 = arith.constant 0.000000e+00 : f32
    %9 = vector.broadcast %cst_9 : f32 to vector<125x64xf32>
    %10 = arith.maximumf %8, %9 : vector<125x64xf32>
    %c8 = arith.constant 8 : index
    %c0_10 = arith.constant 0 : index
    %11 = vector.load %arg11[%c8, %c0_10] : memref<141x64xf32, #tpu.memory_space<vmem>>, vector<125x64xf32>
    tpu.vector_store %arg11[%c8, %c0_10], %10 {strides = array<i32>} : memref<141x64xf32, #tpu.memory_space<vmem>>, vector<125x64xf32>,
    %c2 = arith.constant 2 : index
    %c0_11 = arith.constant 0 : index
    %12 = vector.load %arg11[%c2, %c0_11] : memref<141x64xf32, #tpu.memory_space<vmem>>, vector<125x64xf32>
    %c0_12 = arith.constant 0 : index
    %c0_13 = arith.constant 0 : index
    %c0_14 = arith.constant 0 : index
    %c0_15 = arith.constant 0 : index
    %13 = vector.load %arg4[%c0_12, %c0_13, %c0_14, %c0_15] : memref<4x9x125x64xf32, #tpu.memory_space<vmem>>, vector<1x1x125x64xf32>
    %14 = vector.shape_cast %13 : vector<1x1x125x64xf32> to vector<125x64xf32>
    %15 = arith.mulf %12, %14 : vector<125x64xf32>
    %c3 = arith.constant 3 : index
    %c0_16 = arith.constant 0 : index
    %16 = vector.load %arg11[%c3, %c0_16] : memref<141x64xf32, #tpu.memory_space<vmem>>, vector<125x64xf32>
    %c0_17 = arith.constant 0 : index
    %c1 = arith.constant 1 : index
    %c0_18 = arith.constant 0 : index
    %c0_19 = arith.constant 0 : index
    %17 = vector.load %arg4[%c0_17, %c1, %c0_18, %c0_19] : memref<4x9x125x64xf32, #tpu.memory_space<vmem>>, vector<1x1x125x64xf32>
    %18 = vector.shape_cast %17 : vector<1x1x125x64xf32> to vector<125x64xf32>
    %19 = arith.mulf %16, %18 : vector<125x64xf32>
    %20 = arith.addf %15, %19 : vector<125x64xf32>
    %c4 = arith.constant 4 : index
    %c0_20 = arith.constant 0 : index
    %21 = vector.load %arg11[%c4, %c0_20] : memref<141x64xf32, #tpu.memory_space<vmem>>, vector<125x64xf32>
    %c0_21 = arith.constant 0 : index
    %c2_22 = arith.constant 2 : index
    %c0_23 = arith.constant 0 : index
    %c0_24 = arith.constant 0 : index
    %22 = vector.load %arg4[%c0_21, %c2_22, %c0_23, %c0_24] : memref<4x9x125x64xf32, #tpu.memory_space<vmem>>, vector<1x1x125x64xf32>
    %23 = vector.shape_cast %22 : vector<1x1x125x64xf32> to vector<125x64xf32>
    %24 = arith.mulf %21, %23 : vector<125x64xf32>
    %25 = arith.addf %20, %24 : vector<125x64xf32>
    %c7 = arith.constant 7 : index
    %c0_25 = arith.constant 0 : index
    %26 = vector.load %arg11[%c7, %c0_25] : memref<141x64xf32, #tpu.memory_space<vmem>>, vector<125x64xf32>
    %c0_26 = arith.constant 0 : index
    %c3_27 = arith.constant 3 : index
    %c0_28 = arith.constant 0 : index
    %c0_29 = arith.constant 0 : index
    %27 = vector.load %arg4[%c0_26, %c3_27, %c0_28, %c0_29] : memref<4x9x125x64xf32, #tpu.memory_space<vmem>>, vector<1x1x125x64xf32>
    %28 = vector.shape_cast %27 : vector<1x1x125x64xf32> to vector<125x64xf32>
    %29 = arith.mulf %26, %28 : vector<125x64xf32>
    %30 = arith.addf %25, %29 : vector<125x64xf32>
    %c8_30 = arith.constant 8 : index
    %c0_31 = arith.constant 0 : index
    %31 = vector.load %arg11[%c8_30, %c0_31] : memref<141x64xf32, #tpu.memory_space<vmem>>, vector<125x64xf32>
    %c0_32 = arith.constant 0 : index
    %c4_33 = arith.constant 4 : index
    %c0_34 = arith.constant 0 : index
    %c0_35 = arith.constant 0 : index
    %32 = vector.load %arg4[%c0_32, %c4_33, %c0_34, %c0_35] : memref<4x9x125x64xf32, #tpu.memory_space<vmem>>, vector<1x1x125x64xf32>
    %33 = vector.shape_cast %32 : vector<1x1x125x64xf32> to vector<125x64xf32>
    %34 = arith.mulf %31, %33 : vector<125x64xf32>
    %35 = arith.addf %30, %34 : vector<125x64xf32>
    %c9 = arith.constant 9 : index
    %c0_36 = arith.constant 0 : index
    %36 = vector.load %arg11[%c9, %c0_36] : memref<141x64xf32, #tpu.memory_space<vmem>>, vector<125x64xf32>
    %c0_37 = arith.constant 0 : index
    %c5 = arith.constant 5 : index
    %c0_38 = arith.constant 0 : index
    %c0_39 = arith.constant 0 : index
    %37 = vector.load %arg4[%c0_37, %c5, %c0_38, %c0_39] : memref<4x9x125x64xf32, #tpu.memory_space<vmem>>, vector<1x1x125x64xf32>
    %38 = vector.shape_cast %37 : vector<1x1x125x64xf32> to vector<125x64xf32>
    %39 = arith.mulf %36, %38 : vector<125x64xf32>
    %40 = arith.addf %35, %39 : vector<125x64xf32>
    %c12 = arith.constant 12 : index
    %c0_40 = arith.constant 0 : index
    %41 = vector.load %arg11[%c12, %c0_40] : memref<141x64xf32, #tpu.memory_space<vmem>>, vector<125x64xf32>
    %c0_41 = arith.constant 0 : index
    %c6 = arith.constant 6 : index
    %c0_42 = arith.constant 0 : index
    %c0_43 = arith.constant 0 : index
    %42 = vector.load %arg4[%c0_41, %c6, %c0_42, %c0_43] : memref<4x9x125x64xf32, #tpu.memory_space<vmem>>, vector<1x1x125x64xf32>
    %43 = vector.shape_cast %42 : vector<1x1x125x64xf32> to vector<125x64xf32>
    %44 = arith.mulf %41, %43 : vector<125x64xf32>
    %45 = arith.addf %40, %44 : vector<125x64xf32>
    %c13 = arith.constant 13 : index
    %c0_44 = arith.constant 0 : index
    %46 = vector.load %arg11[%c13, %c0_44] : memref<141x64xf32, #tpu.memory_space<vmem>>, vector<125x64xf32>
    %c0_45 = arith.constant 0 : index
    %c7_46 = arith.constant 7 : index
    %c0_47 = arith.constant 0 : index
    %c0_48 = arith.constant 0 : index
    %47 = vector.load %arg4[%c0_45, %c7_46, %c0_47, %c0_48] : memref<4x9x125x64xf32, #tpu.memory_space<vmem>>, vector<1x1x125x64xf32>
    %48 = vector.shape_cast %47 : vector<1x1x125x64xf32> to vector<125x64xf32>
    %49 = arith.mulf %46, %48 : vector<125x64xf32>
    %50 = arith.addf %45, %49 : vector<125x64xf32>
    %c14 = arith.constant 14 : index
    %c0_49 = arith.constant 0 : index
    %51 = vector.load %arg11[%c14, %c0_49] : memref<141x64xf32, #tpu.memory_space<vmem>>, vector<125x64xf32>
    %c0_50 = arith.constant 0 : index
    %c8_51 = arith.constant 8 : index
    %c0_52 = arith.constant 0 : index
    %c0_53 = arith.constant 0 : index
    %52 = vector.load %arg4[%c0_50, %c8_51, %c0_52, %c0_53] : memref<4x9x125x64xf32, #tpu.memory_space<vmem>>, vector<1x1x125x64xf32>
    %53 = vector.shape_cast %52 : vector<1x1x125x64xf32> to vector<125x64xf32>
    %54 = arith.mulf %51, %53 : vector<125x64xf32>
    %55 = arith.addf %50, %54 : vector<125x64xf32>
    %c0_54 = arith.constant 0 : index
    %c0_55 = arith.constant 0 : index
    %c0_56 = arith.constant 0 : index
    %56 = vector.load %arg5[%c0_54, %c0_55, %c0_56] : memref<4x1x64xf32, #tpu.memory_space<vmem>>, vector<1x1x64xf32>
    %57 = vector.shape_cast %56 : vector<1x1x64xf32> to vector<1x64xf32>
    %58 = vector.broadcast %57 : vector<1x64xf32> to vector<125x64xf32>
    %59 = arith.addf %55, %58 : vector<125x64xf32>
    %cst_57 = arith.constant 0.000000e+00 : f32
    %60 = vector.broadcast %cst_57 : f32 to vector<125x64xf32>
    %61 = arith.maximumf %59, %60 : vector<125x64xf32>
    %c0_58 = arith.constant 0 : index
    %c0_59 = arith.constant 0 : index
    %c0_60 = arith.constant 0 : index
    %62 = vector.load %arg6[%c0_58, %c0_59, %c0_60] : memref<4x64x64xf32, #tpu.memory_space<vmem>>, vector<1x64x64xf32>
    %63 = vector.shape_cast %62 : vector<1x64x64xf32> to vector<64x64xf32>
    %cst_61 = arith.constant dense<0.000000e+00> : vector<125x64xf32>
    %64 = tpu.matmul %61, %63, %cst_61 {dimension_numbers = #tpu.dot_dimension_numbers<[1], [0], [0], [1], [0, 0, 1, 1], [], []>} : vector<125x64xf32>, vector<64x64xf32>, vector<125x64xf32> -> vector<125x64xf32>
    %c0_62 = arith.constant 0 : index
    %c0_63 = arith.constant 0 : index
    %c0_64 = arith.constant 0 : index
    %65 = vector.load %arg7[%c0_62, %c0_63, %c0_64] : memref<4x1x64xf32, #tpu.memory_space<vmem>>, vector<1x1x64xf32>
    %66 = vector.shape_cast %65 : vector<1x1x64xf32> to vector<1x64xf32>
    %67 = vector.broadcast %66 : vector<1x64xf32> to vector<125x64xf32>
    %68 = arith.addf %64, %67 : vector<125x64xf32>
    %cst_65 = arith.constant 0.000000e+00 : f32
    %69 = vector.broadcast %cst_65 : f32 to vector<125x64xf32>
    %70 = arith.maximumf %68, %69 : vector<125x64xf32>
    %c8_66 = arith.constant 8 : index
    %c0_67 = arith.constant 0 : index
    %71 = vector.load %arg11[%c8_66, %c0_67] : memref<141x64xf32, #tpu.memory_space<vmem>>, vector<125x64xf32>
    tpu.vector_store %arg11[%c8_66, %c0_67], %70 {strides = array<i32>} : memref<141x64xf32, #tpu.memory_space<vmem>>, vector<125x64xf32>,
    %c2_68 = arith.constant 2 : index
    %c0_69 = arith.constant 0 : index
    %72 = vector.load %arg11[%c2_68, %c0_69] : memref<141x64xf32, #tpu.memory_space<vmem>>, vector<125x64xf32>
    %c1_70 = arith.constant 1 : index
    %c0_71 = arith.constant 0 : index
    %c0_72 = arith.constant 0 : index
    %c0_73 = arith.constant 0 : index
    %73 = vector.load %arg4[%c1_70, %c0_71, %c0_72, %c0_73] : memref<4x9x125x64xf32, #tpu.memory_space<vmem>>, vector<1x1x125x64xf32>
    %74 = vector.shape_cast %73 : vector<1x1x125x64xf32> to vector<125x64xf32>
    %75 = arith.mulf %72, %74 : vector<125x64xf32>
    %c3_74 = arith.constant 3 : index
    %c0_75 = arith.constant 0 : index
    %76 = vector.load %arg11[%c3_74, %c0_75] : memref<141x64xf32, #tpu.memory_space<vmem>>, vector<125x64xf32>
    %c1_76 = arith.constant 1 : index
    %c1_77 = arith.constant 1 : index
    %c0_78 = arith.constant 0 : index
    %c0_79 = arith.constant 0 : index
    %77 = vector.load %arg4[%c1_76, %c1_77, %c0_78, %c0_79] : memref<4x9x125x64xf32, #tpu.memory_space<vmem>>, vector<1x1x125x64xf32>
    %78 = vector.shape_cast %77 : vector<1x1x125x64xf32> to vector<125x64xf32>
    %79 = arith.mulf %76, %78 : vector<125x64xf32>
    %80 = arith.addf %75, %79 : vector<125x64xf32>
    %c4_80 = arith.constant 4 : index
    %c0_81 = arith.constant 0 : index
    %81 = vector.load %arg11[%c4_80, %c0_81] : memref<141x64xf32, #tpu.memory_space<vmem>>, vector<125x64xf32>
    %c1_82 = arith.constant 1 : index
    %c2_83 = arith.constant 2 : index
    %c0_84 = arith.constant 0 : index
    %c0_85 = arith.constant 0 : index
    %82 = vector.load %arg4[%c1_82, %c2_83, %c0_84, %c0_85] : memref<4x9x125x64xf32, #tpu.memory_space<vmem>>, vector<1x1x125x64xf32>
    %83 = vector.shape_cast %82 : vector<1x1x125x64xf32> to vector<125x64xf32>
    %84 = arith.mulf %81, %83 : vector<125x64xf32>
    %85 = arith.addf %80, %84 : vector<125x64xf32>
    %c7_86 = arith.constant 7 : index
    %c0_87 = arith.constant 0 : index
    %86 = vector.load %arg11[%c7_86, %c0_87] : memref<141x64xf32, #tpu.memory_space<vmem>>, vector<125x64xf32>
    %c1_88 = arith.constant 1 : index
    %c3_89 = arith.constant 3 : index
    %c0_90 = arith.constant 0 : index
    %c0_91 = arith.constant 0 : index
    %87 = vector.load %arg4[%c1_88, %c3_89, %c0_90, %c0_91] : memref<4x9x125x64xf32, #tpu.memory_space<vmem>>, vector<1x1x125x64xf32>
    %88 = vector.shape_cast %87 : vector<1x1x125x64xf32> to vector<125x64xf32>
    %89 = arith.mulf %86, %88 : vector<125x64xf32>
    %90 = arith.addf %85, %89 : vector<125x64xf32>
    %c8_92 = arith.constant 8 : index
    %c0_93 = arith.constant 0 : index
    %91 = vector.load %arg11[%c8_92, %c0_93] : memref<141x64xf32, #tpu.memory_space<vmem>>, vector<125x64xf32>
    %c1_94 = arith.constant 1 : index
    %c4_95 = arith.constant 4 : index
    %c0_96 = arith.constant 0 : index
    %c0_97 = arith.constant 0 : index
    %92 = vector.load %arg4[%c1_94, %c4_95, %c0_96, %c0_97] : memref<4x9x125x64xf32, #tpu.memory_space<vmem>>, vector<1x1x125x64xf32>
    %93 = vector.shape_cast %92 : vector<1x1x125x64xf32> to vector<125x64xf32>
    %94 = arith.mulf %91, %93 : vector<125x64xf32>
    %95 = arith.addf %90, %94 : vector<125x64xf32>
    %c9_98 = arith.constant 9 : index
    %c0_99 = arith.constant 0 : index
    %96 = vector.load %arg11[%c9_98, %c0_99] : memref<141x64xf32, #tpu.memory_space<vmem>>, vector<125x64xf32>
    %c1_100 = arith.constant 1 : index
    %c5_101 = arith.constant 5 : index
    %c0_102 = arith.constant 0 : index
    %c0_103 = arith.constant 0 : index
    %97 = vector.load %arg4[%c1_100, %c5_101, %c0_102, %c0_103] : memref<4x9x125x64xf32, #tpu.memory_space<vmem>>, vector<1x1x125x64xf32>
    %98 = vector.shape_cast %97 : vector<1x1x125x64xf32> to vector<125x64xf32>
    %99 = arith.mulf %96, %98 : vector<125x64xf32>
    %100 = arith.addf %95, %99 : vector<125x64xf32>
    %c12_104 = arith.constant 12 : index
    %c0_105 = arith.constant 0 : index
    %101 = vector.load %arg11[%c12_104, %c0_105] : memref<141x64xf32, #tpu.memory_space<vmem>>, vector<125x64xf32>
    %c1_106 = arith.constant 1 : index
    %c6_107 = arith.constant 6 : index
    %c0_108 = arith.constant 0 : index
    %c0_109 = arith.constant 0 : index
    %102 = vector.load %arg4[%c1_106, %c6_107, %c0_108, %c0_109] : memref<4x9x125x64xf32, #tpu.memory_space<vmem>>, vector<1x1x125x64xf32>
    %103 = vector.shape_cast %102 : vector<1x1x125x64xf32> to vector<125x64xf32>
    %104 = arith.mulf %101, %103 : vector<125x64xf32>
    %105 = arith.addf %100, %104 : vector<125x64xf32>
    %c13_110 = arith.constant 13 : index
    %c0_111 = arith.constant 0 : index
    %106 = vector.load %arg11[%c13_110, %c0_111] : memref<141x64xf32, #tpu.memory_space<vmem>>, vector<125x64xf32>
    %c1_112 = arith.constant 1 : index
    %c7_113 = arith.constant 7 : index
    %c0_114 = arith.constant 0 : index
    %c0_115 = arith.constant 0 : index
    %107 = vector.load %arg4[%c1_112, %c7_113, %c0_114, %c0_115] : memref<4x9x125x64xf32, #tpu.memory_space<vmem>>, vector<1x1x125x64xf32>
    %108 = vector.shape_cast %107 : vector<1x1x125x64xf32> to vector<125x64xf32>
    %109 = arith.mulf %106, %108 : vector<125x64xf32>
    %110 = arith.addf %105, %109 : vector<125x64xf32>
    %c14_116 = arith.constant 14 : index
    %c0_117 = arith.constant 0 : index
    %111 = vector.load %arg11[%c14_116, %c0_117] : memref<141x64xf32, #tpu.memory_space<vmem>>, vector<125x64xf32>
    %c1_118 = arith.constant 1 : index
    %c8_119 = arith.constant 8 : index
    %c0_120 = arith.constant 0 : index
    %c0_121 = arith.constant 0 : index
    %112 = vector.load %arg4[%c1_118, %c8_119, %c0_120, %c0_121] : memref<4x9x125x64xf32, #tpu.memory_space<vmem>>, vector<1x1x125x64xf32>
    %113 = vector.shape_cast %112 : vector<1x1x125x64xf32> to vector<125x64xf32>
    %114 = arith.mulf %111, %113 : vector<125x64xf32>
    %115 = arith.addf %110, %114 : vector<125x64xf32>
    %c1_122 = arith.constant 1 : index
    %c0_123 = arith.constant 0 : index
    %c0_124 = arith.constant 0 : index
    %116 = vector.load %arg5[%c1_122, %c0_123, %c0_124] : memref<4x1x64xf32, #tpu.memory_space<vmem>>, vector<1x1x64xf32>
    %117 = vector.shape_cast %116 : vector<1x1x64xf32> to vector<1x64xf32>
    %118 = vector.broadcast %117 : vector<1x64xf32> to vector<125x64xf32>
    %119 = arith.addf %115, %118 : vector<125x64xf32>
    %cst_125 = arith.constant 0.000000e+00 : f32
    %120 = vector.broadcast %cst_125 : f32 to vector<125x64xf32>
    %121 = arith.maximumf %119, %120 : vector<125x64xf32>
    %c1_126 = arith.constant 1 : index
    %c0_127 = arith.constant 0 : index
    %c0_128 = arith.constant 0 : index
    %122 = vector.load %arg6[%c1_126, %c0_127, %c0_128] : memref<4x64x64xf32, #tpu.memory_space<vmem>>, vector<1x64x64xf32>
    %123 = vector.shape_cast %122 : vector<1x64x64xf32> to vector<64x64xf32>
    %cst_129 = arith.constant dense<0.000000e+00> : vector<125x64xf32>
    %124 = tpu.matmul %121, %123, %cst_129 {dimension_numbers = #tpu.dot_dimension_numbers<[1], [0], [0], [1], [0, 0, 1, 1], [], []>} : vector<125x64xf32>, vector<64x64xf32>, vector<125x64xf32> -> vector<125x64xf32>
    %c1_130 = arith.constant 1 : index
    %c0_131 = arith.constant 0 : index
    %c0_132 = arith.constant 0 : index
    %125 = vector.load %arg7[%c1_130, %c0_131, %c0_132] : memref<4x1x64xf32, #tpu.memory_space<vmem>>, vector<1x1x64xf32>
    %126 = vector.shape_cast %125 : vector<1x1x64xf32> to vector<1x64xf32>
    %127 = vector.broadcast %126 : vector<1x64xf32> to vector<125x64xf32>
    %128 = arith.addf %124, %127 : vector<125x64xf32>
    %cst_133 = arith.constant 0.000000e+00 : f32
    %129 = vector.broadcast %cst_133 : f32 to vector<125x64xf32>
    %130 = arith.maximumf %128, %129 : vector<125x64xf32>
    %c8_134 = arith.constant 8 : index
    %c0_135 = arith.constant 0 : index
    %131 = vector.load %arg11[%c8_134, %c0_135] : memref<141x64xf32, #tpu.memory_space<vmem>>, vector<125x64xf32>
    tpu.vector_store %arg11[%c8_134, %c0_135], %130 {strides = array<i32>} : memref<141x64xf32, #tpu.memory_space<vmem>>, vector<125x64xf32>,
    %c2_136 = arith.constant 2 : index
    %c0_137 = arith.constant 0 : index
    %132 = vector.load %arg11[%c2_136, %c0_137] : memref<141x64xf32, #tpu.memory_space<vmem>>, vector<125x64xf32>
    %c2_138 = arith.constant 2 : index
    %c0_139 = arith.constant 0 : index
    %c0_140 = arith.constant 0 : index
    %c0_141 = arith.constant 0 : index
    %133 = vector.load %arg4[%c2_138, %c0_139, %c0_140, %c0_141] : memref<4x9x125x64xf32, #tpu.memory_space<vmem>>, vector<1x1x125x64xf32>
    %134 = vector.shape_cast %133 : vector<1x1x125x64xf32> to vector<125x64xf32>
    %135 = arith.mulf %132, %134 : vector<125x64xf32>
    %c3_142 = arith.constant 3 : index
    %c0_143 = arith.constant 0 : index
    %136 = vector.load %arg11[%c3_142, %c0_143] : memref<141x64xf32, #tpu.memory_space<vmem>>, vector<125x64xf32>
    %c2_144 = arith.constant 2 : index
    %c1_145 = arith.constant 1 : index
    %c0_146 = arith.constant 0 : index
    %c0_147 = arith.constant 0 : index
    %137 = vector.load %arg4[%c2_144, %c1_145, %c0_146, %c0_147] : memref<4x9x125x64xf32, #tpu.memory_space<vmem>>, vector<1x1x125x64xf32>
    %138 = vector.shape_cast %137 : vector<1x1x125x64xf32> to vector<125x64xf32>
    %139 = arith.mulf %136, %138 : vector<125x64xf32>
    %140 = arith.addf %135, %139 : vector<125x64xf32>
    %c4_148 = arith.constant 4 : index
    %c0_149 = arith.constant 0 : index
    %141 = vector.load %arg11[%c4_148, %c0_149] : memref<141x64xf32, #tpu.memory_space<vmem>>, vector<125x64xf32>
    %c2_150 = arith.constant 2 : index
    %c2_151 = arith.constant 2 : index
    %c0_152 = arith.constant 0 : index
    %c0_153 = arith.constant 0 : index
    %142 = vector.load %arg4[%c2_150, %c2_151, %c0_152, %c0_153] : memref<4x9x125x64xf32, #tpu.memory_space<vmem>>, vector<1x1x125x64xf32>
    %143 = vector.shape_cast %142 : vector<1x1x125x64xf32> to vector<125x64xf32>
    %144 = arith.mulf %141, %143 : vector<125x64xf32>
    %145 = arith.addf %140, %144 : vector<125x64xf32>
    %c7_154 = arith.constant 7 : index
    %c0_155 = arith.constant 0 : index
    %146 = vector.load %arg11[%c7_154, %c0_155] : memref<141x64xf32, #tpu.memory_space<vmem>>, vector<125x64xf32>
    %c2_156 = arith.constant 2 : index
    %c3_157 = arith.constant 3 : index
    %c0_158 = arith.constant 0 : index
    %c0_159 = arith.constant 0 : index
    %147 = vector.load %arg4[%c2_156, %c3_157, %c0_158, %c0_159] : memref<4x9x125x64xf32, #tpu.memory_space<vmem>>, vector<1x1x125x64xf32>
    %148 = vector.shape_cast %147 : vector<1x1x125x64xf32> to vector<125x64xf32>
    %149 = arith.mulf %146, %148 : vector<125x64xf32>
    %150 = arith.addf %145, %149 : vector<125x64xf32>
    %c8_160 = arith.constant 8 : index
    %c0_161 = arith.constant 0 : index
    %151 = vector.load %arg11[%c8_160, %c0_161] : memref<141x64xf32, #tpu.memory_space<vmem>>, vector<125x64xf32>
    %c2_162 = arith.constant 2 : index
    %c4_163 = arith.constant 4 : index
    %c0_164 = arith.constant 0 : index
    %c0_165 = arith.constant 0 : index
    %152 = vector.load %arg4[%c2_162, %c4_163, %c0_164, %c0_165] : memref<4x9x125x64xf32, #tpu.memory_space<vmem>>, vector<1x1x125x64xf32>
    %153 = vector.shape_cast %152 : vector<1x1x125x64xf32> to vector<125x64xf32>
    %154 = arith.mulf %151, %153 : vector<125x64xf32>
    %155 = arith.addf %150, %154 : vector<125x64xf32>
    %c9_166 = arith.constant 9 : index
    %c0_167 = arith.constant 0 : index
    %156 = vector.load %arg11[%c9_166, %c0_167] : memref<141x64xf32, #tpu.memory_space<vmem>>, vector<125x64xf32>
    %c2_168 = arith.constant 2 : index
    %c5_169 = arith.constant 5 : index
    %c0_170 = arith.constant 0 : index
    %c0_171 = arith.constant 0 : index
    %157 = vector.load %arg4[%c2_168, %c5_169, %c0_170, %c0_171] : memref<4x9x125x64xf32, #tpu.memory_space<vmem>>, vector<1x1x125x64xf32>
    %158 = vector.shape_cast %157 : vector<1x1x125x64xf32> to vector<125x64xf32>
    %159 = arith.mulf %156, %158 : vector<125x64xf32>
    %160 = arith.addf %155, %159 : vector<125x64xf32>
    %c12_172 = arith.constant 12 : index
    %c0_173 = arith.constant 0 : index
    %161 = vector.load %arg11[%c12_172, %c0_173] : memref<141x64xf32, #tpu.memory_space<vmem>>, vector<125x64xf32>
    %c2_174 = arith.constant 2 : index
    %c6_175 = arith.constant 6 : index
    %c0_176 = arith.constant 0 : index
    %c0_177 = arith.constant 0 : index
    %162 = vector.load %arg4[%c2_174, %c6_175, %c0_176, %c0_177] : memref<4x9x125x64xf32, #tpu.memory_space<vmem>>, vector<1x1x125x64xf32>
    %163 = vector.shape_cast %162 : vector<1x1x125x64xf32> to vector<125x64xf32>
    %164 = arith.mulf %161, %163 : vector<125x64xf32>
    %165 = arith.addf %160, %164 : vector<125x64xf32>
    %c13_178 = arith.constant 13 : index
    %c0_179 = arith.constant 0 : index
    %166 = vector.load %arg11[%c13_178, %c0_179] : memref<141x64xf32, #tpu.memory_space<vmem>>, vector<125x64xf32>
    %c2_180 = arith.constant 2 : index
    %c7_181 = arith.constant 7 : index
    %c0_182 = arith.constant 0 : index
    %c0_183 = arith.constant 0 : index
    %167 = vector.load %arg4[%c2_180, %c7_181, %c0_182, %c0_183] : memref<4x9x125x64xf32, #tpu.memory_space<vmem>>, vector<1x1x125x64xf32>
    %168 = vector.shape_cast %167 : vector<1x1x125x64xf32> to vector<125x64xf32>
    %169 = arith.mulf %166, %168 : vector<125x64xf32>
    %170 = arith.addf %165, %169 : vector<125x64xf32>
    %c14_184 = arith.constant 14 : index
    %c0_185 = arith.constant 0 : index
    %171 = vector.load %arg11[%c14_184, %c0_185] : memref<141x64xf32, #tpu.memory_space<vmem>>, vector<125x64xf32>
    %c2_186 = arith.constant 2 : index
    %c8_187 = arith.constant 8 : index
    %c0_188 = arith.constant 0 : index
    %c0_189 = arith.constant 0 : index
    %172 = vector.load %arg4[%c2_186, %c8_187, %c0_188, %c0_189] : memref<4x9x125x64xf32, #tpu.memory_space<vmem>>, vector<1x1x125x64xf32>
    %173 = vector.shape_cast %172 : vector<1x1x125x64xf32> to vector<125x64xf32>
    %174 = arith.mulf %171, %173 : vector<125x64xf32>
    %175 = arith.addf %170, %174 : vector<125x64xf32>
    %c2_190 = arith.constant 2 : index
    %c0_191 = arith.constant 0 : index
    %c0_192 = arith.constant 0 : index
    %176 = vector.load %arg5[%c2_190, %c0_191, %c0_192] : memref<4x1x64xf32, #tpu.memory_space<vmem>>, vector<1x1x64xf32>
    %177 = vector.shape_cast %176 : vector<1x1x64xf32> to vector<1x64xf32>
    %178 = vector.broadcast %177 : vector<1x64xf32> to vector<125x64xf32>
    %179 = arith.addf %175, %178 : vector<125x64xf32>
    %cst_193 = arith.constant 0.000000e+00 : f32
    %180 = vector.broadcast %cst_193 : f32 to vector<125x64xf32>
    %181 = arith.maximumf %179, %180 : vector<125x64xf32>
    %c2_194 = arith.constant 2 : index
    %c0_195 = arith.constant 0 : index
    %c0_196 = arith.constant 0 : index
    %182 = vector.load %arg6[%c2_194, %c0_195, %c0_196] : memref<4x64x64xf32, #tpu.memory_space<vmem>>, vector<1x64x64xf32>
    %183 = vector.shape_cast %182 : vector<1x64x64xf32> to vector<64x64xf32>
    %cst_197 = arith.constant dense<0.000000e+00> : vector<125x64xf32>
    %184 = tpu.matmul %181, %183, %cst_197 {dimension_numbers = #tpu.dot_dimension_numbers<[1], [0], [0], [1], [0, 0, 1, 1], [], []>} : vector<125x64xf32>, vector<64x64xf32>, vector<125x64xf32> -> vector<125x64xf32>
    %c2_198 = arith.constant 2 : index
    %c0_199 = arith.constant 0 : index
    %c0_200 = arith.constant 0 : index
    %185 = vector.load %arg7[%c2_198, %c0_199, %c0_200] : memref<4x1x64xf32, #tpu.memory_space<vmem>>, vector<1x1x64xf32>
    %186 = vector.shape_cast %185 : vector<1x1x64xf32> to vector<1x64xf32>
    %187 = vector.broadcast %186 : vector<1x64xf32> to vector<125x64xf32>
    %188 = arith.addf %184, %187 : vector<125x64xf32>
    %cst_201 = arith.constant 0.000000e+00 : f32
    %189 = vector.broadcast %cst_201 : f32 to vector<125x64xf32>
    %190 = arith.maximumf %188, %189 : vector<125x64xf32>
    %c8_202 = arith.constant 8 : index
    %c0_203 = arith.constant 0 : index
    %191 = vector.load %arg11[%c8_202, %c0_203] : memref<141x64xf32, #tpu.memory_space<vmem>>, vector<125x64xf32>
    tpu.vector_store %arg11[%c8_202, %c0_203], %190 {strides = array<i32>} : memref<141x64xf32, #tpu.memory_space<vmem>>, vector<125x64xf32>,
    %c2_204 = arith.constant 2 : index
    %c0_205 = arith.constant 0 : index
    %192 = vector.load %arg11[%c2_204, %c0_205] : memref<141x64xf32, #tpu.memory_space<vmem>>, vector<125x64xf32>
    %c3_206 = arith.constant 3 : index
    %c0_207 = arith.constant 0 : index
    %c0_208 = arith.constant 0 : index
    %c0_209 = arith.constant 0 : index
    %193 = vector.load %arg4[%c3_206, %c0_207, %c0_208, %c0_209] : memref<4x9x125x64xf32, #tpu.memory_space<vmem>>, vector<1x1x125x64xf32>
    %194 = vector.shape_cast %193 : vector<1x1x125x64xf32> to vector<125x64xf32>
    %195 = arith.mulf %192, %194 : vector<125x64xf32>
    %c3_210 = arith.constant 3 : index
    %c0_211 = arith.constant 0 : index
    %196 = vector.load %arg11[%c3_210, %c0_211] : memref<141x64xf32, #tpu.memory_space<vmem>>, vector<125x64xf32>
    %c3_212 = arith.constant 3 : index
    %c1_213 = arith.constant 1 : index
    %c0_214 = arith.constant 0 : index
    %c0_215 = arith.constant 0 : index
    %197 = vector.load %arg4[%c3_212, %c1_213, %c0_214, %c0_215] : memref<4x9x125x64xf32, #tpu.memory_space<vmem>>, vector<1x1x125x64xf32>
    %198 = vector.shape_cast %197 : vector<1x1x125x64xf32> to vector<125x64xf32>
    %199 = arith.mulf %196, %198 : vector<125x64xf32>
    %200 = arith.addf %195, %199 : vector<125x64xf32>
    %c4_216 = arith.constant 4 : index
    %c0_217 = arith.constant 0 : index
    %201 = vector.load %arg11[%c4_216, %c0_217] : memref<141x64xf32, #tpu.memory_space<vmem>>, vector<125x64xf32>
    %c3_218 = arith.constant 3 : index
    %c2_219 = arith.constant 2 : index
    %c0_220 = arith.constant 0 : index
    %c0_221 = arith.constant 0 : index
    %202 = vector.load %arg4[%c3_218, %c2_219, %c0_220, %c0_221] : memref<4x9x125x64xf32, #tpu.memory_space<vmem>>, vector<1x1x125x64xf32>
    %203 = vector.shape_cast %202 : vector<1x1x125x64xf32> to vector<125x64xf32>
    %204 = arith.mulf %201, %203 : vector<125x64xf32>
    %205 = arith.addf %200, %204 : vector<125x64xf32>
    %c7_222 = arith.constant 7 : index
    %c0_223 = arith.constant 0 : index
    %206 = vector.load %arg11[%c7_222, %c0_223] : memref<141x64xf32, #tpu.memory_space<vmem>>, vector<125x64xf32>
    %c3_224 = arith.constant 3 : index
    %c3_225 = arith.constant 3 : index
    %c0_226 = arith.constant 0 : index
    %c0_227 = arith.constant 0 : index
    %207 = vector.load %arg4[%c3_224, %c3_225, %c0_226, %c0_227] : memref<4x9x125x64xf32, #tpu.memory_space<vmem>>, vector<1x1x125x64xf32>
    %208 = vector.shape_cast %207 : vector<1x1x125x64xf32> to vector<125x64xf32>
    %209 = arith.mulf %206, %208 : vector<125x64xf32>
    %210 = arith.addf %205, %209 : vector<125x64xf32>
    %c8_228 = arith.constant 8 : index
    %c0_229 = arith.constant 0 : index
    %211 = vector.load %arg11[%c8_228, %c0_229] : memref<141x64xf32, #tpu.memory_space<vmem>>, vector<125x64xf32>
    %c3_230 = arith.constant 3 : index
    %c4_231 = arith.constant 4 : index
    %c0_232 = arith.constant 0 : index
    %c0_233 = arith.constant 0 : index
    %212 = vector.load %arg4[%c3_230, %c4_231, %c0_232, %c0_233] : memref<4x9x125x64xf32, #tpu.memory_space<vmem>>, vector<1x1x125x64xf32>
    %213 = vector.shape_cast %212 : vector<1x1x125x64xf32> to vector<125x64xf32>
    %214 = arith.mulf %211, %213 : vector<125x64xf32>
    %215 = arith.addf %210, %214 : vector<125x64xf32>
    %c9_234 = arith.constant 9 : index
    %c0_235 = arith.constant 0 : index
    %216 = vector.load %arg11[%c9_234, %c0_235] : memref<141x64xf32, #tpu.memory_space<vmem>>, vector<125x64xf32>
    %c3_236 = arith.constant 3 : index
    %c5_237 = arith.constant 5 : index
    %c0_238 = arith.constant 0 : index
    %c0_239 = arith.constant 0 : index
    %217 = vector.load %arg4[%c3_236, %c5_237, %c0_238, %c0_239] : memref<4x9x125x64xf32, #tpu.memory_space<vmem>>, vector<1x1x125x64xf32>
    %218 = vector.shape_cast %217 : vector<1x1x125x64xf32> to vector<125x64xf32>
    %219 = arith.mulf %216, %218 : vector<125x64xf32>
    %220 = arith.addf %215, %219 : vector<125x64xf32>
    %c12_240 = arith.constant 12 : index
    %c0_241 = arith.constant 0 : index
    %221 = vector.load %arg11[%c12_240, %c0_241] : memref<141x64xf32, #tpu.memory_space<vmem>>, vector<125x64xf32>
    %c3_242 = arith.constant 3 : index
    %c6_243 = arith.constant 6 : index
    %c0_244 = arith.constant 0 : index
    %c0_245 = arith.constant 0 : index
    %222 = vector.load %arg4[%c3_242, %c6_243, %c0_244, %c0_245] : memref<4x9x125x64xf32, #tpu.memory_space<vmem>>, vector<1x1x125x64xf32>
    %223 = vector.shape_cast %222 : vector<1x1x125x64xf32> to vector<125x64xf32>
    %224 = arith.mulf %221, %223 : vector<125x64xf32>
    %225 = arith.addf %220, %224 : vector<125x64xf32>
    %c13_246 = arith.constant 13 : index
    %c0_247 = arith.constant 0 : index
    %226 = vector.load %arg11[%c13_246, %c0_247] : memref<141x64xf32, #tpu.memory_space<vmem>>, vector<125x64xf32>
    %c3_248 = arith.constant 3 : index
    %c7_249 = arith.constant 7 : index
    %c0_250 = arith.constant 0 : index
    %c0_251 = arith.constant 0 : index
    %227 = vector.load %arg4[%c3_248, %c7_249, %c0_250, %c0_251] : memref<4x9x125x64xf32, #tpu.memory_space<vmem>>, vector<1x1x125x64xf32>
    %228 = vector.shape_cast %227 : vector<1x1x125x64xf32> to vector<125x64xf32>
    %229 = arith.mulf %226, %228 : vector<125x64xf32>
    %230 = arith.addf %225, %229 : vector<125x64xf32>
    %c14_252 = arith.constant 14 : index
    %c0_253 = arith.constant 0 : index
    %231 = vector.load %arg11[%c14_252, %c0_253] : memref<141x64xf32, #tpu.memory_space<vmem>>, vector<125x64xf32>
    %c3_254 = arith.constant 3 : index
    %c8_255 = arith.constant 8 : index
    %c0_256 = arith.constant 0 : index
    %c0_257 = arith.constant 0 : index
    %232 = vector.load %arg4[%c3_254, %c8_255, %c0_256, %c0_257] : memref<4x9x125x64xf32, #tpu.memory_space<vmem>>, vector<1x1x125x64xf32>
    %233 = vector.shape_cast %232 : vector<1x1x125x64xf32> to vector<125x64xf32>
    %234 = arith.mulf %231, %233 : vector<125x64xf32>
    %235 = arith.addf %230, %234 : vector<125x64xf32>
    %c3_258 = arith.constant 3 : index
    %c0_259 = arith.constant 0 : index
    %c0_260 = arith.constant 0 : index
    %236 = vector.load %arg5[%c3_258, %c0_259, %c0_260] : memref<4x1x64xf32, #tpu.memory_space<vmem>>, vector<1x1x64xf32>
    %237 = vector.shape_cast %236 : vector<1x1x64xf32> to vector<1x64xf32>
    %238 = vector.broadcast %237 : vector<1x64xf32> to vector<125x64xf32>
    %239 = arith.addf %235, %238 : vector<125x64xf32>
    %cst_261 = arith.constant 0.000000e+00 : f32
    %240 = vector.broadcast %cst_261 : f32 to vector<125x64xf32>
    %241 = arith.maximumf %239, %240 : vector<125x64xf32>
    %c3_262 = arith.constant 3 : index
    %c0_263 = arith.constant 0 : index
    %c0_264 = arith.constant 0 : index
    %242 = vector.load %arg6[%c3_262, %c0_263, %c0_264] : memref<4x64x64xf32, #tpu.memory_space<vmem>>, vector<1x64x64xf32>
    %243 = vector.shape_cast %242 : vector<1x64x64xf32> to vector<64x64xf32>
    %cst_265 = arith.constant dense<0.000000e+00> : vector<125x64xf32>
    %244 = tpu.matmul %241, %243, %cst_265 {dimension_numbers = #tpu.dot_dimension_numbers<[1], [0], [0], [1], [0, 0, 1, 1], [], []>} : vector<125x64xf32>, vector<64x64xf32>, vector<125x64xf32> -> vector<125x64xf32>
    %c3_266 = arith.constant 3 : index
    %c0_267 = arith.constant 0 : index
    %c0_268 = arith.constant 0 : index
    %245 = vector.load %arg7[%c3_266, %c0_267, %c0_268] : memref<4x1x64xf32, #tpu.memory_space<vmem>>, vector<1x1x64xf32>
    %246 = vector.shape_cast %245 : vector<1x1x64xf32> to vector<1x64xf32>
    %247 = vector.broadcast %246 : vector<1x64xf32> to vector<125x64xf32>
    %248 = arith.addf %244, %247 : vector<125x64xf32>
    %cst_269 = arith.constant 0.000000e+00 : f32
    %249 = vector.broadcast %cst_269 : f32 to vector<125x64xf32>
    %250 = arith.maximumf %248, %249 : vector<125x64xf32>
    %cst_270 = arith.constant dense<0.000000e+00> : vector<64xf32>
    %251 = vector.multi_reduction <add>, %250, %cst_270 [0] : vector<125x64xf32> to vector<64xf32>
    %252 = vector.shape_cast %251 : vector<64xf32> to vector<1x64xf32>
    %cst_271 = arith.constant 8.000000e-03 : f32
    %253 = vector.broadcast %cst_271 : f32 to vector<1x64xf32>
    %254 = arith.mulf %252, %253 : vector<1x64xf32>
    %c0_272 = arith.constant 0 : index
    %c0_273 = arith.constant 0 : index
    %255 = vector.load %arg8[%c0_272, %c0_273] : memref<64x12xf32, #tpu.memory_space<vmem>>, vector<64x12xf32>
    %cst_274 = arith.constant dense<0.000000e+00> : vector<1x12xf32>
    %256 = tpu.matmul %254, %255, %cst_274 {dimension_numbers = #tpu.dot_dimension_numbers<[1], [0], [0], [1], [0, 0, 1, 1], [], []>} : vector<1x64xf32>, vector<64x12xf32>, vector<1x12xf32> -> vector<1x12xf32>
    %c0_275 = arith.constant 0 : index
    %c0_276 = arith.constant 0 : index
    %257 = vector.load %arg9[%c0_275, %c0_276] : memref<1x12xf32, #tpu.memory_space<vmem>>, vector<1x12xf32>
    %258 = arith.addf %256, %257 : vector<1x12xf32>
    %c0_277 = arith.constant 0 : index
    %c0_278 = arith.constant 0 : index
    %c0_279 = arith.constant 0 : index
    %259 = vector.load %arg10[%c0_277, %c0_278, %c0_279] : memref<1x1x12xf32, #tpu.memory_space<vmem>>, vector<1x1x12xf32>
    %260 = vector.shape_cast %259 : vector<1x1x12xf32> to vector<1x12xf32>
    %261 = vector.shape_cast %258 : vector<1x12xf32> to vector<1x1x12xf32>
    tpu.vector_store %arg10[%c0_277, %c0_278, %c0_279], %261 {strides = array<i32>} : memref<1x1x12xf32, #tpu.memory_space<vmem>>, vector<1x1x12xf32>,
    return
  }
  func.func @transform_0(%arg0: i32) -> (i32, i32, i32) {
    %c0_i32 = arith.constant 0 : i32
    %c0_i32_0 = arith.constant 0 : i32
    %c0_i32_1 = arith.constant 0 : i32
    return %arg0, %c0_i32, %c0_i32_0 : i32, i32, i32
  }
  func.func @transform_1(%arg0: i32) -> (i32, i32) {
    %c0_i32 = arith.constant 0 : i32
    %c0_i32_0 = arith.constant 0 : i32
    %c0_i32_1 = arith.constant 0 : i32
    return %c0_i32, %c0_i32_0 : i32, i32
  }
  func.func @transform_2(%arg0: i32) -> (i32, i32) {
    %c0_i32 = arith.constant 0 : i32
    %c0_i32_0 = arith.constant 0 : i32
    %c0_i32_1 = arith.constant 0 : i32
    return %c0_i32, %c0_i32_0 : i32, i32
  }
  func.func @transform_3(%arg0: i32) -> (i32, i32, i32, i32) {
    %c0_i32 = arith.constant 0 : i32
    %c0_i32_0 = arith.constant 0 : i32
    %c0_i32_1 = arith.constant 0 : i32
    %c0_i32_2 = arith.constant 0 : i32
    %c0_i32_3 = arith.constant 0 : i32
    return %c0_i32, %c0_i32_0, %c0_i32_1, %c0_i32_2 : i32, i32, i32, i32
  }
  func.func @transform_4(%arg0: i32) -> (i32, i32, i32) {
    %c0_i32 = arith.constant 0 : i32
    %c0_i32_0 = arith.constant 0 : i32
    %c0_i32_1 = arith.constant 0 : i32
    %c0_i32_2 = arith.constant 0 : i32
    return %c0_i32, %c0_i32_0, %c0_i32_1 : i32, i32, i32
  }
  func.func @transform_5(%arg0: i32) -> (i32, i32, i32) {
    %c0_i32 = arith.constant 0 : i32
    %c0_i32_0 = arith.constant 0 : i32
    %c0_i32_1 = arith.constant 0 : i32
    %c0_i32_2 = arith.constant 0 : i32
    return %c0_i32, %c0_i32_0, %c0_i32_1 : i32, i32, i32
  }
  func.func @transform_6(%arg0: i32) -> (i32, i32, i32) {
    %c0_i32 = arith.constant 0 : i32
    %c0_i32_0 = arith.constant 0 : i32
    %c0_i32_1 = arith.constant 0 : i32
    %c0_i32_2 = arith.constant 0 : i32
    return %c0_i32, %c0_i32_0, %c0_i32_1 : i32, i32, i32
  }
  func.func @transform_7(%arg0: i32) -> (i32, i32) {
    %c0_i32 = arith.constant 0 : i32
    %c0_i32_0 = arith.constant 0 : i32
    %c0_i32_1 = arith.constant 0 : i32
    return %c0_i32, %c0_i32_0 : i32, i32
  }
  func.func @transform_8(%arg0: i32) -> (i32, i32) {
    %c0_i32 = arith.constant 0 : i32
    %c0_i32_0 = arith.constant 0 : i32
    %c0_i32_1 = arith.constant 0 : i32
    return %c0_i32, %c0_i32_0 : i32, i32
  }
  func.func @transform_9(%arg0: i32) -> (i32, i32, i32) {
    %c0_i32 = arith.constant 0 : i32
    %c0_i32_0 = arith.constant 0 : i32
    %c0_i32_1 = arith.constant 0 : i32
    return %arg0, %c0_i32, %c0_i32_0 : i32, i32, i32
  }
}

</mosaic_0001>

<llo_original>
// kernel: dscnn_forward_pallas.1
$region0: #{dscnn_forward_pallas.1}
  #allocation0 [shape = 'u32[]', space=smem, size = 0x4, offset = 0x4, fixed_abs, tag = 'smem constant byte address 0x4 - core index']
  #allocation1 [shape = 'u32[144,128]{1,0:T(1,128)}', space=vmem, size = 0x12000, scoped, tag = 'internal scratch']
  #allocation2 [shape = 'f32[141,64]{1,0:T(8,128)}', space=vmem, size = 0x12000, scoped, tag = 'scratch operand']
  %s0 = inlined_call_operand.vmem [shape: f32[2,125,40], index: 0, kind: input, shape index: {}]
  %s1 = inlined_call_operand.vmem [shape: f32[40,64], index: 1, kind: input, shape index: {}]
  %s2 = inlined_call_operand.vmem [shape: f32[1,64], index: 2, kind: input, shape index: {}]
  %s3 = inlined_call_operand.vmem [shape: f32[4,9,125,64], index: 3, kind: input, shape index: {}]
  %s4 = inlined_call_operand.vmem [shape: f32[4,1,64], index: 4, kind: input, shape index: {}]
  %s5 = inlined_call_operand.vmem [shape: f32[4,64,64], index: 5, kind: input, shape index: {}]
  %s6 = inlined_call_operand.vmem [shape: f32[4,1,64], index: 6, kind: input, shape index: {}]
  %s7 = inlined_call_operand.vmem [shape: f32[64,12], index: 7, kind: input, shape index: {}]
  %s8 = inlined_call_operand.vmem [shape: f32[1,12], index: 8, kind: input, shape index: {}]
  %s9 = inlined_call_operand.hbm [shape: f32[2,1,12], index: 9, kind: output, shape index: {}]
  %s10 = sld [smem:[#allocation0]]
  $region69: #{dscnn_forward_pallas.1} parent=0
    _
  %s12 = ssub.s32 1, %s10
  %s13 = scalar_select 0, %s12, %s10
  $region1: #{dscnn_forward_pallas.1} parent=0
    #allocation3 [shape = 'u8[1024]{0}', space=vmem, size = 0x400, scoped, tag = 'output window, operand 0']
    #allocation4 [shape = 's32[2]{0}', space=sflag, size = 0x8, scoped, tag = 'scoped memory for dscnn_forward_pallas.1']
    %14 = vsyncpa [#allocation4], 0
    %s15 = scalar_lea.sflag [#allocation4], 1
    %16 = vsyncpa %s15, 0
    loop: start=0, step=1, limit=4
    $region2: #{dscnn_forward_pallas.1} parent=1 // loop_pre_header
      _
    $region3: #{dscnn_forward_pallas.1} parent=1 // loop_header
      %s18 = sphi 0, %s22
      %p19 = scmp.ge.s32.totalorder %s18, 4
      %s28 = sphi 0, %s30
      %s31 = sphi 0, %s28
      %s32 = sphi 0, %s31
      %s48 = sphi 0, %s32
      %s52 = sphi 0, %s52
      %s54 = sphi 0, %s52
      %s55 = sphi 0, %s54
      %s69 = sphi 0, %s55
      %s73 = sphi 0, %s73
      %s75 = sphi 0, %s73
      %s76 = sphi 0, %s75
      %s90 = sphi 0, %s76
      %s94 = sphi 0, %s94
      %s96 = sphi 0, %s94
      %s97 = sphi 0, %s96
      %s111 = sphi 0, %s97
      %s115 = sphi 0, %s115
      %s117 = sphi 0, %s115
      %s118 = sphi 0, %s117
      %s132 = sphi 0, %s118
      %s136 = sphi 0, %s136
      %s138 = sphi 0, %s136
      %s139 = sphi 0, %s138
      %s153 = sphi 0, %s139
      %s157 = sphi 0, %s157
      %s159 = sphi 0, %s157
      %s160 = sphi 0, %s159
      %s174 = sphi 0, %s160
      %s178 = sphi 0, %s178
      %s180 = sphi 0, %s178
      %s181 = sphi 0, %s180
      %s195 = sphi 0, %s181
      %s199 = sphi 0, %s199
      %s201 = sphi 0, %s199
      %s202 = sphi 0, %s201
      %s216 = sphi 0, %s202
      %s222 = sphi 0, %s224
      %s225 = sphi 0, %s222
      %s226 = sphi 0, %s225
      %s242 = sphi 0, %s226
    $region4: #{dscnn_forward_pallas.1} parent=1 // loop_header_branch
      %21 = sbr.rel (%p19) target = $region8
    $region5: #{dscnn_forward_pallas.1} parent=1 // loop_body
      %s23 = ssub.s32 %s18, 1
      %s24 = ssub.s32 %s18, 2
      %s25 = sadd.s32 %s18, 1
      %s26 = ssub.s32 %s18, %s25
      %p27 = scmp.eq.s32.totalorder %s26, 0
      %s29 = sadd.s32 %s28, 1
      %s30 = scalar_select %p27, %s28, %s29
      %p33 = pneg %p27
      %p34 = scmp.eq.s32.totalorder %s18, 1
      %p35 = por %p33, %p34
      %p36 = scmp.ne.s32.totalorder %s28, %s31
      %p37 = scmp.eq.s32.totalorder %s18, 0
      %p38 = por %p36, %p37
      %p39 = scmp.ne.s32.totalorder %s28, %s31
      %p40 = scmp.eq.s32.totalorder %s23, 1
      %p41 = por %p39, %p40
      %p42 = scmp.ne.s32.totalorder %s31, %s32
      %p43 = scmp.eq.s32.totalorder %s23, 0
      %p44 = por %p42, %p43
      %p45 = scmp.ne.s32.totalorder %s31, %s32
      %p46 = scmp.eq.s32.totalorder %s24, 1
      %p47 = por %p45, %p46
      %p49 = scmp.ne.s32.totalorder %s32, %s48
      %p50 = scmp.eq.s32.totalorder %s24, 0
      %p51 = por %p49, %p50
      %s53 = sadd.s32 %s52, 1
      %p56 = scmp.eq.s32.totalorder %s18, 1
      %p57 = scmp.ne.s32.totalorder %s52, %s54
      %p58 = scmp.eq.s32.totalorder %s18, 0
      %p59 = por %p57, %p58
      %p60 = scmp.ne.s32.totalorder %s52, %s54
      %p61 = scmp.eq.s32.totalorder %s23, 1
      %p62 = por %p60, %p61
      %p63 = scmp.ne.s32.totalorder %s54, %s55
      %p64 = scmp.eq.s32.totalorder %s23, 0
      %p65 = por %p63, %p64
      %p66 = scmp.ne.s32.totalorder %s54, %s55
      %p67 = scmp.eq.s32.totalorder %s24, 1
      %p68 = por %p66, %p67
      %p70 = scmp.ne.s32.totalorder %s55, %s69
      %p71 = scmp.eq.s32.totalorder %s24, 0
      %p72 = por %p70, %p71
      %s74 = sadd.s32 %s73, 1
      %p77 = scmp.eq.s32.totalorder %s18, 1
      %p78 = scmp.ne.s32.totalorder %s73, %s75
      %p79 = scmp.eq.s32.totalorder %s18, 0
      %p80 = por %p78, %p79
      %p81 = scmp.ne.s32.totalorder %s73, %s75
      %p82 = scmp.eq.s32.totalorder %s23, 1
      %p83 = por %p81, %p82
      %p84 = scmp.ne.s32.totalorder %s75, %s76
      %p85 = scmp.eq.s32.totalorder %s23, 0
      %p86 = por %p84, %p85
      %p87 = scmp.ne.s32.totalorder %s75, %s76
      %p88 = scmp.eq.s32.totalorder %s24, 1
      %p89 = por %p87, %p88
      %p91 = scmp.ne.s32.totalorder %s76, %s90
      %p92 = scmp.eq.s32.totalorder %s24, 0
      %p93 = por %p91, %p92
      %s95 = sadd.s32 %s94, 1
      %p98 = scmp.eq.s32.totalorder %s18, 1
      %p99 = scmp.ne.s32.totalorder %s94, %s96
      %p100 = scmp.eq.s32.totalorder %s18, 0
      %p101 = por %p99, %p100
      %p102 = scmp.ne.s32.totalorder %s94, %s96
      %p103 = scmp.eq.s32.totalorder %s23, 1
      %p104 = por %p102, %p103
      %p105 = scmp.ne.s32.totalorder %s96, %s97
      %p106 = scmp.eq.s32.totalorder %s23, 0
      %p107 = por %p105, %p106
      %p108 = scmp.ne.s32.totalorder %s96, %s97
      %p109 = scmp.eq.s32.totalorder %s24, 1
      %p110 = por %p108, %p109
      %p112 = scmp.ne.s32.totalorder %s97, %s111
      %p113 = scmp.eq.s32.totalorder %s24, 0
      %p114 = por %p112, %p113
      %s116 = sadd.s32 %s115, 1
      %p119 = scmp.eq.s32.totalorder %s18, 1
      %p120 = scmp.ne.s32.totalorder %s115, %s117
      %p121 = scmp.eq.s32.totalorder %s18, 0
      %p122 = por %p120, %p121
      %p123 = scmp.ne.s32.totalorder %s115, %s117
      %p124 = scmp.eq.s32.totalorder %s23, 1
      %p125 = por %p123, %p124
      %p126 = scmp.ne.s32.totalorder %s117, %s118
      %p127 = scmp.eq.s32.totalorder %s23, 0
      %p128 = por %p126, %p127
      %p129 = scmp.ne.s32.totalorder %s117, %s118
      %p130 = scmp.eq.s32.totalorder %s24, 1
      %p131 = por %p129, %p130
      %p133 = scmp.ne.s32.totalorder %s118, %s132
      %p134 = scmp.eq.s32.totalorder %s24, 0
      %p135 = por %p133, %p134
      %s137 = sadd.s32 %s136, 1
      %p140 = scmp.eq.s32.totalorder %s18, 1
      %p141 = scmp.ne.s32.totalorder %s136, %s138
      %p142 = scmp.eq.s32.totalorder %s18, 0
      %p143 = por %p141, %p142
      %p144 = scmp.ne.s32.totalorder %s136, %s138
      %p145 = scmp.eq.s32.totalorder %s23, 1
      %p146 = por %p144, %p145
      %p147 = scmp.ne.s32.totalorder %s138, %s139
      %p148 = scmp.eq.s32.totalorder %s23, 0
      %p149 = por %p147, %p148
      %p150 = scmp.ne.s32.totalorder %s138, %s139
      %p151 = scmp.eq.s32.totalorder %s24, 1
      %p152 = por %p150, %p151
      %p154 = scmp.ne.s32.totalorder %s139, %s153
      %p155 = scmp.eq.s32.totalorder %s24, 0
      %p156 = por %p154, %p155
      %s158 = sadd.s32 %s157, 1
      %p161 = scmp.eq.s32.totalorder %s18, 1
      %p162 = scmp.ne.s32.totalorder %s157, %s159
      %p163 = scmp.eq.s32.totalorder %s18, 0
      %p164 = por %p162, %p163
      %p165 = scmp.ne.s32.totalorder %s157, %s159
      %p166 = scmp.eq.s32.totalorder %s23, 1
      %p167 = por %p165, %p166
      %p168 = scmp.ne.s32.totalorder %s159, %s160
      %p169 = scmp.eq.s32.totalorder %s23, 0
      %p170 = por %p168, %p169
      %p171 = scmp.ne.s32.totalorder %s159, %s160
      %p172 = scmp.eq.s32.totalorder %s24, 1
      %p173 = por %p171, %p172
      %p175 = scmp.ne.s32.totalorder %s160, %s174
      %p176 = scmp.eq.s32.totalorder %s24, 0
      %p177 = por %p175, %p176
      %s179 = sadd.s32 %s178, 1
      %p182 = scmp.eq.s32.totalorder %s18, 1
      %p183 = scmp.ne.s32.totalorder %s178, %s180
      %p184 = scmp.eq.s32.totalorder %s18, 0
      %p185 = por %p183, %p184
      %p186 = scmp.ne.s32.totalorder %s178, %s180
      %p187 = scmp.eq.s32.totalorder %s23, 1
      %p188 = por %p186, %p187
      %p189 = scmp.ne.s32.totalorder %s180, %s181
      %p190 = scmp.eq.s32.totalorder %s23, 0
      %p191 = por %p189, %p190
      %p192 = scmp.ne.s32.totalorder %s180, %s181
      %p193 = scmp.eq.s32.totalorder %s24, 1
      %p194 = por %p192, %p193
      %p196 = scmp.ne.s32.totalorder %s181, %s195
      %p197 = scmp.eq.s32.totalorder %s24, 0
      %p198 = por %p196, %p197
      %s200 = sadd.s32 %s199, 1
      %p203 = scmp.eq.s32.totalorder %s18, 1
      %p204 = scmp.ne.s32.totalorder %s199, %s201
      %p205 = scmp.eq.s32.totalorder %s18, 0
      %p206 = por %p204, %p205
      %p207 = scmp.ne.s32.totalorder %s199, %s201
      %p208 = scmp.eq.s32.totalorder %s23, 1
      %p209 = por %p207, %p208
      %p210 = scmp.ne.s32.totalorder %s201, %s202
      %p211 = scmp.eq.s32.totalorder %s23, 0
      %p212 = por %p210, %p211
      %p213 = scmp.ne.s32.totalorder %s201, %s202
      %p214 = scmp.eq.s32.totalorder %s24, 1
      %p215 = por %p213, %p214
      %p217 = scmp.ne.s32.totalorder %s202, %s216
      %p218 = scmp.eq.s32.totalorder %s24, 0
      %p219 = por %p217, %p218
      %s220 = ssub.s32 %s18, %s25
      %p221 = scmp.eq.s32.totalorder %s220, 0
      %s223 = sadd.s32 %s222, 1
      %s224 = scalar_select %p221, %s222, %s223
      %p227 = pneg %p221
      %p228 = scmp.eq.s32.totalorder %s18, 1
      %p229 = por %p227, %p228
      %p230 = scmp.ne.s32.totalorder %s222, %s225
      %p231 = scmp.eq.s32.totalorder %s18, 0
      %p232 = por %p230, %p231
      %p233 = scmp.ne.s32.totalorder %s222, %s225
      %p234 = scmp.eq.s32.totalorder %s23, 1
      %p235 = por %p233, %p234
      %p236 = scmp.ne.s32.totalorder %s225, %s226
      %p237 = scmp.eq.s32.totalorder %s23, 0
      %p238 = por %p236, %p237
      %p239 = scmp.ne.s32.totalorder %s225, %s226
      %p240 = scmp.eq.s32.totalorder %s24, 1
      %p241 = por %p239, %p240
      %p243 = scmp.ne.s32.totalorder %s226, %s242
      %p244 = scmp.eq.s32.totalorder %s24, 0
      %p245 = por %p243, %p244
      %p246 = scmp.le.s32.totalorder 1, %s18
      %p247 = scmp.lt.s32.totalorder %s18, 3
      %p248 = pnand %p246, %p247
      %p249 = pneg %p248
      // Predicated region
      $region9: #{dscnn_forward_pallas.1} parent=5 // pred_check
        _
      $region10: #{dscnn_forward_pallas.1} parent=5 // pred_check_branch
        %251 = sbr.rel (%p248) target = $region12
      $region11: #{dscnn_forward_pallas.1} parent=5 // pred_region
        %s252 = ssub.s32 %s18, 1
        // Predicated region
        $region13: #{dscnn_forward_pallas.1} parent=11 // pred_check
          %p253 = pneg %p65
        $region14: #{dscnn_forward_pallas.1} parent=11 // pred_check_branch
          %255 = sbr.rel (%p253) target = $region16
        $region15: #{dscnn_forward_pallas.1} parent=11 // pred_region
          _
        $region16: #{dscnn_forward_pallas.1} parent=11 // pred_fallthru
          _
        // Predicated region
        $region17: #{dscnn_forward_pallas.1} parent=11 // pred_check
          %p256 = pneg %p86
        $region18: #{dscnn_forward_pallas.1} parent=11 // pred_check_branch
          %258 = sbr.rel (%p256) target = $region20
        $region19: #{dscnn_forward_pallas.1} parent=11 // pred_region
          _
        $region20: #{dscnn_forward_pallas.1} parent=11 // pred_fallthru
          _
        // Predicated region
        $region21: #{dscnn_forward_pallas.1} parent=11 // pred_check
          %p259 = pneg %p107
        $region22: #{dscnn_forward_pallas.1} parent=11 // pred_check_branch
          %261 = sbr.rel (%p259) target = $region24
        $region23: #{dscnn_forward_pallas.1} parent=11 // pred_region
          _
        $region24: #{dscnn_forward_pallas.1} parent=11 // pred_fallthru
          _
        // Predicated region
        $region25: #{dscnn_forward_pallas.1} parent=11 // pred_check
          %p262 = pneg %p128
        $region26: #{dscnn_forward_pallas.1} parent=11 // pred_check_branch
          %264 = sbr.rel (%p262) target = $region28
        $region27: #{dscnn_forward_pallas.1} parent=11 // pred_region
          _
        $region28: #{dscnn_forward_pallas.1} parent=11 // pred_fallthru
          _
        // Predicated region
        $region29: #{dscnn_forward_pallas.1} parent=11 // pred_check
          %p265 = pneg %p149
        $region30: #{dscnn_forward_pallas.1} parent=11 // pred_check_branch
          %267 = sbr.rel (%p265) target = $region32
        $region31: #{dscnn_forward_pallas.1} parent=11 // pred_region
          _
        $region32: #{dscnn_forward_pallas.1} parent=11 // pred_fallthru
          _
        // Predicated region
        $region33: #{dscnn_forward_pallas.1} parent=11 // pred_check
          %p268 = pneg %p170
        $region34: #{dscnn_forward_pallas.1} parent=11 // pred_check_branch
          %270 = sbr.rel (%p268) target = $region36
        $region35: #{dscnn_forward_pallas.1} parent=11 // pred_region
          _
        $region36: #{dscnn_forward_pallas.1} parent=11 // pred_fallthru
          _
        // Predicated region
        $region37: #{dscnn_forward_pallas.1} parent=11 // pred_check
          %p271 = pneg %p191
        $region38: #{dscnn_forward_pallas.1} parent=11 // pred_check_branch
          %273 = sbr.rel (%p271) target = $region40
        $region39: #{dscnn_forward_pallas.1} parent=11 // pred_region
          _
        $region40: #{dscnn_forward_pallas.1} parent=11 // pred_fallthru
          _
        // Predicated region
        $region41: #{dscnn_forward_pallas.1} parent=11 // pred_check
          %p274 = pneg %p212
        $region42: #{dscnn_forward_pallas.1} parent=11 // pred_check_branch
          %276 = sbr.rel (%p274) target = $region44
        $region43: #{dscnn_forward_pallas.1} parent=11 // pred_region
          _
        $region44: #{dscnn_forward_pallas.1} parent=11 // pred_fallthru
          _
      $region12: #{dscnn_forward_pallas.1} parent=5 // pred_fallthru
        _
      %p277 = scmp.lt.s32.totalorder %s18, 2
      // Predicated region
      $region45: #{dscnn_forward_pallas.1} parent=5 // pred_check
        %p278 = pneg %p277
      $region46: #{dscnn_forward_pallas.1} parent=5 // pred_check_branch
        %280 = sbr.rel (%p278) target = $region48
      $region47: #{dscnn_forward_pallas.1} parent=5 // pred_region
        // Predicated region
        $region49: #{dscnn_forward_pallas.1} parent=47 // pred_check
          %p281 = pneg %p38
        $region50: #{dscnn_forward_pallas.1} parent=47 // pred_check_branch
          %283 = sbr.rel (%p281) target = $region52
        $region51: #{dscnn_forward_pallas.1} parent=47 // pred_region
          %p284 = scmp.lt.s32.totalorder %s18, 1
          %s285 = scalar_select %p284, %s18, 1
          %s286 = smul.addr %s285, 16
          %s287 = smul.addr %s286, 8
          %s288 = scalar_lea.vmem %s0, %s287
        $region52: #{dscnn_forward_pallas.1} parent=47 // pred_fallthru
          _
      $region48: #{dscnn_forward_pallas.1} parent=5 // pred_fallthru
        _
      %p289 = scmp.le.s32.totalorder 1, %s18
      %p290 = scmp.lt.s32.totalorder %s18, 3
      %p291 = pnand %p289, %p290
      %p292 = pneg %p291
      // Predicated region
      $region53: #{dscnn_forward_pallas.1} parent=5 // pred_check
        _
      $region54: #{dscnn_forward_pallas.1} parent=5 // pred_check_branch
        %294 = sbr.rel (%p291) target = $region56
      $region55: #{dscnn_forward_pallas.1} parent=5 // pred_region
        %s295 = ssub.s32 %s18, 1
        %p296 = scmp.lt.s32.totalorder %s23, 1
        %s297 = scalar_select %p296, %s23, 1
        %s298 = smul.addr %s297, 16
        %s299 = smul.addr %s298, 8
        %s300 = scalar_lea.vmem %s0, %s299
        %p301 = pneg %p44
        %p302 = pneg %p41
        %p303 = pneg %p65
        %p304 = pneg %p62
        %p305 = pneg %p86
        %p306 = pneg %p83
        %p307 = pneg %p107
        %p308 = pneg %p104
        %p309 = pneg %p128
        %p310 = pneg %p125
        %p311 = pneg %p149
        %p312 = pneg %p146
        %p313 = pneg %p170
        %p314 = pneg %p167
        %p315 = pneg %p191
        %p316 = pneg %p188
        %p317 = pneg %p212
        %p318 = pneg %p209
        %p319 = pneg %p238
        %p320 = pneg %p235
        %s321 = sand.u32 %s225, 1
        %s322 = scalar_lea.sflag [#allocation4], %s321
        %s323 = sand.u32 %s225, 1
        %s324 = scalar_lea.vmem [#allocation3], %s323
        %p325 = scmp.lt.s32.totalorder %s23, 1
        %s326 = scalar_select %p325, %s23, 1
        %s327 = smul.addr %s326, 16
        %s328 = smul.addr %s327, 8
        %s329 = scalar_lea.vmem %s0, %s328
        %vm330 = vcmask 523264
        %331 = vst.msk [vmem:[#allocation2] sm:$0xff] %vm330, 0.0
        %332 = vst.msk [vmem:[#allocation2 + $0x8] sm:$0xff] %vm330, 0.0
        %333 = vst.msk [vmem:[#allocation2 + $0x10] sm:$0xff] %vm330, 0.0
        %334 = vst.msk [vmem:[#allocation2 + $0x18] sm:$0xff] %vm330, 0.0
        %335 = vst.msk [vmem:[#allocation2 + $0x20] sm:$0xff] %vm330, 0.0
        %336 = vst.msk [vmem:[#allocation2 + $0x28] sm:$0xff] %vm330, 0.0
        %337 = vst.msk [vmem:[#allocation2 + $0x30] sm:$0xff] %vm330, 0.0
        %338 = vst.msk [vmem:[#allocation2 + $0x38] sm:$0xff] %vm330, 0.0
        %339 = vst.msk [vmem:[#allocation2 + $0x40] sm:$0xff] %vm330, 0.0
        %340 = vst.msk [vmem:[#allocation2 + $0x48] sm:$0xff] %vm330, 0.0
        %341 = vst.msk [vmem:[#allocation2 + $0x50] sm:$0xff] %vm330, 0.0
        %342 = vst.msk [vmem:[#allocation2 + $0x58] sm:$0xff] %vm330, 0.0
        %343 = vst.msk [vmem:[#allocation2 + $0x60] sm:$0xff] %vm330, 0.0
        %344 = vst.msk [vmem:[#allocation2 + $0x68] sm:$0xff] %vm330, 0.0
        %345 = vst.msk [vmem:[#allocation2 + $0x70] sm:$0xff] %vm330, 0.0
        %346 = vst.msk [vmem:[#allocation2 + $0x78] sm:$0xff] %vm330, 0.0
        %347 = vst.msk [vmem:[#allocation2 + $0x80] sm:$0xff] %vm330, 0.0
        %vm348 = vcmask 520192
        %349 = vst.msk [vmem:[#allocation2 + $0x88] sm:$0x1f] %vm348, 0.0
        %v350 = vld [vmem:[%s329] sm:$0xff]
        %v351 = vld [vmem:[%s329 + $0x8] sm:$0xff]
        %v352 = vld [vmem:[%s329 + $0x10] sm:$0xff]
        %v353 = vld [vmem:[%s329 + $0x18] sm:$0xff]
        %v354 = vld [vmem:[%s329 + $0x20] sm:$0xff]
        %v355 = vld [vmem:[%s329 + $0x28] sm:$0xff]
        %v356 = vld [vmem:[%s329 + $0x30] sm:$0xff]
        %v357 = vld [vmem:[%s329 + $0x38] sm:$0xff]
        %v358 = vld [vmem:[%s329 + $0x40] sm:$0xff]
        %v359 = vld [vmem:[%s329 + $0x48] sm:$0xff]
        %v360 = vld [vmem:[%s329 + $0x50] sm:$0xff]
        %v361 = vld [vmem:[%s329 + $0x58] sm:$0xff]
        %v362 = vld [vmem:[%s329 + $0x60] sm:$0xff]
        %v363 = vld [vmem:[%s329 + $0x68] sm:$0xff]
        %v364 = vld [vmem:[%s329 + $0x70] sm:$0xff]
        %v365 = vld [vmem:[%s329 + $0x78] sm:$0x1f]
        %v366 = vld [vmem:[%s1] sm:$0xff]
        %v367 = vld [vmem:[%s1 + $0x8] sm:$0xff]
        %v368 = vld [vmem:[%s1 + $0x10] sm:$0xff]
        %v369 = vld [vmem:[%s1 + $0x18] sm:$0xff]
        %v370 = vld [vmem:[%s1 + $0x20] sm:$0xff]
        %v371 = vld [vmem:[%s2] sm:$0x1]
        %v373 = vlaneseq
        %v374 = vshrl.u32 %v373, 7
        %v375 = vsub.s32 0, %v374
        %v376 = vrot.slane %v371, %v375
        %vm378 = vcmask 326656
        %v380 = vsel %vm378, %v350, 0
        %v383 = vsel %vm378, %v351, 0
        %v386 = vsel %vm378, %v352, 0
        %v389 = vsel %vm378, %v353, 0
        %v392 = vsel %vm378, %v354, 0
        %v395 = vsel %vm378, %v355, 0
        %v398 = vsel %vm378, %v356, 0
        %v401 = vsel %vm378, %v357, 0
        %v404 = vsel %vm378, %v358, 0
        %v407 = vsel %vm378, %v359, 0
        %v410 = vsel %vm378, %v360, 0
        %v413 = vsel %vm378, %v361, 0
        %v416 = vsel %vm378, %v362, 0
        %v419 = vsel %vm378, %v363, 0
        %v422 = vsel %vm378, %v364, 0
        %v425 = vsel %vm378, %v365, 0
        %427 = vmatprep.subr.mxu0 0.0
        %428 = vmatpush1.msra.mxu0 %v366
        %429 = vmatprep.subr.mxu0 0.0
        %430 = vmatpush1.msra.mxu0 %v367
        %431 = vmatprep.subr.mxu0 0.0
        %432 = vmatpush1.msra.mxu0 %v368
        %433 = vmatprep.subr.mxu0 0.0
        %434 = vmatpush1.msra.mxu0 %v369
        %435 = vmatprep.subr.mxu0 0.0
        %436 = vmatpush1.msra.mxu0 %v370
        %437 = vmatprep.subr.mxu0 0.0
        %438 = vmatpush1.msra.mxu0 0.0
        %439 = vmatprep.subr.mxu0 0.0
        %440 = vmatpush1.msra.mxu0 0.0
        %441 = vmatprep.subr.mxu0 0.0
        %442 = vmatpush1.msra.mxu0 0.0
        %443 = vmatprep.subr.mxu0 0.0
        %444 = vmatpush1.msra.mxu0 0.0
        %445 = vmatprep.subr.mxu0 0.0
        %446 = vmatpush1.msra.mxu0 0.0
        %447 = vmatprep.subr.mxu0 0.0
        %448 = vmatpush1.msra.mxu0 0.0
        %449 = vmatprep.subr.mxu0 0.0
        %450 = vmatpush1.msra.mxu0 0.0
        %451 = vmatprep.subr.mxu0 0.0
        %452 = vmatpush1.msra.mxu0 0.0
        %453 = vmatprep.subr.mxu0 0.0
        %454 = vmatpush1.msra.mxu0 0.0
        %455 = vmatprep.subr.mxu0 0.0
        %456 = vmatpush1.msra.mxu0 0.0
        %457 = vmatprep.subr.mxu0 0.0
        %458 = vmatpush1.msra.mxu0 0.0
        %459 = vmatprep.subr.mxu0 0.0
        %460 = vmatpush1.msra.mxu0 0.0
        %461 = vmatprep.subr.mxu0 0.0
        %462 = vmatpush1.msra.mxu0 0.0
        %463 = vmatprep.subr.mxu0 0.0
        %464 = vmatpush1.msra.mxu0 0.0
        %465 = vmatprep.subr.mxu0 0.0
        %466 = vmatpush1.msra.mxu0 0.0
        %467 = vmatprep.subr.mxu0 0.0
        %468 = vmatpush1.msra.mxu0 0.0
        %469 = vmatprep.subr.mxu0 0.0
        %470 = vmatpush1.msra.mxu0 0.0
        %471 = vmatprep.subr.mxu0 0.0
        %472 = vmatpush1.msra.mxu0 0.0
        %473 = vmatprep.subr.mxu0 0.0
        %474 = vmatpush1.msra.mxu0 0.0
        %475 = vmatprep.subr.mxu0 0.0
        %476 = vmatpush1.msra.mxu0 0.0
        %477 = vmatprep.subr.mxu0 0.0
        %478 = vmatpush1.msra.mxu0 0.0
        %479 = vmatprep.subr.mxu0 0.0
        %480 = vmatpush1.msra.mxu0 0.0
        %481 = vmatprep.subr.mxu0 0.0
        %482 = vmatpush1.msra.mxu0 0.0
        %483 = vmatprep.subr.mxu0 0.0
        %484 = vmatpush1.msra.mxu0 0.0
        %485 = vmatprep.subr.mxu0 0.0
        %486 = vmatpush1.msra.mxu0 0.0
        %487 = vmatprep.subr.mxu0 0.0
        %488 = vmatpush1.msra.mxu0 0.0
        %489 = vmatprep.subr.mxu0 0.0
        %490 = vmatpush1.msra.mxu0 0.0
        %491 = vmatprep.mubr.f32.mxu0 0.0
        %492 = vmatmul.mubr.f32.gmra.mrb[0].mxu0 %v380
        %v493 = vpop.f32.mrb[0].mxu0
        %v494 = vadd.f32 %v376, %v493
        %v495 = vpop.f32.mrb[0].mxu0
        %496 = vmatprep.mubr.f32.mxu0 0.0
        %497 = vmatmul.mubr.f32.gmra.mrb[0].mxu0 %v383
        %v498 = vpop.f32.mrb[0].mxu0
        %v499 = vadd.f32 %v376, %v498
        %v500 = vpop.f32.mrb[0].mxu0
        %501 = vmatprep.mubr.f32.mxu0 0.0
        %502 = vmatmul.mubr.f32.gmra.mrb[0].mxu0 %v386
        %v503 = vpop.f32.mrb[0].mxu0
        %v504 = vadd.f32 %v376, %v503
        %v505 = vpop.f32.mrb[0].mxu0
        %506 = vmatprep.mubr.f32.mxu0 0.0
        %507 = vmatmul.mubr.f32.gmra.mrb[0].mxu0 %v389
        %v508 = vpop.f32.mrb[0].mxu0
        %v509 = vadd.f32 %v376, %v508
        %v510 = vpop.f32.mrb[0].mxu0
        %511 = vmatprep.mubr.f32.mxu0 0.0
        %512 = vmatmul.mubr.f32.gmra.mrb[0].mxu0 %v392
        %v513 = vpop.f32.mrb[0].mxu0
        %v514 = vadd.f32 %v376, %v513
        %v515 = vpop.f32.mrb[0].mxu0
        %516 = vmatprep.mubr.f32.mxu0 0.0
        %517 = vmatmul.mubr.f32.gmra.mrb[0].mxu0 %v395
        %v518 = vpop.f32.mrb[0].mxu0
        %v519 = vadd.f32 %v376, %v518
        %v520 = vpop.f32.mrb[0].mxu0
        %521 = vmatprep.mubr.f32.mxu0 0.0
        %522 = vmatmul.mubr.f32.gmra.mrb[0].mxu0 %v398
        %v523 = vpop.f32.mrb[0].mxu0
        %v524 = vadd.f32 %v376, %v523
        %v525 = vpop.f32.mrb[0].mxu0
        %526 = vmatprep.mubr.f32.mxu0 0.0
        %527 = vmatmul.mubr.f32.gmra.mrb[0].mxu0 %v401
        %v528 = vpop.f32.mrb[0].mxu0
        %v529 = vadd.f32 %v376, %v528
        %v530 = vpop.f32.mrb[0].mxu0
        %531 = vmatprep.mubr.f32.mxu0 0.0
        %532 = vmatmul.mubr.f32.gmra.mrb[0].mxu0 %v404
        %v533 = vpop.f32.mrb[0].mxu0
        %v534 = vadd.f32 %v376, %v533
        %v535 = vpop.f32.mrb[0].mxu0
        %536 = vmatprep.mubr.f32.mxu0 0.0
        %537 = vmatmul.mubr.f32.gmra.mrb[0].mxu0 %v407
        %v538 = vpop.f32.mrb[0].mxu0
        %v539 = vadd.f32 %v376, %v538
        %v540 = vpop.f32.mrb[0].mxu0
        %541 = vmatprep.mubr.f32.mxu0 0.0
        %542 = vmatmul.mubr.f32.gmra.mrb[0].mxu0 %v410
        %v543 = vpop.f32.mrb[0].mxu0
        %v544 = vadd.f32 %v376, %v543
        %v545 = vpop.f32.mrb[0].mxu0
        %546 = vmatprep.mubr.f32.mxu0 0.0
        %547 = vmatmul.mubr.f32.gmra.mrb[0].mxu0 %v413
        %v548 = vpop.f32.mrb[0].mxu0
        %v549 = vadd.f32 %v376, %v548
        %v550 = vpop.f32.mrb[0].mxu0
        %551 = vmatprep.mubr.f32.mxu0 0.0
        %552 = vmatmul.mubr.f32.gmra.mrb[0].mxu0 %v416
        %v553 = vpop.f32.mrb[0].mxu0
        %v554 = vadd.f32 %v376, %v553
        %v555 = vpop.f32.mrb[0].mxu0
        %556 = vmatprep.mubr.f32.mxu0 0.0
        %557 = vmatmul.mubr.f32.gmra.mrb[0].mxu0 %v419
        %v558 = vpop.f32.mrb[0].mxu0
        %v559 = vadd.f32 %v376, %v558
        %v560 = vpop.f32.mrb[0].mxu0
        %561 = vmatprep.mubr.f32.mxu0 0.0
        %562 = vmatmul.mubr.f32.gmra.mrb[0].mxu0 %v422
        %v563 = vpop.f32.mrb[0].mxu0
        %v564 = vadd.f32 %v376, %v563
        %v565 = vpop.f32.mrb[0].mxu0
        %566 = vmatprep.mubr.f32.mxu0 0.0
        %567 = vmatmul.mubr.f32.gmra.mrb[0].mxu0 %v425
        %v568 = vpop.f32.mrb[0].mxu0
        %v569 = vadd.f32 %v376, %v568
        %v570 = vpop.f32.mrb[0].mxu0
        %571 = vdwg.mxu0
        %v572 = vmax.f32 %v494, 0.0
        %v573 = vmax.f32 %v499, 0.0
        %v574 = vmax.f32 %v504, 0.0
        %v575 = vmax.f32 %v509, 0.0
        %v576 = vmax.f32 %v514, 0.0
        %v577 = vmax.f32 %v519, 0.0
        %v578 = vmax.f32 %v524, 0.0
        %v579 = vmax.f32 %v529, 0.0
        %v580 = vmax.f32 %v534, 0.0
        %v581 = vmax.f32 %v539, 0.0
        %v582 = vmax.f32 %v544, 0.0
        %v583 = vmax.f32 %v549, 0.0
        %v584 = vmax.f32 %v554, 0.0
        %v585 = vmax.f32 %v559, 0.0
        %v586 = vmax.f32 %v564, 0.0
        %v587 = vmax.f32 %v569, 0.0
        %588 = vst.msk [vmem:[#allocation2 + $0x8] sm:$0xff] %vm330, %v572
        %589 = vst.msk [vmem:[#allocation2 + $0x10] sm:$0xff] %vm330, %v573
        %590 = vst.msk [vmem:[#allocation2 + $0x18] sm:$0xff] %vm330, %v574
        %591 = vst.msk [vmem:[#allocation2 + $0x20] sm:$0xff] %vm330, %v575
        %592 = vst.msk [vmem:[#allocation2 + $0x28] sm:$0xff] %vm330, %v576
        %593 = vst.msk [vmem:[#allocation2 + $0x30] sm:$0xff] %vm330, %v577
        %594 = vst.msk [vmem:[#allocation2 + $0x38] sm:$0xff] %vm330, %v578
        %595 = vst.msk [vmem:[#allocation2 + $0x40] sm:$0xff] %vm330, %v579
        %596 = vst.msk [vmem:[#allocation2 + $0x48] sm:$0xff] %vm330, %v580
        %597 = vst.msk [vmem:[#allocation2 + $0x50] sm:$0xff] %vm330, %v581
        %598 = vst.msk [vmem:[#allocation2 + $0x58] sm:$0xff] %vm330, %v582
        %599 = vst.msk [vmem:[#allocation2 + $0x60] sm:$0xff] %vm330, %v583
        %600 = vst.msk [vmem:[#allocation2 + $0x68] sm:$0xff] %vm330, %v584
        %601 = vst.msk [vmem:[#allocation2 + $0x70] sm:$0xff] %vm330, %v585
        %602 = vst.msk [vmem:[#allocation2 + $0x78] sm:$0xff] %vm330, %v586
        %603 = vst.msk [vmem:[#allocation2 + $0x80] sm:$0x1f] %vm348, %v587
        %v604 = vld [vmem:[#allocation2 + $0x2] sm:$0xff]
        %v605 = vld [vmem:[#allocation2 + $0xa] sm:$0xff]
        %v606 = vld [vmem:[#allocation2 + $0x12] sm:$0xff]
        %v607 = vld [vmem:[#allocation2 + $0x1a] sm:$0xff]
        %v608 = vld [vmem:[#allocation2 + $0x22] sm:$0xff]
        %v609 = vld [vmem:[#allocation2 + $0x2a] sm:$0xff]
        %v610 = vld [vmem:[#allocation2 + $0x32] sm:$0xff]
        %v611 = vld [vmem:[#allocation2 + $0x3a] sm:$0xff]
        %v612 = vld [vmem:[#allocation2 + $0x42] sm:$0xff]
        %v613 = vld [vmem:[#allocation2 + $0x4a] sm:$0xff]
        %v614 = vld [vmem:[#allocation2 + $0x52] sm:$0xff]
        %v615 = vld [vmem:[#allocation2 + $0x5a] sm:$0xff]
        %v616 = vld [vmem:[#allocation2 + $0x62] sm:$0xff]
        %v617 = vld [vmem:[#allocation2 + $0x6a] sm:$0xff]
        %v618 = vld [vmem:[#allocation2 + $0x72] sm:$0xff]
        %v619 = vld [vmem:[#allocation2 + $0x7a] sm:$0x1f]
        %v620 = vld [vmem:[%s3] sm:$0xff]
        %v621 = vld [vmem:[%s3 + $0x8] sm:$0xff]
        %v622 = vld [vmem:[%s3 + $0x10] sm:$0xff]
        %v623 = vld [vmem:[%s3 + $0x18] sm:$0xff]
        %v624 = vld [vmem:[%s3 + $0x20] sm:$0xff]
        %v625 = vld [vmem:[%s3 + $0x28] sm:$0xff]
        %v626 = vld [vmem:[%s3 + $0x30] sm:$0xff]
        %v627 = vld [vmem:[%s3 + $0x38] sm:$0xff]
        %v628 = vld [vmem:[%s3 + $0x40] sm:$0xff]
        %v629 = vld [vmem:[%s3 + $0x48] sm:$0xff]
        %v630 = vld [vmem:[%s3 + $0x50] sm:$0xff]
        %v631 = vld [vmem:[%s3 + $0x58] sm:$0xff]
        %v632 = vld [vmem:[%s3 + $0x60] sm:$0xff]
        %v633 = vld [vmem:[%s3 + $0x68] sm:$0xff]
        %v634 = vld [vmem:[%s3 + $0x70] sm:$0xff]
        %v635 = vld [vmem:[%s3 + $0x78] sm:$0x1f]
        %v636 = vmul.f32 %v604, %v620
        %v637 = vmul.f32 %v605, %v621
        %v638 = vmul.f32 %v606, %v622
        %v639 = vmul.f32 %v607, %v623
        %v640 = vmul.f32 %v608, %v624
        %v641 = vmul.f32 %v609, %v625
        %v642 = vmul.f32 %v610, %v626
        %v643 = vmul.f32 %v611, %v627
        %v644 = vmul.f32 %v612, %v628
        %v645 = vmul.f32 %v613, %v629
        %v646 = vmul.f32 %v614, %v630
        %v647 = vmul.f32 %v615, %v631
        %v648 = vmul.f32 %v616, %v632
        %v649 = vmul.f32 %v617, %v633
        %v650 = vmul.f32 %v618, %v634
        %v651 = vmul.f32 %v619, %v635
        %v652 = vld [vmem:[#allocation2 + $0x3] sm:$0xff]
        %v653 = vld [vmem:[#allocation2 + $0xb] sm:$0xff]
        %v654 = vld [vmem:[#allocation2 + $0x13] sm:$0xff]
        %v655 = vld [vmem:[#allocation2 + $0x1b] sm:$0xff]
        %v656 = vld [vmem:[#allocation2 + $0x23] sm:$0xff]
        %v657 = vld [vmem:[#allocation2 + $0x2b] sm:$0xff]
        %v658 = vld [vmem:[#allocation2 + $0x33] sm:$0xff]
        %v659 = vld [vmem:[#allocation2 + $0x3b] sm:$0xff]
        %v660 = vld [vmem:[#allocation2 + $0x43] sm:$0xff]
        %v661 = vld [vmem:[#allocation2 + $0x4b] sm:$0xff]
        %v662 = vld [vmem:[#allocation2 + $0x53] sm:$0xff]
        %v663 = vld [vmem:[#allocation2 + $0x5b] sm:$0xff]
        %v664 = vld [vmem:[#allocation2 + $0x63] sm:$0xff]
        %v665 = vld [vmem:[#allocation2 + $0x6b] sm:$0xff]
        %v666 = vld [vmem:[#allocation2 + $0x73] sm:$0xff]
        %v667 = vld [vmem:[#allocation2 + $0x7b] sm:$0x1f]
        %s668 = scalar_lea.vmem %s3, 128
        %v669 = vld [vmem:[%s668] sm:$0xff]
        %v670 = vld [vmem:[%s668 + $0x8] sm:$0xff]
        %v671 = vld [vmem:[%s668 + $0x10] sm:$0xff]
        %v672 = vld [vmem:[%s668 + $0x18] sm:$0xff]
        %v673 = vld [vmem:[%s668 + $0x20] sm:$0xff]
        %v674 = vld [vmem:[%s668 + $0x28] sm:$0xff]
        %v675 = vld [vmem:[%s668 + $0x30] sm:$0xff]
        %v676 = vld [vmem:[%s668 + $0x38] sm:$0xff]
        %v677 = vld [vmem:[%s668 + $0x40] sm:$0xff]
        %v678 = vld [vmem:[%s668 + $0x48] sm:$0xff]
        %v679 = vld [vmem:[%s668 + $0x50] sm:$0xff]
        %v680 = vld [vmem:[%s668 + $0x58] sm:$0xff]
        %v681 = vld [vmem:[%s668 + $0x60] sm:$0xff]
        %v682 = vld [vmem:[%s668 + $0x68] sm:$0xff]
        %v683 = vld [vmem:[%s668 + $0x70] sm:$0xff]
        %v684 = vld [vmem:[%s668 + $0x78] sm:$0x1f]
        %v685 = vmul.f32 %v652, %v669
        %v686 = vmul.f32 %v653, %v670
        %v687 = vmul.f32 %v654, %v671
        %v688 = vmul.f32 %v655, %v672
        %v689 = vmul.f32 %v656, %v673
        %v690 = vmul.f32 %v657, %v674
        %v691 = vmul.f32 %v658, %v675
        %v692 = vmul.f32 %v659, %v676
        %v693 = vmul.f32 %v660, %v677
        %v694 = vmul.f32 %v661, %v678
        %v695 = vmul.f32 %v662, %v679
        %v696 = vmul.f32 %v663, %v680
        %v697 = vmul.f32 %v664, %v681
        %v698 = vmul.f32 %v665, %v682
        %v699 = vmul.f32 %v666, %v683
        %v700 = vmul.f32 %v667, %v684
        %v701 = vadd.f32 %v636, %v685
        %v702 = vadd.f32 %v637, %v686
        %v703 = vadd.f32 %v638, %v687
        %v704 = vadd.f32 %v639, %v688
        %v705 = vadd.f32 %v640, %v689
        %v706 = vadd.f32 %v641, %v690
        %v707 = vadd.f32 %v642, %v691
        %v708 = vadd.f32 %v643, %v692
        %v709 = vadd.f32 %v644, %v693
        %v710 = vadd.f32 %v645, %v694
        %v711 = vadd.f32 %v646, %v695
        %v712 = vadd.f32 %v647, %v696
        %v713 = vadd.f32 %v648, %v697
        %v714 = vadd.f32 %v649, %v698
        %v715 = vadd.f32 %v650, %v699
        %v716 = vadd.f32 %v651, %v700
        %v717 = vld [vmem:[#allocation2 + $0x4] sm:$0xff]
        %v718 = vld [vmem:[#allocation2 + $0xc] sm:$0xff]
        %v719 = vld [vmem:[#allocation2 + $0x14] sm:$0xff]
        %v720 = vld [vmem:[#allocation2 + $0x1c] sm:$0xff]
        %v721 = vld [vmem:[#allocation2 + $0x24] sm:$0xff]
        %v722 = vld [vmem:[#allocation2 + $0x2c] sm:$0xff]
        %v723 = vld [vmem:[#allocation2 + $0x34] sm:$0xff]
        %v724 = vld [vmem:[#allocation2 + $0x3c] sm:$0xff]
        %v725 = vld [vmem:[#allocation2 + $0x44] sm:$0xff]
        %v726 = vld [vmem:[#allocation2 + $0x4c] sm:$0xff]
        %v727 = vld [vmem:[#allocation2 + $0x54] sm:$0xff]
        %v728 = vld [vmem:[#allocation2 + $0x5c] sm:$0xff]
        %v729 = vld [vmem:[#allocation2 + $0x64] sm:$0xff]
        %v730 = vld [vmem:[#allocation2 + $0x6c] sm:$0xff]
        %v731 = vld [vmem:[#allocation2 + $0x74] sm:$0xff]
        %v732 = vld [vmem:[#allocation2 + $0x7c] sm:$0x1f]
        %s733 = scalar_lea.vmem %s3, 256
        %v734 = vld [vmem:[%s733] sm:$0xff]
        %v735 = vld [vmem:[%s733 + $0x8] sm:$0xff]
        %v736 = vld [vmem:[%s733 + $0x10] sm:$0xff]
        %v737 = vld [vmem:[%s733 + $0x18] sm:$0xff]
        %v738 = vld [vmem:[%s733 + $0x20] sm:$0xff]
        %v739 = vld [vmem:[%s733 + $0x28] sm:$0xff]
        %v740 = vld [vmem:[%s733 + $0x30] sm:$0xff]
        %v741 = vld [vmem:[%s733 + $0x38] sm:$0xff]
        %v742 = vld [vmem:[%s733 + $0x40] sm:$0xff]
        %v743 = vld [vmem:[%s733 + $0x48] sm:$0xff]
        %v744 = vld [vmem:[%s733 + $0x50] sm:$0xff]
        %v745 = vld [vmem:[%s733 + $0x58] sm:$0xff]
        %v746 = vld [vmem:[%s733 + $0x60] sm:$0xff]
        %v747 = vld [vmem:[%s733 + $0x68] sm:$0xff]
        %v748 = vld [vmem:[%s733 + $0x70] sm:$0xff]
        %v749 = vld [vmem:[%s733 + $0x78] sm:$0x1f]
        %v750 = vmul.f32 %v717, %v734
        %v751 = vmul.f32 %v718, %v735
        %v752 = vmul.f32 %v719, %v736
        %v753 = vmul.f32 %v720, %v737
        %v754 = vmul.f32 %v721, %v738
        %v755 = vmul.f32 %v722, %v739
        %v756 = vmul.f32 %v723, %v740
        %v757 = vmul.f32 %v724, %v741
        %v758 = vmul.f32 %v725, %v742
        %v759 = vmul.f32 %v726, %v743
        %v760 = vmul.f32 %v727, %v744
        %v761 = vmul.f32 %v728, %v745
        %v762 = vmul.f32 %v729, %v746
        %v763 = vmul.f32 %v730, %v747
        %v764 = vmul.f32 %v731, %v748
        %v765 = vmul.f32 %v732, %v749
        %v766 = vadd.f32 %v701, %v750
        %v767 = vadd.f32 %v702, %v751
        %v768 = vadd.f32 %v703, %v752
        %v769 = vadd.f32 %v704, %v753
        %v770 = vadd.f32 %v705, %v754
        %v771 = vadd.f32 %v706, %v755
        %v772 = vadd.f32 %v707, %v756
        %v773 = vadd.f32 %v708, %v757
        %v774 = vadd.f32 %v709, %v758
        %v775 = vadd.f32 %v710, %v759
        %v776 = vadd.f32 %v711, %v760
        %v777 = vadd.f32 %v712, %v761
        %v778 = vadd.f32 %v713, %v762
        %v779 = vadd.f32 %v714, %v763
        %v780 = vadd.f32 %v715, %v764
        %v781 = vadd.f32 %v716, %v765
        %v782 = vld [vmem:[#allocation2 + $0x7] sm:$0xff]
        %v783 = vld [vmem:[#allocation2 + $0xf] sm:$0xff]
        %v784 = vld [vmem:[#allocation2 + $0x17] sm:$0xff]
        %v785 = vld [vmem:[#allocation2 + $0x1f] sm:$0xff]
        %v786 = vld [vmem:[#allocation2 + $0x27] sm:$0xff]
        %v787 = vld [vmem:[#allocation2 + $0x2f] sm:$0xff]
        %v788 = vld [vmem:[#allocation2 + $0x37] sm:$0xff]
        %v789 = vld [vmem:[#allocation2 + $0x3f] sm:$0xff]
        %v790 = vld [vmem:[#allocation2 + $0x47] sm:$0xff]
        %v791 = vld [vmem:[#allocation2 + $0x4f] sm:$0xff]
        %v792 = vld [vmem:[#allocation2 + $0x57] sm:$0xff]
        %v793 = vld [vmem:[#allocation2 + $0x5f] sm:$0xff]
        %v794 = vld [vmem:[#allocation2 + $0x67] sm:$0xff]
        %v795 = vld [vmem:[#allocation2 + $0x6f] sm:$0xff]
        %v796 = vld [vmem:[#allocation2 + $0x77] sm:$0xff]
        %v797 = vld [vmem:[#allocation2 + $0x7f] sm:$0x1f]
        %s798 = scalar_lea.vmem %s3, 384
        %v799 = vld [vmem:[%s798] sm:$0xff]
        %v800 = vld [vmem:[%s798 + $0x8] sm:$0xff]
        %v801 = vld [vmem:[%s798 + $0x10] sm:$0xff]
        %v802 = vld [vmem:[%s798 + $0x18] sm:$0xff]
        %v803 = vld [vmem:[%s798 + $0x20] sm:$0xff]
        %v804 = vld [vmem:[%s798 + $0x28] sm:$0xff]
        %v805 = vld [vmem:[%s798 + $0x30] sm:$0xff]
        %v806 = vld [vmem:[%s798 + $0x38] sm:$0xff]
        %v807 = vld [vmem:[%s798 + $0x40] sm:$0xff]
        %v808 = vld [vmem:[%s798 + $0x48] sm:$0xff]
        %v809 = vld [vmem:[%s798 + $0x50] sm:$0xff]
        %v810 = vld [vmem:[%s798 + $0x58] sm:$0xff]
        %v811 = vld [vmem:[%s798 + $0x60] sm:$0xff]
        %v812 = vld [vmem:[%s798 + $0x68] sm:$0xff]
        %v813 = vld [vmem:[%s798 + $0x70] sm:$0xff]
        %v814 = vld [vmem:[%s798 + $0x78] sm:$0x1f]
        %v815 = vmul.f32 %v782, %v799
        %v816 = vmul.f32 %v783, %v800
        %v817 = vmul.f32 %v784, %v801
        %v818 = vmul.f32 %v785, %v802
        %v819 = vmul.f32 %v786, %v803
        %v820 = vmul.f32 %v787, %v804
        %v821 = vmul.f32 %v788, %v805
        %v822 = vmul.f32 %v789, %v806
        %v823 = vmul.f32 %v790, %v807
        %v824 = vmul.f32 %v791, %v808
        %v825 = vmul.f32 %v792, %v809
        %v826 = vmul.f32 %v793, %v810
        %v827 = vmul.f32 %v794, %v811
        %v828 = vmul.f32 %v795, %v812
        %v829 = vmul.f32 %v796, %v813
        %v830 = vmul.f32 %v797, %v814
        %v831 = vadd.f32 %v766, %v815
        %v832 = vadd.f32 %v767, %v816
        %v833 = vadd.f32 %v768, %v817
        %v834 = vadd.f32 %v769, %v818
        %v835 = vadd.f32 %v770, %v819
        %v836 = vadd.f32 %v771, %v820
        %v837 = vadd.f32 %v772, %v821
        %v838 = vadd.f32 %v773, %v822
        %v839 = vadd.f32 %v774, %v823
        %v840 = vadd.f32 %v775, %v824
        %v841 = vadd.f32 %v776, %v825
        %v842 = vadd.f32 %v777, %v826
        %v843 = vadd.f32 %v778, %v827
        %v844 = vadd.f32 %v779, %v828
        %v845 = vadd.f32 %v780, %v829
        %v846 = vadd.f32 %v781, %v830
        %v847 = vld [vmem:[#allocation2 + $0x8] sm:$0xff]
        %v848 = vld [vmem:[#allocation2 + $0x10] sm:$0xff]
        %v849 = vld [vmem:[#allocation2 + $0x18] sm:$0xff]
        %v850 = vld [vmem:[#allocation2 + $0x20] sm:$0xff]
        %v851 = vld [vmem:[#allocation2 + $0x28] sm:$0xff]
        %v852 = vld [vmem:[#allocation2 + $0x30] sm:$0xff]
        %v853 = vld [vmem:[#allocation2 + $0x38] sm:$0xff]
        %v854 = vld [vmem:[#allocation2 + $0x40] sm:$0xff]
        %v855 = vld [vmem:[#allocation2 + $0x48] sm:$0xff]
        %v856 = vld [vmem:[#allocation2 + $0x50] sm:$0xff]
        %v857 = vld [vmem:[#allocation2 + $0x58] sm:$0xff]
        %v858 = vld [vmem:[#allocation2 + $0x60] sm:$0xff]
        %v859 = vld [vmem:[#allocation2 + $0x68] sm:$0xff]
        %v860 = vld [vmem:[#allocation2 + $0x70] sm:$0xff]
        %v861 = vld [vmem:[#allocation2 + $0x78] sm:$0xff]
        %v862 = vld [vmem:[#allocation2 + $0x80] sm:$0x1f]
        %s863 = scalar_lea.vmem %s3, 512
        %v864 = vld [vmem:[%s863] sm:$0xff]
        %v865 = vld [vmem:[%s863 + $0x8] sm:$0xff]
        %v866 = vld [vmem:[%s863 + $0x10] sm:$0xff]
        %v867 = vld [vmem:[%s863 + $0x18] sm:$0xff]
        %v868 = vld [vmem:[%s863 + $0x20] sm:$0xff]
        %v869 = vld [vmem:[%s863 + $0x28] sm:$0xff]
        %v870 = vld [vmem:[%s863 + $0x30] sm:$0xff]
        %v871 = vld [vmem:[%s863 + $0x38] sm:$0xff]
        %v872 = vld [vmem:[%s863 + $0x40] sm:$0xff]
        %v873 = vld [vmem:[%s863 + $0x48] sm:$0xff]
        %v874 = vld [vmem:[%s863 + $0x50] sm:$0xff]
        %v875 = vld [vmem:[%s863 + $0x58] sm:$0xff]
        %v876 = vld [vmem:[%s863 + $0x60] sm:$0xff]
        %v877 = vld [vmem:[%s863 + $0x68] sm:$0xff]
        %v878 = vld [vmem:[%s863 + $0x70] sm:$0xff]
        %v879 = vld [vmem:[%s863 + $0x78] sm:$0x1f]
        %v880 = vmul.f32 %v847, %v864
        %v881 = vmul.f32 %v848, %v865
        %v882 = vmul.f32 %v849, %v866
        %v883 = vmul.f32 %v850, %v867
        %v884 = vmul.f32 %v851, %v868
        %v885 = vmul.f32 %v852, %v869
        %v886 = vmul.f32 %v853, %v870
        %v887 = vmul.f32 %v854, %v871
        %v888 = vmul.f32 %v855, %v872
        %v889 = vmul.f32 %v856, %v873
        %v890 = vmul.f32 %v857, %v874
        %v891 = vmul.f32 %v858, %v875
        %v892 = vmul.f32 %v859, %v876
        %v893 = vmul.f32 %v860, %v877
        %v894 = vmul.f32 %v861, %v878
        %v895 = vmul.f32 %v862, %v879
        %v896 = vadd.f32 %v831, %v880
        %v897 = vadd.f32 %v832, %v881
        %v898 = vadd.f32 %v833, %v882
        %v899 = vadd.f32 %v834, %v883
        %v900 = vadd.f32 %v835, %v884
        %v901 = vadd.f32 %v836, %v885
        %v902 = vadd.f32 %v837, %v886
        %v903 = vadd.f32 %v838, %v887
        %v904 = vadd.f32 %v839, %v888
        %v905 = vadd.f32 %v840, %v889
        %v906 = vadd.f32 %v841, %v890
        %v907 = vadd.f32 %v842, %v891
        %v908 = vadd.f32 %v843, %v892
        %v909 = vadd.f32 %v844, %v893
        %v910 = vadd.f32 %v845, %v894
        %v911 = vadd.f32 %v846, %v895
        %v912 = vld [vmem:[#allocation2 + $0x9] sm:$0xff]
        %v913 = vld [vmem:[#allocation2 + $0x11] sm:$0xff]
        %v914 = vld [vmem:[#allocation2 + $0x19] sm:$0xff]
        %v915 = vld [vmem:[#allocation2 + $0x21] sm:$0xff]
        %v916 = vld [vmem:[#allocation2 + $0x29] sm:$0xff]
        %v917 = vld [vmem:[#allocation2 + $0x31] sm:$0xff]
        %v918 = vld [vmem:[#allocation2 + $0x39] sm:$0xff]
        %v919 = vld [vmem:[#allocation2 + $0x41] sm:$0xff]
        %v920 = vld [vmem:[#allocation2 + $0x49] sm:$0xff]
        %v921 = vld [vmem:[#allocation2 + $0x51] sm:$0xff]
        %v922 = vld [vmem:[#allocation2 + $0x59] sm:$0xff]
        %v923 = vld [vmem:[#allocation2 + $0x61] sm:$0xff]
        %v924 = vld [vmem:[#allocation2 + $0x69] sm:$0xff]
        %v925 = vld [vmem:[#allocation2 + $0x71] sm:$0xff]
        %v926 = vld [vmem:[#allocation2 + $0x79] sm:$0xff]
        %v927 = vld [vmem:[#allocation2 + $0x81] sm:$0x1f]
        %s928 = scalar_lea.vmem %s3, 640
        %v929 = vld [vmem:[%s928] sm:$0xff]
        %v930 = vld [vmem:[%s928 + $0x8] sm:$0xff]
        %v931 = vld [vmem:[%s928 + $0x10] sm:$0xff]
        %v932 = vld [vmem:[%s928 + $0x18] sm:$0xff]
        %v933 = vld [vmem:[%s928 + $0x20] sm:$0xff]
        %v934 = vld [vmem:[%s928 + $0x28] sm:$0xff]
        %v935 = vld [vmem:[%s928 + $0x30] sm:$0xff]
        %v936 = vld [vmem:[%s928 + $0x38] sm:$0xff]
        %v937 = vld [vmem:[%s928 + $0x40] sm:$0xff]
        %v938 = vld [vmem:[%s928 + $0x48] sm:$0xff]
        %v939 = vld [vmem:[%s928 + $0x50] sm:$0xff]
        %v940 = vld [vmem:[%s928 + $0x58] sm:$0xff]
        %v941 = vld [vmem:[%s928 + $0x60] sm:$0xff]
        %v942 = vld [vmem:[%s928 + $0x68] sm:$0xff]
        %v943 = vld [vmem:[%s928 + $0x70] sm:$0xff]
        %v944 = vld [vmem:[%s928 + $0x78] sm:$0x1f]
        %v945 = vmul.f32 %v912, %v929
        %v946 = vmul.f32 %v913, %v930
        %v947 = vmul.f32 %v914, %v931
        %v948 = vmul.f32 %v915, %v932
        %v949 = vmul.f32 %v916, %v933
        %v950 = vmul.f32 %v917, %v934
        %v951 = vmul.f32 %v918, %v935
        %v952 = vmul.f32 %v919, %v936
        %v953 = vmul.f32 %v920, %v937
        %v954 = vmul.f32 %v921, %v938
        %v955 = vmul.f32 %v922, %v939
        %v956 = vmul.f32 %v923, %v940
        %v957 = vmul.f32 %v924, %v941
        %v958 = vmul.f32 %v925, %v942
        %v959 = vmul.f32 %v926, %v943
        %v960 = vmul.f32 %v927, %v944
        %v961 = vadd.f32 %v896, %v945
        %v962 = vadd.f32 %v897, %v946
        %v963 = vadd.f32 %v898, %v947
        %v964 = vadd.f32 %v899, %v948
        %v965 = vadd.f32 %v900, %v949
        %v966 = vadd.f32 %v901, %v950
        %v967 = vadd.f32 %v902, %v951
        %v968 = vadd.f32 %v903, %v952
        %v969 = vadd.f32 %v904, %v953
        %v970 = vadd.f32 %v905, %v954
        %v971 = vadd.f32 %v906, %v955
        %v972 = vadd.f32 %v907, %v956
        %v973 = vadd.f32 %v908, %v957
        %v974 = vadd.f32 %v909, %v958
        %v975 = vadd.f32 %v910, %v959
        %v976 = vadd.f32 %v911, %v960
        %v977 = vld [vmem:[#allocation2 + $0x7c] sm:$0xff]
        %v978 = vld [vmem:[#allocation2 + $0x84] sm:$0x1f]
        %s979 = scalar_lea.vmem %s3, 768
        %v980 = vld [vmem:[%s979] sm:$0xff]
        %v981 = vld [vmem:[%s979 + $0x8] sm:$0xff]
        %v982 = vld [vmem:[%s979 + $0x10] sm:$0xff]
        %v983 = vld [vmem:[%s979 + $0x18] sm:$0xff]
        %v984 = vld [vmem:[%s979 + $0x20] sm:$0xff]
        %v985 = vld [vmem:[%s979 + $0x28] sm:$0xff]
        %v986 = vld [vmem:[%s979 + $0x30] sm:$0xff]
        %v987 = vld [vmem:[%s979 + $0x38] sm:$0xff]
        %v988 = vld [vmem:[%s979 + $0x40] sm:$0xff]
        %v989 = vld [vmem:[%s979 + $0x48] sm:$0xff]
        %v990 = vld [vmem:[%s979 + $0x50] sm:$0xff]
        %v991 = vld [vmem:[%s979 + $0x58] sm:$0xff]
        %v992 = vld [vmem:[%s979 + $0x60] sm:$0xff]
        %v993 = vld [vmem:[%s979 + $0x68] sm:$0xff]
        %v994 = vld [vmem:[%s979 + $0x70] sm:$0xff]
        %v995 = vld [vmem:[%s979 + $0x78] sm:$0x1f]
        %v996 = vmul.f32 %v718, %v980
        %v997 = vmul.f32 %v719, %v981
        %v998 = vmul.f32 %v720, %v982
        %v999 = vmul.f32 %v721, %v983
        %v1000 = vmul.f32 %v722, %v984
        %v1001 = vmul.f32 %v723, %v985
        %v1002 = vmul.f32 %v724, %v986
        %v1003 = vmul.f32 %v725, %v987
        %v1004 = vmul.f32 %v726, %v988
        %v1005 = vmul.f32 %v727, %v989
        %v1006 = vmul.f32 %v728, %v990
        %v1007 = vmul.f32 %v729, %v991
        %v1008 = vmul.f32 %v730, %v992
        %v1009 = vmul.f32 %v731, %v993
        %v1010 = vmul.f32 %v977, %v994
        %v1011 = vmul.f32 %v978, %v995
        %v1012 = vadd.f32 %v961, %v996
        %v1013 = vadd.f32 %v962, %v997
        %v1014 = vadd.f32 %v963, %v998
        %v1015 = vadd.f32 %v964, %v999
        %v1016 = vadd.f32 %v965, %v1000
        %v1017 = vadd.f32 %v966, %v1001
        %v1018 = vadd.f32 %v967, %v1002
        %v1019 = vadd.f32 %v968, %v1003
        %v1020 = vadd.f32 %v969, %v1004
        %v1021 = vadd.f32 %v970, %v1005
        %v1022 = vadd.f32 %v971, %v1006
        %v1023 = vadd.f32 %v972, %v1007
        %v1024 = vadd.f32 %v973, %v1008
        %v1025 = vadd.f32 %v974, %v1009
        %v1026 = vadd.f32 %v975, %v1010
        %v1027 = vadd.f32 %v976, %v1011
        %v1028 = vld [vmem:[#allocation2 + $0xd] sm:$0xff]
        %v1029 = vld [vmem:[#allocation2 + $0x15] sm:$0xff]
        %v1030 = vld [vmem:[#allocation2 + $0x1d] sm:$0xff]
        %v1031 = vld [vmem:[#allocation2 + $0x25] sm:$0xff]
        %v1032 = vld [vmem:[#allocation2 + $0x2d] sm:$0xff]
        %v1033 = vld [vmem:[#allocation2 + $0x35] sm:$0xff]
        %v1034 = vld [vmem:[#allocation2 + $0x3d] sm:$0xff]
        %v1035 = vld [vmem:[#allocation2 + $0x45] sm:$0xff]
        %v1036 = vld [vmem:[#allocation2 + $0x4d] sm:$0xff]
        %v1037 = vld [vmem:[#allocation2 + $0x55] sm:$0xff]
        %v1038 = vld [vmem:[#allocation2 + $0x5d] sm:$0xff]
        %v1039 = vld [vmem:[#allocation2 + $0x65] sm:$0xff]
        %v1040 = vld [vmem:[#allocation2 + $0x6d] sm:$0xff]
        %v1041 = vld [vmem:[#allocation2 + $0x75] sm:$0xff]
        %v1042 = vld [vmem:[#allocation2 + $0x7d] sm:$0xff]
        %v1043 = vld [vmem:[#allocation2 + $0x85] sm:$0x1f]
        %s1044 = scalar_lea.vmem %s3, 896
        %v1045 = vld [vmem:[%s1044] sm:$0xff]
        %v1046 = vld [vmem:[%s1044 + $0x8] sm:$0xff]
        %v1047 = vld [vmem:[%s1044 + $0x10] sm:$0xff]
        %v1048 = vld [vmem:[%s1044 + $0x18] sm:$0xff]
        %v1049 = vld [vmem:[%s1044 + $0x20] sm:$0xff]
        %v1050 = vld [vmem:[%s1044 + $0x28] sm:$0xff]
        %v1051 = vld [vmem:[%s1044 + $0x30] sm:$0xff]
        %v1052 = vld [vmem:[%s1044 + $0x38] sm:$0xff]
        %v1053 = vld [vmem:[%s1044 + $0x40] sm:$0xff]
        %v1054 = vld [vmem:[%s1044 + $0x48] sm:$0xff]
        %v1055 = vld [vmem:[%s1044 + $0x50] sm:$0xff]
        %v1056 = vld [vmem:[%s1044 + $0x58] sm:$0xff]
        %v1057 = vld [vmem:[%s1044 + $0x60] sm:$0xff]
        %v1058 = vld [vmem:[%s1044 + $0x68] sm:$0xff]
        %v1059 = vld [vmem:[%s1044 + $0x70] sm:$0xff]
        %v1060 = vld [vmem:[%s1044 + $0x78] sm:$0x1f]
        %v1061 = vmul.f32 %v1028, %v1045
        %v1062 = vmul.f32 %v1029, %v1046
        %v1063 = vmul.f32 %v1030, %v1047
        %v1064 = vmul.f32 %v1031, %v1048
        %v1065 = vmul.f32 %v1032, %v1049
        %v1066 = vmul.f32 %v1033, %v1050
        %v1067 = vmul.f32 %v1034, %v1051
        %v1068 = vmul.f32 %v1035, %v1052
        %v1069 = vmul.f32 %v1036, %v1053
        %v1070 = vmul.f32 %v1037, %v1054
        %v1071 = vmul.f32 %v1038, %v1055
        %v1072 = vmul.f32 %v1039, %v1056
        %v1073 = vmul.f32 %v1040, %v1057
        %v1074 = vmul.f32 %v1041, %v1058
        %v1075 = vmul.f32 %v1042, %v1059
        %v1076 = vmul.f32 %v1043, %v1060
        %v1077 = vadd.f32 %v1012, %v1061
        %v1078 = vadd.f32 %v1013, %v1062
        %v1079 = vadd.f32 %v1014, %v1063
        %v1080 = vadd.f32 %v1015, %v1064
        %v1081 = vadd.f32 %v1016, %v1065
        %v1082 = vadd.f32 %v1017, %v1066
        %v1083 = vadd.f32 %v1018, %v1067
        %v1084 = vadd.f32 %v1019, %v1068
        %v1085 = vadd.f32 %v1020, %v1069
        %v1086 = vadd.f32 %v1021, %v1070
        %v1087 = vadd.f32 %v1022, %v1071
        %v1088 = vadd.f32 %v1023, %v1072
        %v1089 = vadd.f32 %v1024, %v1073
        %v1090 = vadd.f32 %v1025, %v1074
        %v1091 = vadd.f32 %v1026, %v1075
        %v1092 = vadd.f32 %v1027, %v1076
        %v1093 = vld [vmem:[#allocation2 + $0xe] sm:$0xff]
        %v1094 = vld [vmem:[#allocation2 + $0x16] sm:$0xff]
        %v1095 = vld [vmem:[#allocation2 + $0x1e] sm:$0xff]
        %v1096 = vld [vmem:[#allocation2 + $0x26] sm:$0xff]
        %v1097 = vld [vmem:[#allocation2 + $0x2e] sm:$0xff]
        %v1098 = vld [vmem:[#allocation2 + $0x36] sm:$0xff]
        %v1099 = vld [vmem:[#allocation2 + $0x3e] sm:$0xff]
        %v1100 = vld [vmem:[#allocation2 + $0x46] sm:$0xff]
        %v1101 = vld [vmem:[#allocation2 + $0x4e] sm:$0xff]
        %v1102 = vld [vmem:[#allocation2 + $0x56] sm:$0xff]
        %v1103 = vld [vmem:[#allocation2 + $0x5e] sm:$0xff]
        %v1104 = vld [vmem:[#allocation2 + $0x66] sm:$0xff]
        %v1105 = vld [vmem:[#allocation2 + $0x6e] sm:$0xff]
        %v1106 = vld [vmem:[#allocation2 + $0x76] sm:$0xff]
        %v1107 = vld [vmem:[#allocation2 + $0x7e] sm:$0xff]
        %v1108 = vld [vmem:[#allocation2 + $0x86] sm:$0x1f]
        %s1109 = scalar_lea.vmem %s3, 1024
        %v1110 = vld [vmem:[%s1109] sm:$0xff]
        %v1111 = vld [vmem:[%s1109 + $0x8] sm:$0xff]
        %v1112 = vld [vmem:[%s1109 + $0x10] sm:$0xff]
        %v1113 = vld [vmem:[%s1109 + $0x18] sm:$0xff]
        %v1114 = vld [vmem:[%s1109 + $0x20] sm:$0xff]
        %v1115 = vld [vmem:[%s1109 + $0x28] sm:$0xff]
        %v1116 = vld [vmem:[%s1109 + $0x30] sm:$0xff]
        %v1117 = vld [vmem:[%s1109 + $0x38] sm:$0xff]
        %v1118 = vld [vmem:[%s1109 + $0x40] sm:$0xff]
        %v1119 = vld [vmem:[%s1109 + $0x48] sm:$0xff]
        %v1120 = vld [vmem:[%s1109 + $0x50] sm:$0xff]
        %v1121 = vld [vmem:[%s1109 + $0x58] sm:$0xff]
        %v1122 = vld [vmem:[%s1109 + $0x60] sm:$0xff]
        %v1123 = vld [vmem:[%s1109 + $0x68] sm:$0xff]
        %v1124 = vld [vmem:[%s1109 + $0x70] sm:$0xff]
        %v1125 = vld [vmem:[%s1109 + $0x78] sm:$0x1f]
        %v1126 = vmul.f32 %v1093, %v1110
        %v1127 = vmul.f32 %v1094, %v1111
        %v1128 = vmul.f32 %v1095, %v1112
        %v1129 = vmul.f32 %v1096, %v1113
        %v1130 = vmul.f32 %v1097, %v1114
        %v1131 = vmul.f32 %v1098, %v1115
        %v1132 = vmul.f32 %v1099, %v1116
        %v1133 = vmul.f32 %v1100, %v1117
        %v1134 = vmul.f32 %v1101, %v1118
        %v1135 = vmul.f32 %v1102, %v1119
        %v1136 = vmul.f32 %v1103, %v1120
        %v1137 = vmul.f32 %v1104, %v1121
        %v1138 = vmul.f32 %v1105, %v1122
        %v1139 = vmul.f32 %v1106, %v1123
        %v1140 = vmul.f32 %v1107, %v1124
        %v1141 = vmul.f32 %v1108, %v1125
        %v1142 = vadd.f32 %v1077, %v1126
        %v1143 = vadd.f32 %v1078, %v1127
        %v1144 = vadd.f32 %v1079, %v1128
        %v1145 = vadd.f32 %v1080, %v1129
        %v1146 = vadd.f32 %v1081, %v1130
        %v1147 = vadd.f32 %v1082, %v1131
        %v1148 = vadd.f32 %v1083, %v1132
        %v1149 = vadd.f32 %v1084, %v1133
        %v1150 = vadd.f32 %v1085, %v1134
        %v1151 = vadd.f32 %v1086, %v1135
        %v1152 = vadd.f32 %v1087, %v1136
        %v1153 = vadd.f32 %v1088, %v1137
        %v1154 = vadd.f32 %v1089, %v1138
        %v1155 = vadd.f32 %v1090, %v1139
        %v1156 = vadd.f32 %v1091, %v1140
        %v1157 = vadd.f32 %v1092, %v1141
        %v1158 = vld [vmem:[%s4] sm:$0x1]
        %v1160 = vlaneseq
        %v1161 = vshrl.u32 %v1160, 7
        %v1162 = vsub.s32 0, %v1161
        %v1163 = vrot.slane %v1158, %v1162
        %v1165 = vadd.f32 %v1142, %v1163
        %v1166 = vadd.f32 %v1143, %v1163
        %v1167 = vadd.f32 %v1144, %v1163
        %v1168 = vadd.f32 %v1145, %v1163
        %v1169 = vadd.f32 %v1146, %v1163
        %v1170 = vadd.f32 %v1147, %v1163
        %v1171 = vadd.f32 %v1148, %v1163
        %v1172 = vadd.f32 %v1149, %v1163
        %v1173 = vadd.f32 %v1150, %v1163
        %v1174 = vadd.f32 %v1151, %v1163
        %v1175 = vadd.f32 %v1152, %v1163
        %v1176 = vadd.f32 %v1153, %v1163
        %v1177 = vadd.f32 %v1154, %v1163
        %v1178 = vadd.f32 %v1155, %v1163
        %v1179 = vadd.f32 %v1156, %v1163
        %v1180 = vadd.f32 %v1157, %v1163
        %v1181 = vmax.f32 %v1165, 0.0
        %v1182 = vmax.f32 %v1166, 0.0
        %v1183 = vmax.f32 %v1167, 0.0
        %v1184 = vmax.f32 %v1168, 0.0
        %v1185 = vmax.f32 %v1169, 0.0
        %v1186 = vmax.f32 %v1170, 0.0
        %v1187 = vmax.f32 %v1171, 0.0
        %v1188 = vmax.f32 %v1172, 0.0
        %v1189 = vmax.f32 %v1173, 0.0
        %v1190 = vmax.f32 %v1174, 0.0
        %v1191 = vmax.f32 %v1175, 0.0
        %v1192 = vmax.f32 %v1176, 0.0
        %v1193 = vmax.f32 %v1177, 0.0
        %v1194 = vmax.f32 %v1178, 0.0
        %v1195 = vmax.f32 %v1179, 0.0
        %v1196 = vmax.f32 %v1180, 0.0
        %v1197 = vld [vmem:[%s5] sm:$0xff]
        %v1198 = vld [vmem:[%s5 + $0x8] sm:$0xff]
        %v1199 = vld [vmem:[%s5 + $0x10] sm:$0xff]
        %v1200 = vld [vmem:[%s5 + $0x18] sm:$0xff]
        %v1201 = vld [vmem:[%s5 + $0x20] sm:$0xff]
        %v1202 = vld [vmem:[%s5 + $0x28] sm:$0xff]
        %v1203 = vld [vmem:[%s5 + $0x30] sm:$0xff]
        %v1204 = vld [vmem:[%s5 + $0x38] sm:$0xff]
        %v1205 = vld [vmem:[%s6] sm:$0x1]
        %v1207 = vlaneseq
        %v1208 = vshrl.u32 %v1207, 7
        %v1209 = vsub.s32 0, %v1208
        %v1210 = vrot.slane %v1205, %v1209
        %v1213 = vsel %vm330, %v1181, 0
        %v1216 = vsel %vm330, %v1182, 0
        %v1219 = vsel %vm330, %v1183, 0
        %v1222 = vsel %vm330, %v1184, 0
        %v1225 = vsel %vm330, %v1185, 0
        %v1228 = vsel %vm330, %v1186, 0
        %v1231 = vsel %vm330, %v1187, 0
        %v1234 = vsel %vm330, %v1188, 0
        %v1237 = vsel %vm330, %v1189, 0
        %v1240 = vsel %vm330, %v1190, 0
        %v1243 = vsel %vm330, %v1191, 0
        %v1246 = vsel %vm330, %v1192, 0
        %v1249 = vsel %vm330, %v1193, 0
        %v1252 = vsel %vm330, %v1194, 0
        %v1255 = vsel %vm330, %v1195, 0
        %v1258 = vsel %vm330, %v1196, 0
        %1260 = vmatprep.subr.mxu0 0.0
        %1261 = vmatpush1.msra.mxu0 %v1197
        %1262 = vmatprep.subr.mxu0 0.0
        %1263 = vmatpush1.msra.mxu0 %v1198
        %1264 = vmatprep.subr.mxu0 0.0
        %1265 = vmatpush1.msra.mxu0 %v1199
        %1266 = vmatprep.subr.mxu0 0.0
        %1267 = vmatpush1.msra.mxu0 %v1200
        %1268 = vmatprep.subr.mxu0 0.0
        %1269 = vmatpush1.msra.mxu0 %v1201
        %1270 = vmatprep.subr.mxu0 0.0
        %1271 = vmatpush1.msra.mxu0 %v1202
        %1272 = vmatprep.subr.mxu0 0.0
        %1273 = vmatpush1.msra.mxu0 %v1203
        %1274 = vmatprep.subr.mxu0 0.0
        %1275 = vmatpush1.msra.mxu0 %v1204
        %1276 = vmatprep.subr.mxu0 0.0
        %1277 = vmatpush1.msra.mxu0 0.0
        %1278 = vmatprep.subr.mxu0 0.0
        %1279 = vmatpush1.msra.mxu0 0.0
        %1280 = vmatprep.subr.mxu0 0.0
        %1281 = vmatpush1.msra.mxu0 0.0
        %1282 = vmatprep.subr.mxu0 0.0
        %1283 = vmatpush1.msra.mxu0 0.0
        %1284 = vmatprep.subr.mxu0 0.0
        %1285 = vmatpush1.msra.mxu0 0.0
        %1286 = vmatprep.subr.mxu0 0.0
        %1287 = vmatpush1.msra.mxu0 0.0
        %1288 = vmatprep.subr.mxu0 0.0
        %1289 = vmatpush1.msra.mxu0 0.0
        %1290 = vmatprep.subr.mxu0 0.0
        %1291 = vmatpush1.msra.mxu0 0.0
        %1292 = vmatprep.subr.mxu0 0.0
        %1293 = vmatpush1.msra.mxu0 0.0
        %1294 = vmatprep.subr.mxu0 0.0
        %1295 = vmatpush1.msra.mxu0 0.0
        %1296 = vmatprep.subr.mxu0 0.0
        %1297 = vmatpush1.msra.mxu0 0.0
        %1298 = vmatprep.subr.mxu0 0.0
        %1299 = vmatpush1.msra.mxu0 0.0
        %1300 = vmatprep.subr.mxu0 0.0
        %1301 = vmatpush1.msra.mxu0 0.0
        %1302 = vmatprep.subr.mxu0 0.0
        %1303 = vmatpush1.msra.mxu0 0.0
        %1304 = vmatprep.subr.mxu0 0.0
        %1305 = vmatpush1.msra.mxu0 0.0
        %1306 = vmatprep.subr.mxu0 0.0
        %1307 = vmatpush1.msra.mxu0 0.0
        %1308 = vmatprep.subr.mxu0 0.0
        %1309 = vmatpush1.msra.mxu0 0.0
        %1310 = vmatprep.subr.mxu0 0.0
        %1311 = vmatpush1.msra.mxu0 0.0
        %1312 = vmatprep.subr.mxu0 0.0
        %1313 = vmatpush1.msra.mxu0 0.0
        %1314 = vmatprep.subr.mxu0 0.0
        %1315 = vmatpush1.msra.mxu0 0.0
        %1316 = vmatprep.subr.mxu0 0.0
        %1317 = vmatpush1.msra.mxu0 0.0
        %1318 = vmatprep.subr.mxu0 0.0
        %1319 = vmatpush1.msra.mxu0 0.0
        %1320 = vmatprep.subr.mxu0 0.0
        %1321 = vmatpush1.msra.mxu0 0.0
        %1322 = vmatprep.subr.mxu0 0.0
        %1323 = vmatpush1.msra.mxu0 0.0
        %1324 = vmatprep.mubr.f32.mxu0 0.0
        %1325 = vmatmul.mubr.f32.gmra.mrb[0].mxu0 %v1213
        %v1326 = vpop.f32.mrb[0].mxu0
        %v1327 = vadd.f32 %v1210, %v1326
        %v1328 = vpop.f32.mrb[0].mxu0
        %1329 = vmatprep.mubr.f32.mxu0 0.0
        %1330 = vmatmul.mubr.f32.gmra.mrb[0].mxu0 %v1216
        %v1331 = vpop.f32.mrb[0].mxu0
        %v1332 = vadd.f32 %v1210, %v1331
        %v1333 = vpop.f32.mrb[0].mxu0
        %1334 = vmatprep.mubr.f32.mxu0 0.0
        %1335 = vmatmul.mubr.f32.gmra.mrb[0].mxu0 %v1219
        %v1336 = vpop.f32.mrb[0].mxu0
        %v1337 = vadd.f32 %v1210, %v1336
        %v1338 = vpop.f32.mrb[0].mxu0
        %1339 = vmatprep.mubr.f32.mxu0 0.0
        %1340 = vmatmul.mubr.f32.gmra.mrb[0].mxu0 %v1222
        %v1341 = vpop.f32.mrb[0].mxu0
        %v1342 = vadd.f32 %v1210, %v1341
        %v1343 = vpop.f32.mrb[0].mxu0
        %1344 = vmatprep.mubr.f32.mxu0 0.0
        %1345 = vmatmul.mubr.f32.gmra.mrb[0].mxu0 %v1225
        %v1346 = vpop.f32.mrb[0].mxu0
        %v1347 = vadd.f32 %v1210, %v1346
        %v1348 = vpop.f32.mrb[0].mxu0
        %1349 = vmatprep.mubr.f32.mxu0 0.0
        %1350 = vmatmul.mubr.f32.gmra.mrb[0].mxu0 %v1228
        %v1351 = vpop.f32.mrb[0].mxu0
        %v1352 = vadd.f32 %v1210, %v1351
        %v1353 = vpop.f32.mrb[0].mxu0
        %1354 = vmatprep.mubr.f32.mxu0 0.0
        %1355 = vmatmul.mubr.f32.gmra.mrb[0].mxu0 %v1231
        %v1356 = vpop.f32.mrb[0].mxu0
        %v1357 = vadd.f32 %v1210, %v1356
        %v1358 = vpop.f32.mrb[0].mxu0
        %1359 = vmatprep.mubr.f32.mxu0 0.0
        %1360 = vmatmul.mubr.f32.gmra.mrb[0].mxu0 %v1234
        %v1361 = vpop.f32.mrb[0].mxu0
        %v1362 = vadd.f32 %v1210, %v1361
        %v1363 = vpop.f32.mrb[0].mxu0
        %1364 = vmatprep.mubr.f32.mxu0 0.0
        %1365 = vmatmul.mubr.f32.gmra.mrb[0].mxu0 %v1237
        %v1366 = vpop.f32.mrb[0].mxu0
        %v1367 = vadd.f32 %v1210, %v1366
        %v1368 = vpop.f32.mrb[0].mxu0
        %1369 = vmatprep.mubr.f32.mxu0 0.0
        %1370 = vmatmul.mubr.f32.gmra.mrb[0].mxu0 %v1240
        %v1371 = vpop.f32.mrb[0].mxu0
        %v1372 = vadd.f32 %v1210, %v1371
        %v1373 = vpop.f32.mrb[0].mxu0
        %1374 = vmatprep.mubr.f32.mxu0 0.0
        %1375 = vmatmul.mubr.f32.gmra.mrb[0].mxu0 %v1243
        %v1376 = vpop.f32.mrb[0].mxu0
        %v1377 = vadd.f32 %v1210, %v1376
        %v1378 = vpop.f32.mrb[0].mxu0
        %1379 = vmatprep.mubr.f32.mxu0 0.0
        %1380 = vmatmul.mubr.f32.gmra.mrb[0].mxu0 %v1246
        %v1381 = vpop.f32.mrb[0].mxu0
        %v1382 = vadd.f32 %v1210, %v1381
        %v1383 = vpop.f32.mrb[0].mxu0
        %1384 = vmatprep.mubr.f32.mxu0 0.0
        %1385 = vmatmul.mubr.f32.gmra.mrb[0].mxu0 %v1249
        %v1386 = vpop.f32.mrb[0].mxu0
        %v1387 = vadd.f32 %v1210, %v1386
        %v1388 = vpop.f32.mrb[0].mxu0
        %1389 = vmatprep.mubr.f32.mxu0 0.0
        %1390 = vmatmul.mubr.f32.gmra.mrb[0].mxu0 %v1252
        %v1391 = vpop.f32.mrb[0].mxu0
        %v1392 = vadd.f32 %v1210, %v1391
        %v1393 = vpop.f32.mrb[0].mxu0
        %1394 = vmatprep.mubr.f32.mxu0 0.0
        %1395 = vmatmul.mubr.f32.gmra.mrb[0].mxu0 %v1255
        %v1396 = vpop.f32.mrb[0].mxu0
        %v1397 = vadd.f32 %v1210, %v1396
        %v1398 = vpop.f32.mrb[0].mxu0
        %1399 = vmatprep.mubr.f32.mxu0 0.0
        %1400 = vmatmul.mubr.f32.gmra.mrb[0].mxu0 %v1258
        %v1401 = vpop.f32.mrb[0].mxu0
        %v1402 = vadd.f32 %v1210, %v1401
        %v1403 = vpop.f32.mrb[0].mxu0
        %1404 = vdwg.mxu0
        %v1405 = vmax.f32 %v1327, 0.0
        %v1406 = vmax.f32 %v1332, 0.0
        %v1407 = vmax.f32 %v1337, 0.0
        %v1408 = vmax.f32 %v1342, 0.0
        %v1409 = vmax.f32 %v1347, 0.0
        %v1410 = vmax.f32 %v1352, 0.0
        %v1411 = vmax.f32 %v1357, 0.0
        %v1412 = vmax.f32 %v1362, 0.0
        %v1413 = vmax.f32 %v1367, 0.0
        %v1414 = vmax.f32 %v1372, 0.0
        %v1415 = vmax.f32 %v1377, 0.0
        %v1416 = vmax.f32 %v1382, 0.0
        %v1417 = vmax.f32 %v1387, 0.0
        %v1418 = vmax.f32 %v1392, 0.0
        %v1419 = vmax.f32 %v1397, 0.0
        %v1420 = vmax.f32 %v1402, 0.0
        %1421 = vst.msk [vmem:[#allocation2 + $0x8] sm:$0xff] %vm330, %v1405
        %1422 = vst.msk [vmem:[#allocation2 + $0x10] sm:$0xff] %vm330, %v1406
        %1423 = vst.msk [vmem:[#allocation2 + $0x18] sm:$0xff] %vm330, %v1407
        %1424 = vst.msk [vmem:[#allocation2 + $0x20] sm:$0xff] %vm330, %v1408
        %1425 = vst.msk [vmem:[#allocation2 + $0x28] sm:$0xff] %vm330, %v1409
        %1426 = vst.msk [vmem:[#allocation2 + $0x30] sm:$0xff] %vm330, %v1410
        %1427 = vst.msk [vmem:[#allocation2 + $0x38] sm:$0xff] %vm330, %v1411
        %1428 = vst.msk [vmem:[#allocation2 + $0x40] sm:$0xff] %vm330, %v1412
        %1429 = vst.msk [vmem:[#allocation2 + $0x48] sm:$0xff] %vm330, %v1413
        %1430 = vst.msk [vmem:[#allocation2 + $0x50] sm:$0xff] %vm330, %v1414
        %1431 = vst.msk [vmem:[#allocation2 + $0x58] sm:$0xff] %vm330, %v1415
        %1432 = vst.msk [vmem:[#allocation2 + $0x60] sm:$0xff] %vm330, %v1416
        %1433 = vst.msk [vmem:[#allocation2 + $0x68] sm:$0xff] %vm330, %v1417
        %1434 = vst.msk [vmem:[#allocation2 + $0x70] sm:$0xff] %vm330, %v1418
        %1435 = vst.msk [vmem:[#allocation2 + $0x78] sm:$0xff] %vm330, %v1419
        %1436 = vst.msk [vmem:[#allocation2 + $0x80] sm:$0x1f] %vm348, %v1420
        %v1437 = vld [vmem:[#allocation2 + $0x2] sm:$0xff]
        %v1438 = vld [vmem:[#allocation2 + $0xa] sm:$0xff]
        %v1439 = vld [vmem:[#allocation2 + $0x12] sm:$0xff]
        %v1440 = vld [vmem:[#allocation2 + $0x1a] sm:$0xff]
        %v1441 = vld [vmem:[#allocation2 + $0x22] sm:$0xff]
        %v1442 = vld [vmem:[#allocation2 + $0x2a] sm:$0xff]
        %v1443 = vld [vmem:[#allocation2 + $0x32] sm:$0xff]
        %v1444 = vld [vmem:[#allocation2 + $0x3a] sm:$0xff]
        %v1445 = vld [vmem:[#allocation2 + $0x42] sm:$0xff]
        %v1446 = vld [vmem:[#allocation2 + $0x4a] sm:$0xff]
        %v1447 = vld [vmem:[#allocation2 + $0x52] sm:$0xff]
        %v1448 = vld [vmem:[#allocation2 + $0x5a] sm:$0xff]
        %v1449 = vld [vmem:[#allocation2 + $0x62] sm:$0xff]
        %v1450 = vld [vmem:[#allocation2 + $0x6a] sm:$0xff]
        %v1451 = vld [vmem:[#allocation2 + $0x72] sm:$0xff]
        %v1452 = vld [vmem:[#allocation2 + $0x7a] sm:$0x1f]
        %s1453 = scalar_lea.vmem %s3, 1152
        %v1454 = vld [vmem:[%s1453] sm:$0xff]
        %v1455 = vld [vmem:[%s1453 + $0x8] sm:$0xff]
        %v1456 = vld [vmem:[%s1453 + $0x10] sm:$0xff]
        %v1457 = vld [vmem:[%s1453 + $0x18] sm:$0xff]
        %v1458 = vld [vmem:[%s1453 + $0x20] sm:$0xff]
        %v1459 = vld [vmem:[%s1453 + $0x28] sm:$0xff]
        %v1460 = vld [vmem:[%s1453 + $0x30] sm:$0xff]
        %v1461 = vld [vmem:[%s1453 + $0x38] sm:$0xff]
        %v1462 = vld [vmem:[%s1453 + $0x40] sm:$0xff]
        %v1463 = vld [vmem:[%s1453 + $0x48] sm:$0xff]
        %v1464 = vld [vmem:[%s1453 + $0x50] sm:$0xff]
        %v1465 = vld [vmem:[%s1453 + $0x58] sm:$0xff]
        %v1466 = vld [vmem:[%s1453 + $0x60] sm:$0xff]
        %v1467 = vld [vmem:[%s1453 + $0x68] sm:$0xff]
        %v1468 = vld [vmem:[%s1453 + $0x70] sm:$0xff]
        %v1469 = vld [vmem:[%s1453 + $0x78] sm:$0x1f]
        %v1470 = vmul.f32 %v1437, %v1454
        %v1471 = vmul.f32 %v1438, %v1455
        %v1472 = vmul.f32 %v1439, %v1456
        %v1473 = vmul.f32 %v1440, %v1457
        %v1474 = vmul.f32 %v1441, %v1458
        %v1475 = vmul.f32 %v1442, %v1459
        %v1476 = vmul.f32 %v1443, %v1460
        %v1477 = vmul.f32 %v1444, %v1461
        %v1478 = vmul.f32 %v1445, %v1462
        %v1479 = vmul.f32 %v1446, %v1463
        %v1480 = vmul.f32 %v1447, %v1464
        %v1481 = vmul.f32 %v1448, %v1465
        %v1482 = vmul.f32 %v1449, %v1466
        %v1483 = vmul.f32 %v1450, %v1467
        %v1484 = vmul.f32 %v1451, %v1468
        %v1485 = vmul.f32 %v1452, %v1469
        %v1486 = vld [vmem:[#allocation2 + $0x3] sm:$0xff]
        %v1487 = vld [vmem:[#allocation2 + $0xb] sm:$0xff]
        %v1488 = vld [vmem:[#allocation2 + $0x13] sm:$0xff]
        %v1489 = vld [vmem:[#allocation2 + $0x1b] sm:$0xff]
        %v1490 = vld [vmem:[#allocation2 + $0x23] sm:$0xff]
        %v1491 = vld [vmem:[#allocation2 + $0x2b] sm:$0xff]
        %v1492 = vld [vmem:[#allocation2 + $0x33] sm:$0xff]
        %v1493 = vld [vmem:[#allocation2 + $0x3b] sm:$0xff]
        %v1494 = vld [vmem:[#allocation2 + $0x43] sm:$0xff]
        %v1495 = vld [vmem:[#allocation2 + $0x4b] sm:$0xff]
        %v1496 = vld [vmem:[#allocation2 + $0x53] sm:$0xff]
        %v1497 = vld [vmem:[#allocation2 + $0x5b] sm:$0xff]
        %v1498 = vld [vmem:[#allocation2 + $0x63] sm:$0xff]
        %v1499 = vld [vmem:[#allocation2 + $0x6b] sm:$0xff]
        %v1500 = vld [vmem:[#allocation2 + $0x73] sm:$0xff]
        %v1501 = vld [vmem:[#allocation2 + $0x7b] sm:$0x1f]
        %s1502 = scalar_lea.vmem %s3, 1280
        %v1503 = vld [vmem:[%s1502] sm:$0xff]
        %v1504 = vld [vmem:[%s1502 + $0x8] sm:$0xff]
        %v1505 = vld [vmem:[%s1502 + $0x10] sm:$0xff]
        %v1506 = vld [vmem:[%s1502 + $0x18] sm:$0xff]
        %v1507 = vld [vmem:[%s1502 + $0x20] sm:$0xff]
        %v1508 = vld [vmem:[%s1502 + $0x28] sm:$0xff]
        %v1509 = vld [vmem:[%s1502 + $0x30] sm:$0xff]
        %v1510 = vld [vmem:[%s1502 + $0x38] sm:$0xff]
        %v1511 = vld [vmem:[%s1502 + $0x40] sm:$0xff]
        %v1512 = vld [vmem:[%s1502 + $0x48] sm:$0xff]
        %v1513 = vld [vmem:[%s1502 + $0x50] sm:$0xff]
        %v1514 = vld [vmem:[%s1502 + $0x58] sm:$0xff]
        %v1515 = vld [vmem:[%s1502 + $0x60] sm:$0xff]
        %v1516 = vld [vmem:[%s1502 + $0x68] sm:$0xff]
        %v1517 = vld [vmem:[%s1502 + $0x70] sm:$0xff]
        %v1518 = vld [vmem:[%s1502 + $0x78] sm:$0x1f]
        %v1519 = vmul.f32 %v1486, %v1503
        %v1520 = vmul.f32 %v1487, %v1504
        %v1521 = vmul.f32 %v1488, %v1505
        %v1522 = vmul.f32 %v1489, %v1506
        %v1523 = vmul.f32 %v1490, %v1507
        %v1524 = vmul.f32 %v1491, %v1508
        %v1525 = vmul.f32 %v1492, %v1509
        %v1526 = vmul.f32 %v1493, %v1510
        %v1527 = vmul.f32 %v1494, %v1511
        %v1528 = vmul.f32 %v1495, %v1512
        %v1529 = vmul.f32 %v1496, %v1513
        %v1530 = vmul.f32 %v1497, %v1514
        %v1531 = vmul.f32 %v1498, %v1515
        %v1532 = vmul.f32 %v1499, %v1516
        %v1533 = vmul.f32 %v1500, %v1517
        %v1534 = vmul.f32 %v1501, %v1518
        %v1535 = vadd.f32 %v1470, %v1519
        %v1536 = vadd.f32 %v1471, %v1520
        %v1537 = vadd.f32 %v1472, %v1521
        %v1538 = vadd.f32 %v1473, %v1522
        %v1539 = vadd.f32 %v1474, %v1523
        %v1540 = vadd.f32 %v1475, %v1524
        %v1541 = vadd.f32 %v1476, %v1525
        %v1542 = vadd.f32 %v1477, %v1526
        %v1543 = vadd.f32 %v1478, %v1527
        %v1544 = vadd.f32 %v1479, %v1528
        %v1545 = vadd.f32 %v1480, %v1529
        %v1546 = vadd.f32 %v1481, %v1530
        %v1547 = vadd.f32 %v1482, %v1531
        %v1548 = vadd.f32 %v1483, %v1532
        %v1549 = vadd.f32 %v1484, %v1533
        %v1550 = vadd.f32 %v1485, %v1534
        %v1551 = vld [vmem:[#allocation2 + $0x4] sm:$0xff]
        %v1552 = vld [vmem:[#allocation2 + $0xc] sm:$0xff]
        %v1553 = vld [vmem:[#allocation2 + $0x14] sm:$0xff]
        %v1554 = vld [vmem:[#allocation2 + $0x1c] sm:$0xff]
        %v1555 = vld [vmem:[#allocation2 + $0x24] sm:$0xff]
        %v1556 = vld [vmem:[#allocation2 + $0x2c] sm:$0xff]
        %v1557 = vld [vmem:[#allocation2 + $0x34] sm:$0xff]
        %v1558 = vld [vmem:[#allocation2 + $0x3c] sm:$0xff]
        %v1559 = vld [vmem:[#allocation2 + $0x44] sm:$0xff]
        %v1560 = vld [vmem:[#allocation2 + $0x4c] sm:$0xff]
        %v1561 = vld [vmem:[#allocation2 + $0x54] sm:$0xff]
        %v1562 = vld [vmem:[#allocation2 + $0x5c] sm:$0xff]
        %v1563 = vld [vmem:[#allocation2 + $0x64] sm:$0xff]
        %v1564 = vld [vmem:[#allocation2 + $0x6c] sm:$0xff]
        %v1565 = vld [vmem:[#allocation2 + $0x74] sm:$0xff]
        %v1566 = vld [vmem:[#allocation2 + $0x7c] sm:$0x1f]
        %s1567 = scalar_lea.vmem %s3, 1408
        %v1568 = vld [vmem:[%s1567] sm:$0xff]
        %v1569 = vld [vmem:[%s1567 + $0x8] sm:$0xff]
        %v1570 = vld [vmem:[%s1567 + $0x10] sm:$0xff]
        %v1571 = vld [vmem:[%s1567 + $0x18] sm:$0xff]
        %v1572 = vld [vmem:[%s1567 + $0x20] sm:$0xff]
        %v1573 = vld [vmem:[%s1567 + $0x28] sm:$0xff]
        %v1574 = vld [vmem:[%s1567 + $0x30] sm:$0xff]
        %v1575 = vld [vmem:[%s1567 + $0x38] sm:$0xff]
        %v1576 = vld [vmem:[%s1567 + $0x40] sm:$0xff]
        %v1577 = vld [vmem:[%s1567 + $0x48] sm:$0xff]
        %v1578 = vld [vmem:[%s1567 + $0x50] sm:$0xff]
        %v1579 = vld [vmem:[%s1567 + $0x58] sm:$0xff]
        %v1580 = vld [vmem:[%s1567 + $0x60] sm:$0xff]
        %v1581 = vld [vmem:[%s1567 + $0x68] sm:$0xff]
        %v1582 = vld [vmem:[%s1567 + $0x70] sm:$0xff]
        %v1583 = vld [vmem:[%s1567 + $0x78] sm:$0x1f]
        %v1584 = vmul.f32 %v1551, %v1568
        %v1585 = vmul.f32 %v1552, %v1569
        %v1586 = vmul.f32 %v1553, %v1570
        %v1587 = vmul.f32 %v1554, %v1571
        %v1588 = vmul.f32 %v1555, %v1572
        %v1589 = vmul.f32 %v1556, %v1573
        %v1590 = vmul.f32 %v1557, %v1574
        %v1591 = vmul.f32 %v1558, %v1575
        %v1592 = vmul.f32 %v1559, %v1576
        %v1593 = vmul.f32 %v1560, %v1577
        %v1594 = vmul.f32 %v1561, %v1578
        %v1595 = vmul.f32 %v1562, %v1579
        %v1596 = vmul.f32 %v1563, %v1580
        %v1597 = vmul.f32 %v1564, %v1581
        %v1598 = vmul.f32 %v1565, %v1582
        %v1599 = vmul.f32 %v1566, %v1583
        %v1600 = vadd.f32 %v1535, %v1584
        %v1601 = vadd.f32 %v1536, %v1585
        %v1602 = vadd.f32 %v1537, %v1586
        %v1603 = vadd.f32 %v1538, %v1587
        %v1604 = vadd.f32 %v1539, %v1588
        %v1605 = vadd.f32 %v1540, %v1589
        %v1606 = vadd.f32 %v1541, %v1590
        %v1607 = vadd.f32 %v1542, %v1591
        %v1608 = vadd.f32 %v1543, %v1592
        %v1609 = vadd.f32 %v1544, %v1593
        %v1610 = vadd.f32 %v1545, %v1594
        %v1611 = vadd.f32 %v1546, %v1595
        %v1612 = vadd.f32 %v1547, %v1596
        %v1613 = vadd.f32 %v1548, %v1597
        %v1614 = vadd.f32 %v1549, %v1598
        %v1615 = vadd.f32 %v1550, %v1599
        %v1616 = vld [vmem:[#allocation2 + $0x7] sm:$0xff]
        %v1617 = vld [vmem:[#allocation2 + $0xf] sm:$0xff]
        %v1618 = vld [vmem:[#allocation2 + $0x17] sm:$0xff]
        %v1619 = vld [vmem:[#allocation2 + $0x1f] sm:$0xff]
        %v1620 = vld [vmem:[#allocation2 + $0x27] sm:$0xff]
        %v1621 = vld [vmem:[#allocation2 + $0x2f] sm:$0xff]
        %v1622 = vld [vmem:[#allocation2 + $0x37] sm:$0xff]
        %v1623 = vld [vmem:[#allocation2 + $0x3f] sm:$0xff]
        %v1624 = vld [vmem:[#allocation2 + $0x47] sm:$0xff]
        %v1625 = vld [vmem:[#allocation2 + $0x4f] sm:$0xff]
        %v1626 = vld [vmem:[#allocation2 + $0x57] sm:$0xff]
        %v1627 = vld [vmem:[#allocation2 + $0x5f] sm:$0xff]
        %v1628 = vld [vmem:[#allocation2 + $0x67] sm:$0xff]
        %v1629 = vld [vmem:[#allocation2 + $0x6f] sm:$0xff]
        %v1630 = vld [vmem:[#allocation2 + $0x77] sm:$0xff]
        %v1631 = vld [vmem:[#allocation2 + $0x7f] sm:$0x1f]
        %s1632 = scalar_lea.vmem %s3, 1536
        %v1633 = vld [vmem:[%s1632] sm:$0xff]
        %v1634 = vld [vmem:[%s1632 + $0x8] sm:$0xff]
        %v1635 = vld [vmem:[%s1632 + $0x10] sm:$0xff]
        %v1636 = vld [vmem:[%s1632 + $0x18] sm:$0xff]
        %v1637 = vld [vmem:[%s1632 + $0x20] sm:$0xff]
        %v1638 = vld [vmem:[%s1632 + $0x28] sm:$0xff]
        %v1639 = vld [vmem:[%s1632 + $0x30] sm:$0xff]
        %v1640 = vld [vmem:[%s1632 + $0x38] sm:$0xff]
        %v1641 = vld [vmem:[%s1632 + $0x40] sm:$0xff]
        %v1642 = vld [vmem:[%s1632 + $0x48] sm:$0xff]
        %v1643 = vld [vmem:[%s1632 + $0x50] sm:$0xff]
        %v1644 = vld [vmem:[%s1632 + $0x58] sm:$0xff]
        %v1645 = vld [vmem:[%s1632 + $0x60] sm:$0xff]
        %v1646 = vld [vmem:[%s1632 + $0x68] sm:$0xff]
        %v1647 = vld [vmem:[%s1632 + $0x70] sm:$0xff]
        %v1648 = vld [vmem:[%s1632 + $0x78] sm:$0x1f]
        %v1649 = vmul.f32 %v1616, %v1633
        %v1650 = vmul.f32 %v1617, %v1634
        %v1651 = vmul.f32 %v1618, %v1635
        %v1652 = vmul.f32 %v1619, %v1636
        %v1653 = vmul.f32 %v1620, %v1637
        %v1654 = vmul.f32 %v1621, %v1638
        %v1655 = vmul.f32 %v1622, %v1639
        %v1656 = vmul.f32 %v1623, %v1640
        %v1657 = vmul.f32 %v1624, %v1641
        %v1658 = vmul.f32 %v1625, %v1642
        %v1659 = vmul.f32 %v1626, %v1643
        %v1660 = vmul.f32 %v1627, %v1644
        %v1661 = vmul.f32 %v1628, %v1645
        %v1662 = vmul.f32 %v1629, %v1646
        %v1663 = vmul.f32 %v1630, %v1647
        %v1664 = vmul.f32 %v1631, %v1648
        %v1665 = vadd.f32 %v1600, %v1649
        %v1666 = vadd.f32 %v1601, %v1650
        %v1667 = vadd.f32 %v1602, %v1651
        %v1668 = vadd.f32 %v1603, %v1652
        %v1669 = vadd.f32 %v1604, %v1653
        %v1670 = vadd.f32 %v1605, %v1654
        %v1671 = vadd.f32 %v1606, %v1655
        %v1672 = vadd.f32 %v1607, %v1656
        %v1673 = vadd.f32 %v1608, %v1657
        %v1674 = vadd.f32 %v1609, %v1658
        %v1675 = vadd.f32 %v1610, %v1659
        %v1676 = vadd.f32 %v1611, %v1660
        %v1677 = vadd.f32 %v1612, %v1661
        %v1678 = vadd.f32 %v1613, %v1662
        %v1679 = vadd.f32 %v1614, %v1663
        %v1680 = vadd.f32 %v1615, %v1664
        %v1681 = vld [vmem:[#allocation2 + $0x8] sm:$0xff]
        %v1682 = vld [vmem:[#allocation2 + $0x10] sm:$0xff]
        %v1683 = vld [vmem:[#allocation2 + $0x18] sm:$0xff]
        %v1684 = vld [vmem:[#allocation2 + $0x20] sm:$0xff]
        %v1685 = vld [vmem:[#allocation2 + $0x28] sm:$0xff]
        %v1686 = vld [vmem:[#allocation2 + $0x30] sm:$0xff]
        %v1687 = vld [vmem:[#allocation2 + $0x38] sm:$0xff]
        %v1688 = vld [vmem:[#allocation2 + $0x40] sm:$0xff]
        %v1689 = vld [vmem:[#allocation2 + $0x48] sm:$0xff]
        %v1690 = vld [vmem:[#allocation2 + $0x50] sm:$0xff]
        %v1691 = vld [vmem:[#allocation2 + $0x58] sm:$0xff]
        %v1692 = vld [vmem:[#allocation2 + $0x60] sm:$0xff]
        %v1693 = vld [vmem:[#allocation2 + $0x68] sm:$0xff]
        %v1694 = vld [vmem:[#allocation2 + $0x70] sm:$0xff]
        %v1695 = vld [vmem:[#allocation2 + $0x78] sm:$0xff]
        %v1696 = vld [vmem:[#allocation2 + $0x80] sm:$0x1f]
        %s1697 = scalar_lea.vmem %s3, 1664
        %v1698 = vld [vmem:[%s1697] sm:$0xff]
        %v1699 = vld [vmem:[%s1697 + $0x8] sm:$0xff]
        %v1700 = vld [vmem:[%s1697 + $0x10] sm:$0xff]
        %v1701 = vld [vmem:[%s1697 + $0x18] sm:$0xff]
        %v1702 = vld [vmem:[%s1697 + $0x20] sm:$0xff]
        %v1703 = vld [vmem:[%s1697 + $0x28] sm:$0xff]
        %v1704 = vld [vmem:[%s1697 + $0x30] sm:$0xff]
        %v1705 = vld [vmem:[%s1697 + $0x38] sm:$0xff]
        %v1706 = vld [vmem:[%s1697 + $0x40] sm:$0xff]
        %v1707 = vld [vmem:[%s1697 + $0x48] sm:$0xff]
        %v1708 = vld [vmem:[%s1697 + $0x50] sm:$0xff]
        %v1709 = vld [vmem:[%s1697 + $0x58] sm:$0xff]
        %v1710 = vld [vmem:[%s1697 + $0x60] sm:$0xff]
        %v1711 = vld [vmem:[%s1697 + $0x68] sm:$0xff]
        %v1712 = vld [vmem:[%s1697 + $0x70] sm:$0xff]
        %v1713 = vld [vmem:[%s1697 + $0x78] sm:$0x1f]
        %v1714 = vmul.f32 %v1681, %v1698
        %v1715 = vmul.f32 %v1682, %v1699
        %v1716 = vmul.f32 %v1683, %v1700
        %v1717 = vmul.f32 %v1684, %v1701
        %v1718 = vmul.f32 %v1685, %v1702
        %v1719 = vmul.f32 %v1686, %v1703
        %v1720 = vmul.f32 %v1687, %v1704
        %v1721 = vmul.f32 %v1688, %v1705
        %v1722 = vmul.f32 %v1689, %v1706
        %v1723 = vmul.f32 %v1690, %v1707
        %v1724 = vmul.f32 %v1691, %v1708
        %v1725 = vmul.f32 %v1692, %v1709
        %v1726 = vmul.f32 %v1693, %v1710
        %v1727 = vmul.f32 %v1694, %v1711
        %v1728 = vmul.f32 %v1695, %v1712
        %v1729 = vmul.f32 %v1696, %v1713
        %v1730 = vadd.f32 %v1665, %v1714
        %v1731 = vadd.f32 %v1666, %v1715
        %v1732 = vadd.f32 %v1667, %v1716
        %v1733 = vadd.f32 %v1668, %v1717
        %v1734 = vadd.f32 %v1669, %v1718
        %v1735 = vadd.f32 %v1670, %v1719
        %v1736 = vadd.f32 %v1671, %v1720
        %v1737 = vadd.f32 %v1672, %v1721
        %v1738 = vadd.f32 %v1673, %v1722
        %v1739 = vadd.f32 %v1674, %v1723
        %v1740 = vadd.f32 %v1675, %v1724
        %v1741 = vadd.f32 %v1676, %v1725
        %v1742 = vadd.f32 %v1677, %v1726
        %v1743 = vadd.f32 %v1678, %v1727
        %v1744 = vadd.f32 %v1679, %v1728
        %v1745 = vadd.f32 %v1680, %v1729
        %v1746 = vld [vmem:[#allocation2 + $0x9] sm:$0xff]
        %v1747 = vld [vmem:[#allocation2 + $0x11] sm:$0xff]
        %v1748 = vld [vmem:[#allocation2 + $0x19] sm:$0xff]
        %v1749 = vld [vmem:[#allocation2 + $0x21] sm:$0xff]
        %v1750 = vld [vmem:[#allocation2 + $0x29] sm:$0xff]
        %v1751 = vld [vmem:[#allocation2 + $0x31] sm:$0xff]
        %v1752 = vld [vmem:[#allocation2 + $0x39] sm:$0xff]
        %v1753 = vld [vmem:[#allocation2 + $0x41] sm:$0xff]
        %v1754 = vld [vmem:[#allocation2 + $0x49] sm:$0xff]
        %v1755 = vld [vmem:[#allocation2 + $0x51] sm:$0xff]
        %v1756 = vld [vmem:[#allocation2 + $0x59] sm:$0xff]
        %v1757 = vld [vmem:[#allocation2 + $0x61] sm:$0xff]
        %v1758 = vld [vmem:[#allocation2 + $0x69] sm:$0xff]
        %v1759 = vld [vmem:[#allocation2 + $0x71] sm:$0xff]
        %v1760 = vld [vmem:[#allocation2 + $0x79] sm:$0xff]
        %v1761 = vld [vmem:[#allocation2 + $0x81] sm:$0x1f]
        %s1762 = scalar_lea.vmem %s3, 1792
        %v1763 = vld [vmem:[%s1762] sm:$0xff]
        %v1764 = vld [vmem:[%s1762 + $0x8] sm:$0xff]
        %v1765 = vld [vmem:[%s1762 + $0x10] sm:$0xff]
        %v1766 = vld [vmem:[%s1762 + $0x18] sm:$0xff]
        %v1767 = vld [vmem:[%s1762 + $0x20] sm:$0xff]
        %v1768 = vld [vmem:[%s1762 + $0x28] sm:$0xff]
        %v1769 = vld [vmem:[%s1762 + $0x30] sm:$0xff]
        %v1770 = vld [vmem:[%s1762 + $0x38] sm:$0xff]
        %v1771 = vld [vmem:[%s1762 + $0x40] sm:$0xff]
        %v1772 = vld [vmem:[%s1762 + $0x48] sm:$0xff]
        %v1773 = vld [vmem:[%s1762 + $0x50] sm:$0xff]
        %v1774 = vld [vmem:[%s1762 + $0x58] sm:$0xff]
        %v1775 = vld [vmem:[%s1762 + $0x60] sm:$0xff]
        %v1776 = vld [vmem:[%s1762 + $0x68] sm:$0xff]
        %v1777 = vld [vmem:[%s1762 + $0x70] sm:$0xff]
        %v1778 = vld [vmem:[%s1762 + $0x78] sm:$0x1f]
        %v1779 = vmul.f32 %v1746, %v1763
        %v1780 = vmul.f32 %v1747, %v1764
        %v1781 = vmul.f32 %v1748, %v1765
        %v1782 = vmul.f32 %v1749, %v1766
        %v1783 = vmul.f32 %v1750, %v1767
        %v1784 = vmul.f32 %v1751, %v1768
        %v1785 = vmul.f32 %v1752, %v1769
        %v1786 = vmul.f32 %v1753, %v1770
        %v1787 = vmul.f32 %v1754, %v1771
        %v1788 = vmul.f32 %v1755, %v1772
        %v1789 = vmul.f32 %v1756, %v1773
        %v1790 = vmul.f32 %v1757, %v1774
        %v1791 = vmul.f32 %v1758, %v1775
        %v1792 = vmul.f32 %v1759, %v1776
        %v1793 = vmul.f32 %v1760, %v1777
        %v1794 = vmul.f32 %v1761, %v1778
        %v1795 = vadd.f32 %v1730, %v1779
        %v1796 = vadd.f32 %v1731, %v1780
        %v1797 = vadd.f32 %v1732, %v1781
        %v1798 = vadd.f32 %v1733, %v1782
        %v1799 = vadd.f32 %v1734, %v1783
        %v1800 = vadd.f32 %v1735, %v1784
        %v1801 = vadd.f32 %v1736, %v1785
        %v1802 = vadd.f32 %v1737, %v1786
        %v1803 = vadd.f32 %v1738, %v1787
        %v1804 = vadd.f32 %v1739, %v1788
        %v1805 = vadd.f32 %v1740, %v1789
        %v1806 = vadd.f32 %v1741, %v1790
        %v1807 = vadd.f32 %v1742, %v1791
        %v1808 = vadd.f32 %v1743, %v1792
        %v1809 = vadd.f32 %v1744, %v1793
        %v1810 = vadd.f32 %v1745, %v1794
        %v1811 = vld [vmem:[#allocation2 + $0x7c] sm:$0xff]
        %v1812 = vld [vmem:[#allocation2 + $0x84] sm:$0x1f]
        %s1813 = scalar_lea.vmem %s3, 1920
        %v1814 = vld [vmem:[%s1813] sm:$0xff]
        %v1815 = vld [vmem:[%s1813 + $0x8] sm:$0xff]
        %v1816 = vld [vmem:[%s1813 + $0x10] sm:$0xff]
        %v1817 = vld [vmem:[%s1813 + $0x18] sm:$0xff]
        %v1818 = vld [vmem:[%s1813 + $0x20] sm:$0xff]
        %v1819 = vld [vmem:[%s1813 + $0x28] sm:$0xff]
        %v1820 = vld [vmem:[%s1813 + $0x30] sm:$0xff]
        %v1821 = vld [vmem:[%s1813 + $0x38] sm:$0xff]
        %v1822 = vld [vmem:[%s1813 + $0x40] sm:$0xff]
        %v1823 = vld [vmem:[%s1813 + $0x48] sm:$0xff]
        %v1824 = vld [vmem:[%s1813 + $0x50] sm:$0xff]
        %v1825 = vld [vmem:[%s1813 + $0x58] sm:$0xff]
        %v1826 = vld [vmem:[%s1813 + $0x60] sm:$0xff]
        %v1827 = vld [vmem:[%s1813 + $0x68] sm:$0xff]
        %v1828 = vld [vmem:[%s1813 + $0x70] sm:$0xff]
        %v1829 = vld [vmem:[%s1813 + $0x78] sm:$0x1f]
        %v1830 = vmul.f32 %v1552, %v1814
        %v1831 = vmul.f32 %v1553, %v1815
        %v1832 = vmul.f32 %v1554, %v1816
        %v1833 = vmul.f32 %v1555, %v1817
        %v1834 = vmul.f32 %v1556, %v1818
        %v1835 = vmul.f32 %v1557, %v1819
        %v1836 = vmul.f32 %v1558, %v1820
        %v1837 = vmul.f32 %v1559, %v1821
        %v1838 = vmul.f32 %v1560, %v1822
        %v1839 = vmul.f32 %v1561, %v1823
        %v1840 = vmul.f32 %v1562, %v1824
        %v1841 = vmul.f32 %v1563, %v1825
        %v1842 = vmul.f32 %v1564, %v1826
        %v1843 = vmul.f32 %v1565, %v1827
        %v1844 = vmul.f32 %v1811, %v1828
        %v1845 = vmul.f32 %v1812, %v1829
        %v1846 = vadd.f32 %v1795, %v1830
        %v1847 = vadd.f32 %v1796, %v1831
        %v1848 = vadd.f32 %v1797, %v1832
        %v1849 = vadd.f32 %v1798, %v1833
        %v1850 = vadd.f32 %v1799, %v1834
        %v1851 = vadd.f32 %v1800, %v1835
        %v1852 = vadd.f32 %v1801, %v1836
        %v1853 = vadd.f32 %v1802, %v1837
        %v1854 = vadd.f32 %v1803, %v1838
        %v1855 = vadd.f32 %v1804, %v1839
        %v1856 = vadd.f32 %v1805, %v1840
        %v1857 = vadd.f32 %v1806, %v1841
        %v1858 = vadd.f32 %v1807, %v1842
        %v1859 = vadd.f32 %v1808, %v1843
        %v1860 = vadd.f32 %v1809, %v1844
        %v1861 = vadd.f32 %v1810, %v1845
        %v1862 = vld [vmem:[#allocation2 + $0xd] sm:$0xff]
        %v1863 = vld [vmem:[#allocation2 + $0x15] sm:$0xff]
        %v1864 = vld [vmem:[#allocation2 + $0x1d] sm:$0xff]
        %v1865 = vld [vmem:[#allocation2 + $0x25] sm:$0xff]
        %v1866 = vld [vmem:[#allocation2 + $0x2d] sm:$0xff]
        %v1867 = vld [vmem:[#allocation2 + $0x35] sm:$0xff]
        %v1868 = vld [vmem:[#allocation2 + $0x3d] sm:$0xff]
        %v1869 = vld [vmem:[#allocation2 + $0x45] sm:$0xff]
        %v1870 = vld [vmem:[#allocation2 + $0x4d] sm:$0xff]
        %v1871 = vld [vmem:[#allocation2 + $0x55] sm:$0xff]
        %v1872 = vld [vmem:[#allocation2 + $0x5d] sm:$0xff]
        %v1873 = vld [vmem:[#allocation2 + $0x65] sm:$0xff]
        %v1874 = vld [vmem:[#allocation2 + $0x6d] sm:$0xff]
        %v1875 = vld [vmem:[#allocation2 + $0x75] sm:$0xff]
        %v1876 = vld [vmem:[#allocation2 + $0x7d] sm:$0xff]
        %v1877 = vld [vmem:[#allocation2 + $0x85] sm:$0x1f]
        %s1878 = scalar_lea.vmem %s3, 2048
        %v1879 = vld [vmem:[%s1878] sm:$0xff]
        %v1880 = vld [vmem:[%s1878 + $0x8] sm:$0xff]
        %v1881 = vld [vmem:[%s1878 + $0x10] sm:$0xff]
        %v1882 = vld [vmem:[%s1878 + $0x18] sm:$0xff]
        %v1883 = vld [vmem:[%s1878 + $0x20] sm:$0xff]
        %v1884 = vld [vmem:[%s1878 + $0x28] sm:$0xff]
        %v1885 = vld [vmem:[%s1878 + $0x30] sm:$0xff]
        %v1886 = vld [vmem:[%s1878 + $0x38] sm:$0xff]
        %v1887 = vld [vmem:[%s1878 + $0x40] sm:$0xff]
        %v1888 = vld [vmem:[%s1878 + $0x48] sm:$0xff]
        %v1889 = vld [vmem:[%s1878 + $0x50] sm:$0xff]
        %v1890 = vld [vmem:[%s1878 + $0x58] sm:$0xff]
        %v1891 = vld [vmem:[%s1878 + $0x60] sm:$0xff]
        %v1892 = vld [vmem:[%s1878 + $0x68] sm:$0xff]
        %v1893 = vld [vmem:[%s1878 + $0x70] sm:$0xff]
        %v1894 = vld [vmem:[%s1878 + $0x78] sm:$0x1f]
        %v1895 = vmul.f32 %v1862, %v1879
        %v1896 = vmul.f32 %v1863, %v1880
        %v1897 = vmul.f32 %v1864, %v1881
        %v1898 = vmul.f32 %v1865, %v1882
        %v1899 = vmul.f32 %v1866, %v1883
        %v1900 = vmul.f32 %v1867, %v1884
        %v1901 = vmul.f32 %v1868, %v1885
        %v1902 = vmul.f32 %v1869, %v1886
        %v1903 = vmul.f32 %v1870, %v1887
        %v1904 = vmul.f32 %v1871, %v1888
        %v1905 = vmul.f32 %v1872, %v1889
        %v1906 = vmul.f32 %v1873, %v1890
        %v1907 = vmul.f32 %v1874, %v1891
        %v1908 = vmul.f32 %v1875, %v1892
        %v1909 = vmul.f32 %v1876, %v1893
        %v1910 = vmul.f32 %v1877, %v1894
        %v1911 = vadd.f32 %v1846, %v1895
        %v1912 = vadd.f32 %v1847, %v1896
        %v1913 = vadd.f32 %v1848, %v1897
        %v1914 = vadd.f32 %v1849, %v1898
        %v1915 = vadd.f32 %v1850, %v1899
        %v1916 = vadd.f32 %v1851, %v1900
        %v1917 = vadd.f32 %v1852, %v1901
        %v1918 = vadd.f32 %v1853, %v1902
        %v1919 = vadd.f32 %v1854, %v1903
        %v1920 = vadd.f32 %v1855, %v1904
        %v1921 = vadd.f32 %v1856, %v1905
        %v1922 = vadd.f32 %v1857, %v1906
        %v1923 = vadd.f32 %v1858, %v1907
        %v1924 = vadd.f32 %v1859, %v1908
        %v1925 = vadd.f32 %v1860, %v1909
        %v1926 = vadd.f32 %v1861, %v1910
        %v1927 = vld [vmem:[#allocation2 + $0xe] sm:$0xff]
        %v1928 = vld [vmem:[#allocation2 + $0x16] sm:$0xff]
        %v1929 = vld [vmem:[#allocation2 + $0x1e] sm:$0xff]
        %v1930 = vld [vmem:[#allocation2 + $0x26] sm:$0xff]
        %v1931 = vld [vmem:[#allocation2 + $0x2e] sm:$0xff]
        %v1932 = vld [vmem:[#allocation2 + $0x36] sm:$0xff]
        %v1933 = vld [vmem:[#allocation2 + $0x3e] sm:$0xff]
        %v1934 = vld [vmem:[#allocation2 + $0x46] sm:$0xff]
        %v1935 = vld [vmem:[#allocation2 + $0x4e] sm:$0xff]
        %v1936 = vld [vmem:[#allocation2 + $0x56] sm:$0xff]
        %v1937 = vld [vmem:[#allocation2 + $0x5e] sm:$0xff]
        %v1938 = vld [vmem:[#allocation2 + $0x66] sm:$0xff]
        %v1939 = vld [vmem:[#allocation2 + $0x6e] sm:$0xff]
        %v1940 = vld [vmem:[#allocation2 + $0x76] sm:$0xff]
        %v1941 = vld [vmem:[#allocation2 + $0x7e] sm:$0xff]
        %v1942 = vld [vmem:[#allocation2 + $0x86] sm:$0x1f]
        %s1943 = scalar_lea.vmem %s3, 2176
        %v1944 = vld [vmem:[%s1943] sm:$0xff]
        %v1945 = vld [vmem:[%s1943 + $0x8] sm:$0xff]
        %v1946 = vld [vmem:[%s1943 + $0x10] sm:$0xff]
        %v1947 = vld [vmem:[%s1943 + $0x18] sm:$0xff]
        %v1948 = vld [vmem:[%s1943 + $0x20] sm:$0xff]
        %v1949 = vld [vmem:[%s1943 + $0x28] sm:$0xff]
        %v1950 = vld [vmem:[%s1943 + $0x30] sm:$0xff]
        %v1951 = vld [vmem:[%s1943 + $0x38] sm:$0xff]
        %v1952 = vld [vmem:[%s1943 + $0x40] sm:$0xff]
        %v1953 = vld [vmem:[%s1943 + $0x48] sm:$0xff]
        %v1954 = vld [vmem:[%s1943 + $0x50] sm:$0xff]
        %v1955 = vld [vmem:[%s1943 + $0x58] sm:$0xff]
        %v1956 = vld [vmem:[%s1943 + $0x60] sm:$0xff]
        %v1957 = vld [vmem:[%s1943 + $0x68] sm:$0xff]
        %v1958 = vld [vmem:[%s1943 + $0x70] sm:$0xff]
        %v1959 = vld [vmem:[%s1943 + $0x78] sm:$0x1f]
        %v1960 = vmul.f32 %v1927, %v1944
        %v1961 = vmul.f32 %v1928, %v1945
        %v1962 = vmul.f32 %v1929, %v1946
        %v1963 = vmul.f32 %v1930, %v1947
        %v1964 = vmul.f32 %v1931, %v1948
        %v1965 = vmul.f32 %v1932, %v1949
        %v1966 = vmul.f32 %v1933, %v1950
        %v1967 = vmul.f32 %v1934, %v1951
        %v1968 = vmul.f32 %v1935, %v1952
        %v1969 = vmul.f32 %v1936, %v1953
        %v1970 = vmul.f32 %v1937, %v1954
        %v1971 = vmul.f32 %v1938, %v1955
        %v1972 = vmul.f32 %v1939, %v1956
        %v1973 = vmul.f32 %v1940, %v1957
        %v1974 = vmul.f32 %v1941, %v1958
        %v1975 = vmul.f32 %v1942, %v1959
        %v1976 = vadd.f32 %v1911, %v1960
        %v1977 = vadd.f32 %v1912, %v1961
        %v1978 = vadd.f32 %v1913, %v1962
        %v1979 = vadd.f32 %v1914, %v1963
        %v1980 = vadd.f32 %v1915, %v1964
        %v1981 = vadd.f32 %v1916, %v1965
        %v1982 = vadd.f32 %v1917, %v1966
        %v1983 = vadd.f32 %v1918, %v1967
        %v1984 = vadd.f32 %v1919, %v1968
        %v1985 = vadd.f32 %v1920, %v1969
        %v1986 = vadd.f32 %v1921, %v1970
        %v1987 = vadd.f32 %v1922, %v1971
        %v1988 = vadd.f32 %v1923, %v1972
        %v1989 = vadd.f32 %v1924, %v1973
        %v1990 = vadd.f32 %v1925, %v1974
        %v1991 = vadd.f32 %v1926, %v1975
        %s1992 = scalar_lea.vmem %s4, 1
        %v1993 = vld [vmem:[%s1992] sm:$0x1]
        %v1995 = vlaneseq
        %v1996 = vshrl.u32 %v1995, 7
        %v1997 = vsub.s32 0, %v1996
        %v1998 = vrot.slane %v1993, %v1997
        %v2000 = vadd.f32 %v1976, %v1998
        %v2001 = vadd.f32 %v1977, %v1998
        %v2002 = vadd.f32 %v1978, %v1998
        %v2003 = vadd.f32 %v1979, %v1998
        %v2004 = vadd.f32 %v1980, %v1998
        %v2005 = vadd.f32 %v1981, %v1998
        %v2006 = vadd.f32 %v1982, %v1998
        %v2007 = vadd.f32 %v1983, %v1998
        %v2008 = vadd.f32 %v1984, %v1998
        %v2009 = vadd.f32 %v1985, %v1998
        %v2010 = vadd.f32 %v1986, %v1998
        %v2011 = vadd.f32 %v1987, %v1998
        %v2012 = vadd.f32 %v1988, %v1998
        %v2013 = vadd.f32 %v1989, %v1998
        %v2014 = vadd.f32 %v1990, %v1998
        %v2015 = vadd.f32 %v1991, %v1998
        %v2016 = vmax.f32 %v2000, 0.0
        %v2017 = vmax.f32 %v2001, 0.0
        %v2018 = vmax.f32 %v2002, 0.0
        %v2019 = vmax.f32 %v2003, 0.0
        %v2020 = vmax.f32 %v2004, 0.0
        %v2021 = vmax.f32 %v2005, 0.0
        %v2022 = vmax.f32 %v2006, 0.0
        %v2023 = vmax.f32 %v2007, 0.0
        %v2024 = vmax.f32 %v2008, 0.0
        %v2025 = vmax.f32 %v2009, 0.0
        %v2026 = vmax.f32 %v2010, 0.0
        %v2027 = vmax.f32 %v2011, 0.0
        %v2028 = vmax.f32 %v2012, 0.0
        %v2029 = vmax.f32 %v2013, 0.0
        %v2030 = vmax.f32 %v2014, 0.0
        %v2031 = vmax.f32 %v2015, 0.0
        %s2032 = scalar_lea.vmem %s5, 64
        %v2033 = vld [vmem:[%s2032] sm:$0xff]
        %v2034 = vld [vmem:[%s2032 + $0x8] sm:$0xff]
        %v2035 = vld [vmem:[%s2032 + $0x10] sm:$0xff]
        %v2036 = vld [vmem:[%s2032 + $0x18] sm:$0xff]
        %v2037 = vld [vmem:[%s2032 + $0x20] sm:$0xff]
        %v2038 = vld [vmem:[%s2032 + $0x28] sm:$0xff]
        %v2039 = vld [vmem:[%s2032 + $0x30] sm:$0xff]
        %v2040 = vld [vmem:[%s2032 + $0x38] sm:$0xff]
        %s2041 = scalar_lea.vmem %s6, 1
        %v2042 = vld [vmem:[%s2041] sm:$0x1]
        %v2044 = vlaneseq
        %v2045 = vshrl.u32 %v2044, 7
        %v2046 = vsub.s32 0, %v2045
        %v2047 = vrot.slane %v2042, %v2046
        %v2050 = vsel %vm330, %v2016, 0
        %v2053 = vsel %vm330, %v2017, 0
        %v2056 = vsel %vm330, %v2018, 0
        %v2059 = vsel %vm330, %v2019, 0
        %v2062 = vsel %vm330, %v2020, 0
        %v2065 = vsel %vm330, %v2021, 0
        %v2068 = vsel %vm330, %v2022, 0
        %v2071 = vsel %vm330, %v2023, 0
        %v2074 = vsel %vm330, %v2024, 0
        %v2077 = vsel %vm330, %v2025, 0
        %v2080 = vsel %vm330, %v2026, 0
        %v2083 = vsel %vm330, %v2027, 0
        %v2086 = vsel %vm330, %v2028, 0
        %v2089 = vsel %vm330, %v2029, 0
        %v2092 = vsel %vm330, %v2030, 0
        %v2095 = vsel %vm330, %v2031, 0
        %2097 = vmatprep.subr.mxu0 0.0
        %2098 = vmatpush1.msra.mxu0 %v2033
        %2099 = vmatprep.subr.mxu0 0.0
        %2100 = vmatpush1.msra.mxu0 %v2034
        %2101 = vmatprep.subr.mxu0 0.0
        %2102 = vmatpush1.msra.mxu0 %v2035
        %2103 = vmatprep.subr.mxu0 0.0
        %2104 = vmatpush1.msra.mxu0 %v2036
        %2105 = vmatprep.subr.mxu0 0.0
        %2106 = vmatpush1.msra.mxu0 %v2037
        %2107 = vmatprep.subr.mxu0 0.0
        %2108 = vmatpush1.msra.mxu0 %v2038
        %2109 = vmatprep.subr.mxu0 0.0
        %2110 = vmatpush1.msra.mxu0 %v2039
        %2111 = vmatprep.subr.mxu0 0.0
        %2112 = vmatpush1.msra.mxu0 %v2040
        %2113 = vmatprep.subr.mxu0 0.0
        %2114 = vmatpush1.msra.mxu0 0.0
        %2115 = vmatprep.subr.mxu0 0.0
        %2116 = vmatpush1.msra.mxu0 0.0
        %2117 = vmatprep.subr.mxu0 0.0
        %2118 = vmatpush1.msra.mxu0 0.0
        %2119 = vmatprep.subr.mxu0 0.0
        %2120 = vmatpush1.msra.mxu0 0.0
        %2121 = vmatprep.subr.mxu0 0.0
        %2122 = vmatpush1.msra.mxu0 0.0
        %2123 = vmatprep.subr.mxu0 0.0
        %2124 = vmatpush1.msra.mxu0 0.0
        %2125 = vmatprep.subr.mxu0 0.0
        %2126 = vmatpush1.msra.mxu0 0.0
        %2127 = vmatprep.subr.mxu0 0.0
        %2128 = vmatpush1.msra.mxu0 0.0
        %2129 = vmatprep.subr.mxu0 0.0
        %2130 = vmatpush1.msra.mxu0 0.0
        %2131 = vmatprep.subr.mxu0 0.0
        %2132 = vmatpush1.msra.mxu0 0.0
        %2133 = vmatprep.subr.mxu0 0.0
        %2134 = vmatpush1.msra.mxu0 0.0
        %2135 = vmatprep.subr.mxu0 0.0
        %2136 = vmatpush1.msra.mxu0 0.0
        %2137 = vmatprep.subr.mxu0 0.0
        %2138 = vmatpush1.msra.mxu0 0.0
        %2139 = vmatprep.subr.mxu0 0.0
        %2140 = vmatpush1.msra.mxu0 0.0
        %2141 = vmatprep.subr.mxu0 0.0
        %2142 = vmatpush1.msra.mxu0 0.0
        %2143 = vmatprep.subr.mxu0 0.0
        %2144 = vmatpush1.msra.mxu0 0.0
        %2145 = vmatprep.subr.mxu0 0.0
        %2146 = vmatpush1.msra.mxu0 0.0
        %2147 = vmatprep.subr.mxu0 0.0
        %2148 = vmatpush1.msra.mxu0 0.0
        %2149 = vmatprep.subr.mxu0 0.0
        %2150 = vmatpush1.msra.mxu0 0.0
        %2151 = vmatprep.subr.mxu0 0.0
        %2152 = vmatpush1.msra.mxu0 0.0
        %2153 = vmatprep.subr.mxu0 0.0
        %2154 = vmatpush1.msra.mxu0 0.0
        %2155 = vmatprep.subr.mxu0 0.0
        %2156 = vmatpush1.msra.mxu0 0.0
        %2157 = vmatprep.subr.mxu0 0.0
        %2158 = vmatpush1.msra.mxu0 0.0
        %2159 = vmatprep.subr.mxu0 0.0
        %2160 = vmatpush1.msra.mxu0 0.0
        %2161 = vmatprep.mubr.f32.mxu0 0.0
        %2162 = vmatmul.mubr.f32.gmra.mrb[0].mxu0 %v2050
        %v2163 = vpop.f32.mrb[0].mxu0
        %v2164 = vadd.f32 %v2047, %v2163
        %v2165 = vpop.f32.mrb[0].mxu0
        %2166 = vmatprep.mubr.f32.mxu0 0.0
        %2167 = vmatmul.mubr.f32.gmra.mrb[0].mxu0 %v2053
        %v2168 = vpop.f32.mrb[0].mxu0
        %v2169 = vadd.f32 %v2047, %v2168
        %v2170 = vpop.f32.mrb[0].mxu0
        %2171 = vmatprep.mubr.f32.mxu0 0.0
        %2172 = vmatmul.mubr.f32.gmra.mrb[0].mxu0 %v2056
        %v2173 = vpop.f32.mrb[0].mxu0
        %v2174 = vadd.f32 %v2047, %v2173
        %v2175 = vpop.f32.mrb[0].mxu0
        %2176 = vmatprep.mubr.f32.mxu0 0.0
        %2177 = vmatmul.mubr.f32.gmra.mrb[0].mxu0 %v2059
        %v2178 = vpop.f32.mrb[0].mxu0
        %v2179 = vadd.f32 %v2047, %v2178
        %v2180 = vpop.f32.mrb[0].mxu0
        %2181 = vmatprep.mubr.f32.mxu0 0.0
        %2182 = vmatmul.mubr.f32.gmra.mrb[0].mxu0 %v2062
        %v2183 = vpop.f32.mrb[0].mxu0
        %v2184 = vadd.f32 %v2047, %v2183
        %v2185 = vpop.f32.mrb[0].mxu0
        %2186 = vmatprep.mubr.f32.mxu0 0.0
        %2187 = vmatmul.mubr.f32.gmra.mrb[0].mxu0 %v2065
        %v2188 = vpop.f32.mrb[0].mxu0
        %v2189 = vadd.f32 %v2047, %v2188
        %v2190 = vpop.f32.mrb[0].mxu0
        %2191 = vmatprep.mubr.f32.mxu0 0.0
        %2192 = vmatmul.mubr.f32.gmra.mrb[0].mxu0 %v2068
        %v2193 = vpop.f32.mrb[0].mxu0
        %v2194 = vadd.f32 %v2047, %v2193
        %v2195 = vpop.f32.mrb[0].mxu0
        %2196 = vmatprep.mubr.f32.mxu0 0.0
        %2197 = vmatmul.mubr.f32.gmra.mrb[0].mxu0 %v2071
        %v2198 = vpop.f32.mrb[0].mxu0
        %v2199 = vadd.f32 %v2047, %v2198
        %v2200 = vpop.f32.mrb[0].mxu0
        %2201 = vmatprep.mubr.f32.mxu0 0.0
        %2202 = vmatmul.mubr.f32.gmra.mrb[0].mxu0 %v2074
        %v2203 = vpop.f32.mrb[0].mxu0
        %v2204 = vadd.f32 %v2047, %v2203
        %v2205 = vpop.f32.mrb[0].mxu0
        %2206 = vmatprep.mubr.f32.mxu0 0.0
        %2207 = vmatmul.mubr.f32.gmra.mrb[0].mxu0 %v2077
        %v2208 = vpop.f32.mrb[0].mxu0
        %v2209 = vadd.f32 %v2047, %v2208
        %v2210 = vpop.f32.mrb[0].mxu0
        %2211 = vmatprep.mubr.f32.mxu0 0.0
        %2212 = vmatmul.mubr.f32.gmra.mrb[0].mxu0 %v2080
        %v2213 = vpop.f32.mrb[0].mxu0
        %v2214 = vadd.f32 %v2047, %v2213
        %v2215 = vpop.f32.mrb[0].mxu0
        %2216 = vmatprep.mubr.f32.mxu0 0.0
        %2217 = vmatmul.mubr.f32.gmra.mrb[0].mxu0 %v2083
        %v2218 = vpop.f32.mrb[0].mxu0
        %v2219 = vadd.f32 %v2047, %v2218
        %v2220 = vpop.f32.mrb[0].mxu0
        %2221 = vmatprep.mubr.f32.mxu0 0.0
        %2222 = vmatmul.mubr.f32.gmra.mrb[0].mxu0 %v2086
        %v2223 = vpop.f32.mrb[0].mxu0
        %v2224 = vadd.f32 %v2047, %v2223
        %v2225 = vpop.f32.mrb[0].mxu0
        %2226 = vmatprep.mubr.f32.mxu0 0.0
        %2227 = vmatmul.mubr.f32.gmra.mrb[0].mxu0 %v2089
        %v2228 = vpop.f32.mrb[0].mxu0
        %v2229 = vadd.f32 %v2047, %v2228
        %v2230 = vpop.f32.mrb[0].mxu0
        %2231 = vmatprep.mubr.f32.mxu0 0.0
        %2232 = vmatmul.mubr.f32.gmra.mrb[0].mxu0 %v2092
        %v2233 = vpop.f32.mrb[0].mxu0
        %v2234 = vadd.f32 %v2047, %v2233
        %v2235 = vpop.f32.mrb[0].mxu0
        %2236 = vmatprep.mubr.f32.mxu0 0.0
        %2237 = vmatmul.mubr.f32.gmra.mrb[0].mxu0 %v2095
        %v2238 = vpop.f32.mrb[0].mxu0
        %v2239 = vadd.f32 %v2047, %v2238
        %v2240 = vpop.f32.mrb[0].mxu0
        %2241 = vdwg.mxu0
        %v2242 = vmax.f32 %v2164, 0.0
        %v2243 = vmax.f32 %v2169, 0.0
        %v2244 = vmax.f32 %v2174, 0.0
        %v2245 = vmax.f32 %v2179, 0.0
        %v2246 = vmax.f32 %v2184, 0.0
        %v2247 = vmax.f32 %v2189, 0.0
        %v2248 = vmax.f32 %v2194, 0.0
        %v2249 = vmax.f32 %v2199, 0.0
        %v2250 = vmax.f32 %v2204, 0.0
        %v2251 = vmax.f32 %v2209, 0.0
        %v2252 = vmax.f32 %v2214, 0.0
        %v2253 = vmax.f32 %v2219, 0.0
        %v2254 = vmax.f32 %v2224, 0.0
        %v2255 = vmax.f32 %v2229, 0.0
        %v2256 = vmax.f32 %v2234, 0.0
        %v2257 = vmax.f32 %v2239, 0.0
        %2258 = vst.msk [vmem:[#allocation2 + $0x8] sm:$0xff] %vm330, %v2242
        %2259 = vst.msk [vmem:[#allocation2 + $0x10] sm:$0xff] %vm330, %v2243
        %2260 = vst.msk [vmem:[#allocation2 + $0x18] sm:$0xff] %vm330, %v2244
        %2261 = vst.msk [vmem:[#allocation2 + $0x20] sm:$0xff] %vm330, %v2245
        %2262 = vst.msk [vmem:[#allocation2 + $0x28] sm:$0xff] %vm330, %v2246
        %2263 = vst.msk [vmem:[#allocation2 + $0x30] sm:$0xff] %vm330, %v2247
        %2264 = vst.msk [vmem:[#allocation2 + $0x38] sm:$0xff] %vm330, %v2248
        %2265 = vst.msk [vmem:[#allocation2 + $0x40] sm:$0xff] %vm330, %v2249
        %2266 = vst.msk [vmem:[#allocation2 + $0x48] sm:$0xff] %vm330, %v2250
        %2267 = vst.msk [vmem:[#allocation2 + $0x50] sm:$0xff] %vm330, %v2251
        %2268 = vst.msk [vmem:[#allocation2 + $0x58] sm:$0xff] %vm330, %v2252
        %2269 = vst.msk [vmem:[#allocation2 + $0x60] sm:$0xff] %vm330, %v2253
        %2270 = vst.msk [vmem:[#allocation2 + $0x68] sm:$0xff] %vm330, %v2254
        %2271 = vst.msk [vmem:[#allocation2 + $0x70] sm:$0xff] %vm330, %v2255
        %2272 = vst.msk [vmem:[#allocation2 + $0x78] sm:$0xff] %vm330, %v2256
        %2273 = vst.msk [vmem:[#allocation2 + $0x80] sm:$0x1f] %vm348, %v2257
        %v2274 = vld [vmem:[#allocation2 + $0x2] sm:$0xff]
        %v2275 = vld [vmem:[#allocation2 + $0xa] sm:$0xff]
        %v2276 = vld [vmem:[#allocation2 + $0x12] sm:$0xff]
        %v2277 = vld [vmem:[#allocation2 + $0x1a] sm:$0xff]
        %v2278 = vld [vmem:[#allocation2 + $0x22] sm:$0xff]
        %v2279 = vld [vmem:[#allocation2 + $0x2a] sm:$0xff]
        %v2280 = vld [vmem:[#allocation2 + $0x32] sm:$0xff]
        %v2281 = vld [vmem:[#allocation2 + $0x3a] sm:$0xff]
        %v2282 = vld [vmem:[#allocation2 + $0x42] sm:$0xff]
        %v2283 = vld [vmem:[#allocation2 + $0x4a] sm:$0xff]
        %v2284 = vld [vmem:[#allocation2 + $0x52] sm:$0xff]
        %v2285 = vld [vmem:[#allocation2 + $0x5a] sm:$0xff]
        %v2286 = vld [vmem:[#allocation2 + $0x62] sm:$0xff]
        %v2287 = vld [vmem:[#allocation2 + $0x6a] sm:$0xff]
        %v2288 = vld [vmem:[#allocation2 + $0x72] sm:$0xff]
        %v2289 = vld [vmem:[#allocation2 + $0x7a] sm:$0x1f]
        %s2290 = scalar_lea.vmem %s3, 2304
        %v2291 = vld [vmem:[%s2290] sm:$0xff]
        %v2292 = vld [vmem:[%s2290 + $0x8] sm:$0xff]
        %v2293 = vld [vmem:[%s2290 + $0x10] sm:$0xff]
        %v2294 = vld [vmem:[%s2290 + $0x18] sm:$0xff]
        %v2295 = vld [vmem:[%s2290 + $0x20] sm:$0xff]
        %v2296 = vld [vmem:[%s2290 + $0x28] sm:$0xff]
        %v2297 = vld [vmem:[%s2290 + $0x30] sm:$0xff]
        %v2298 = vld [vmem:[%s2290 + $0x38] sm:$0xff]
        %v2299 = vld [vmem:[%s2290 + $0x40] sm:$0xff]
        %v2300 = vld [vmem:[%s2290 + $0x48] sm:$0xff]
        %v2301 = vld [vmem:[%s2290 + $0x50] sm:$0xff]
        %v2302 = vld [vmem:[%s2290 + $0x58] sm:$0xff]
        %v2303 = vld [vmem:[%s2290 + $0x60] sm:$0xff]
        %v2304 = vld [vmem:[%s2290 + $0x68] sm:$0xff]
        %v2305 = vld [vmem:[%s2290 + $0x70] sm:$0xff]
        %v2306 = vld [vmem:[%s2290 + $0x78] sm:$0x1f]
        %v2307 = vmul.f32 %v2274, %v2291
        %v2308 = vmul.f32 %v2275, %v2292
        %v2309 = vmul.f32 %v2276, %v2293
        %v2310 = vmul.f32 %v2277, %v2294
        %v2311 = vmul.f32 %v2278, %v2295
        %v2312 = vmul.f32 %v2279, %v2296
        %v2313 = vmul.f32 %v2280, %v2297
        %v2314 = vmul.f32 %v2281, %v2298
        %v2315 = vmul.f32 %v2282, %v2299
        %v2316 = vmul.f32 %v2283, %v2300
        %v2317 = vmul.f32 %v2284, %v2301
        %v2318 = vmul.f32 %v2285, %v2302
        %v2319 = vmul.f32 %v2286, %v2303
        %v2320 = vmul.f32 %v2287, %v2304
        %v2321 = vmul.f32 %v2288, %v2305
        %v2322 = vmul.f32 %v2289, %v2306
        %v2323 = vld [vmem:[#allocation2 + $0x3] sm:$0xff]
        %v2324 = vld [vmem:[#allocation2 + $0xb] sm:$0xff]
        %v2325 = vld [vmem:[#allocation2 + $0x13] sm:$0xff]
        %v2326 = vld [vmem:[#allocation2 + $0x1b] sm:$0xff]
        %v2327 = vld [vmem:[#allocation2 + $0x23] sm:$0xff]
        %v2328 = vld [vmem:[#allocation2 + $0x2b] sm:$0xff]
        %v2329 = vld [vmem:[#allocation2 + $0x33] sm:$0xff]
        %v2330 = vld [vmem:[#allocation2 + $0x3b] sm:$0xff]
        %v2331 = vld [vmem:[#allocation2 + $0x43] sm:$0xff]
        %v2332 = vld [vmem:[#allocation2 + $0x4b] sm:$0xff]
        %v2333 = vld [vmem:[#allocation2 + $0x53] sm:$0xff]
        %v2334 = vld [vmem:[#allocation2 + $0x5b] sm:$0xff]
        %v2335 = vld [vmem:[#allocation2 + $0x63] sm:$0xff]
        %v2336 = vld [vmem:[#allocation2 + $0x6b] sm:$0xff]
        %v2337 = vld [vmem:[#allocation2 + $0x73] sm:$0xff]
        %v2338 = vld [vmem:[#allocation2 + $0x7b] sm:$0x1f]
        %s2339 = scalar_lea.vmem %s3, 2432
        %v2340 = vld [vmem:[%s2339] sm:$0xff]
        %v2341 = vld [vmem:[%s2339 + $0x8] sm:$0xff]
        %v2342 = vld [vmem:[%s2339 + $0x10] sm:$0xff]
        %v2343 = vld [vmem:[%s2339 + $0x18] sm:$0xff]
        %v2344 = vld [vmem:[%s2339 + $0x20] sm:$0xff]
        %v2345 = vld [vmem:[%s2339 + $0x28] sm:$0xff]
        %v2346 = vld [vmem:[%s2339 + $0x30] sm:$0xff]
        %v2347 = vld [vmem:[%s2339 + $0x38] sm:$0xff]
        %v2348 = vld [vmem:[%s2339 + $0x40] sm:$0xff]
        %v2349 = vld [vmem:[%s2339 + $0x48] sm:$0xff]
        %v2350 = vld [vmem:[%s2339 + $0x50] sm:$0xff]
        %v2351 = vld [vmem:[%s2339 + $0x58] sm:$0xff]
        %v2352 = vld [vmem:[%s2339 + $0x60] sm:$0xff]
        %v2353 = vld [vmem:[%s2339 + $0x68] sm:$0xff]
        %v2354 = vld [vmem:[%s2339 + $0x70] sm:$0xff]
        %v2355 = vld [vmem:[%s2339 + $0x78] sm:$0x1f]
        %v2356 = vmul.f32 %v2323, %v2340
        %v2357 = vmul.f32 %v2324, %v2341
        %v2358 = vmul.f32 %v2325, %v2342
        %v2359 = vmul.f32 %v2326, %v2343
        %v2360 = vmul.f32 %v2327, %v2344
        %v2361 = vmul.f32 %v2328, %v2345
        %v2362 = vmul.f32 %v2329, %v2346
        %v2363 = vmul.f32 %v2330, %v2347
        %v2364 = vmul.f32 %v2331, %v2348
        %v2365 = vmul.f32 %v2332, %v2349
        %v2366 = vmul.f32 %v2333, %v2350
        %v2367 = vmul.f32 %v2334, %v2351
        %v2368 = vmul.f32 %v2335, %v2352
        %v2369 = vmul.f32 %v2336, %v2353
        %v2370 = vmul.f32 %v2337, %v2354
        %v2371 = vmul.f32 %v2338, %v2355
        %v2372 = vadd.f32 %v2307, %v2356
        %v2373 = vadd.f32 %v2308, %v2357
        %v2374 = vadd.f32 %v2309, %v2358
        %v2375 = vadd.f32 %v2310, %v2359
        %v2376 = vadd.f32 %v2311, %v2360
        %v2377 = vadd.f32 %v2312, %v2361
        %v2378 = vadd.f32 %v2313, %v2362
        %v2379 = vadd.f32 %v2314, %v2363
        %v2380 = vadd.f32 %v2315, %v2364
        %v2381 = vadd.f32 %v2316, %v2365
        %v2382 = vadd.f32 %v2317, %v2366
        %v2383 = vadd.f32 %v2318, %v2367
        %v2384 = vadd.f32 %v2319, %v2368
        %v2385 = vadd.f32 %v2320, %v2369
        %v2386 = vadd.f32 %v2321, %v2370
        %v2387 = vadd.f32 %v2322, %v2371
        %v2388 = vld [vmem:[#allocation2 + $0x4] sm:$0xff]
        %v2389 = vld [vmem:[#allocation2 + $0xc] sm:$0xff]
        %v2390 = vld [vmem:[#allocation2 + $0x14] sm:$0xff]
        %v2391 = vld [vmem:[#allocation2 + $0x1c] sm:$0xff]
        %v2392 = vld [vmem:[#allocation2 + $0x24] sm:$0xff]
        %v2393 = vld [vmem:[#allocation2 + $0x2c] sm:$0xff]
        %v2394 = vld [vmem:[#allocation2 + $0x34] sm:$0xff]
        %v2395 = vld [vmem:[#allocation2 + $0x3c] sm:$0xff]
        %v2396 = vld [vmem:[#allocation2 + $0x44] sm:$0xff]
        %v2397 = vld [vmem:[#allocation2 + $0x4c] sm:$0xff]
        %v2398 = vld [vmem:[#allocation2 + $0x54] sm:$0xff]
        %v2399 = vld [vmem:[#allocation2 + $0x5c] sm:$0xff]
        %v2400 = vld [vmem:[#allocation2 + $0x64] sm:$0xff]
        %v2401 = vld [vmem:[#allocation2 + $0x6c] sm:$0xff]
        %v2402 = vld [vmem:[#allocation2 + $0x74] sm:$0xff]
        %v2403 = vld [vmem:[#allocation2 + $0x7c] sm:$0x1f]
        %s2404 = scalar_lea.vmem %s3, 2560
        %v2405 = vld [vmem:[%s2404] sm:$0xff]
        %v2406 = vld [vmem:[%s2404 + $0x8] sm:$0xff]
        %v2407 = vld [vmem:[%s2404 + $0x10] sm:$0xff]
        %v2408 = vld [vmem:[%s2404 + $0x18] sm:$0xff]
        %v2409 = vld [vmem:[%s2404 + $0x20] sm:$0xff]
        %v2410 = vld [vmem:[%s2404 + $0x28] sm:$0xff]
        %v2411 = vld [vmem:[%s2404 + $0x30] sm:$0xff]
        %v2412 = vld [vmem:[%s2404 + $0x38] sm:$0xff]
        %v2413 = vld [vmem:[%s2404 + $0x40] sm:$0xff]
        %v2414 = vld [vmem:[%s2404 + $0x48] sm:$0xff]
        %v2415 = vld [vmem:[%s2404 + $0x50] sm:$0xff]
        %v2416 = vld [vmem:[%s2404 + $0x58] sm:$0xff]
        %v2417 = vld [vmem:[%s2404 + $0x60] sm:$0xff]
        %v2418 = vld [vmem:[%s2404 + $0x68] sm:$0xff]
        %v2419 = vld [vmem:[%s2404 + $0x70] sm:$0xff]
        %v2420 = vld [vmem:[%s2404 + $0x78] sm:$0x1f]
        %v2421 = vmul.f32 %v2388, %v2405
        %v2422 = vmul.f32 %v2389, %v2406
        %v2423 = vmul.f32 %v2390, %v2407
        %v2424 = vmul.f32 %v2391, %v2408
        %v2425 = vmul.f32 %v2392, %v2409
        %v2426 = vmul.f32 %v2393, %v2410
        %v2427 = vmul.f32 %v2394, %v2411
        %v2428 = vmul.f32 %v2395, %v2412
        %v2429 = vmul.f32 %v2396, %v2413
        %v2430 = vmul.f32 %v2397, %v2414
        %v2431 = vmul.f32 %v2398, %v2415
        %v2432 = vmul.f32 %v2399, %v2416
        %v2433 = vmul.f32 %v2400, %v2417
        %v2434 = vmul.f32 %v2401, %v2418
        %v2435 = vmul.f32 %v2402, %v2419
        %v2436 = vmul.f32 %v2403, %v2420
        %v2437 = vadd.f32 %v2372, %v2421
        %v2438 = vadd.f32 %v2373, %v2422
        %v2439 = vadd.f32 %v2374, %v2423
        %v2440 = vadd.f32 %v2375, %v2424
        %v2441 = vadd.f32 %v2376, %v2425
        %v2442 = vadd.f32 %v2377, %v2426
        %v2443 = vadd.f32 %v2378, %v2427
        %v2444 = vadd.f32 %v2379, %v2428
        %v2445 = vadd.f32 %v2380, %v2429
        %v2446 = vadd.f32 %v2381, %v2430
        %v2447 = vadd.f32 %v2382, %v2431
        %v2448 = vadd.f32 %v2383, %v2432
        %v2449 = vadd.f32 %v2384, %v2433
        %v2450 = vadd.f32 %v2385, %v2434
        %v2451 = vadd.f32 %v2386, %v2435
        %v2452 = vadd.f32 %v2387, %v2436
        %v2453 = vld [vmem:[#allocation2 + $0x7] sm:$0xff]
        %v2454 = vld [vmem:[#allocation2 + $0xf] sm:$0xff]
        %v2455 = vld [vmem:[#allocation2 + $0x17] sm:$0xff]
        %v2456 = vld [vmem:[#allocation2 + $0x1f] sm:$0xff]
        %v2457 = vld [vmem:[#allocation2 + $0x27] sm:$0xff]
        %v2458 = vld [vmem:[#allocation2 + $0x2f] sm:$0xff]
        %v2459 = vld [vmem:[#allocation2 + $0x37] sm:$0xff]
        %v2460 = vld [vmem:[#allocation2 + $0x3f] sm:$0xff]
        %v2461 = vld [vmem:[#allocation2 + $0x47] sm:$0xff]
        %v2462 = vld [vmem:[#allocation2 + $0x4f] sm:$0xff]
        %v2463 = vld [vmem:[#allocation2 + $0x57] sm:$0xff]
        %v2464 = vld [vmem:[#allocation2 + $0x5f] sm:$0xff]
        %v2465 = vld [vmem:[#allocation2 + $0x67] sm:$0xff]
        %v2466 = vld [vmem:[#allocation2 + $0x6f] sm:$0xff]
        %v2467 = vld [vmem:[#allocation2 + $0x77] sm:$0xff]
        %v2468 = vld [vmem:[#allocation2 + $0x7f] sm:$0x1f]
        %s2469 = scalar_lea.vmem %s3, 2688
        %v2470 = vld [vmem:[%s2469] sm:$0xff]
        %v2471 = vld [vmem:[%s2469 + $0x8] sm:$0xff]
        %v2472 = vld [vmem:[%s2469 + $0x10] sm:$0xff]
        %v2473 = vld [vmem:[%s2469 + $0x18] sm:$0xff]
        %v2474 = vld [vmem:[%s2469 + $0x20] sm:$0xff]
        %v2475 = vld [vmem:[%s2469 + $0x28] sm:$0xff]
        %v2476 = vld [vmem:[%s2469 + $0x30] sm:$0xff]
        %v2477 = vld [vmem:[%s2469 + $0x38] sm:$0xff]
        %v2478 = vld [vmem:[%s2469 + $0x40] sm:$0xff]
        %v2479 = vld [vmem:[%s2469 + $0x48] sm:$0xff]
        %v2480 = vld [vmem:[%s2469 + $0x50] sm:$0xff]
        %v2481 = vld [vmem:[%s2469 + $0x58] sm:$0xff]
        %v2482 = vld [vmem:[%s2469 + $0x60] sm:$0xff]
        %v2483 = vld [vmem:[%s2469 + $0x68] sm:$0xff]
        %v2484 = vld [vmem:[%s2469 + $0x70] sm:$0xff]
        %v2485 = vld [vmem:[%s2469 + $0x78] sm:$0x1f]
        %v2486 = vmul.f32 %v2453, %v2470
        %v2487 = vmul.f32 %v2454, %v2471
        %v2488 = vmul.f32 %v2455, %v2472
        %v2489 = vmul.f32 %v2456, %v2473
        %v2490 = vmul.f32 %v2457, %v2474
        %v2491 = vmul.f32 %v2458, %v2475
        %v2492 = vmul.f32 %v2459, %v2476
        %v2493 = vmul.f32 %v2460, %v2477
        %v2494 = vmul.f32 %v2461, %v2478
        %v2495 = vmul.f32 %v2462, %v2479
        %v2496 = vmul.f32 %v2463, %v2480
        %v2497 = vmul.f32 %v2464, %v2481
        %v2498 = vmul.f32 %v2465, %v2482
        %v2499 = vmul.f32 %v2466, %v2483
        %v2500 = vmul.f32 %v2467, %v2484
        %v2501 = vmul.f32 %v2468, %v2485
        %v2502 = vadd.f32 %v2437, %v2486
        %v2503 = vadd.f32 %v2438, %v2487
        %v2504 = vadd.f32 %v2439, %v2488
        %v2505 = vadd.f32 %v2440, %v2489
        %v2506 = vadd.f32 %v2441, %v2490
        %v2507 = vadd.f32 %v2442, %v2491
        %v2508 = vadd.f32 %v2443, %v2492
        %v2509 = vadd.f32 %v2444, %v2493
        %v2510 = vadd.f32 %v2445, %v2494
        %v2511 = vadd.f32 %v2446, %v2495
        %v2512 = vadd.f32 %v2447, %v2496
        %v2513 = vadd.f32 %v2448, %v2497
        %v2514 = vadd.f32 %v2449, %v2498
        %v2515 = vadd.f32 %v2450, %v2499
        %v2516 = vadd.f32 %v2451, %v2500
        %v2517 = vadd.f32 %v2452, %v2501
        %v2518 = vld [vmem:[#allocation2 + $0x8] sm:$0xff]
        %v2519 = vld [vmem:[#allocation2 + $0x10] sm:$0xff]
        %v2520 = vld [vmem:[#allocation2 + $0x18] sm:$0xff]
        %v2521 = vld [vmem:[#allocation2 + $0x20] sm:$0xff]
        %v2522 = vld [vmem:[#allocation2 + $0x28] sm:$0xff]
        %v2523 = vld [vmem:[#allocation2 + $0x30] sm:$0xff]
        %v2524 = vld [vmem:[#allocation2 + $0x38] sm:$0xff]
        %v2525 = vld [vmem:[#allocation2 + $0x40] sm:$0xff]
        %v2526 = vld [vmem:[#allocation2 + $0x48] sm:$0xff]
        %v2527 = vld [vmem:[#allocation2 + $0x50] sm:$0xff]
        %v2528 = vld [vmem:[#allocation2 + $0x58] sm:$0xff]
        %v2529 = vld [vmem:[#allocation2 + $0x60] sm:$0xff]
        %v2530 = vld [vmem:[#allocation2 + $0x68] sm:$0xff]
        %v2531 = vld [vmem:[#allocation2 + $0x70] sm:$0xff]
        %v2532 = vld [vmem:[#allocation2 + $0x78] sm:$0xff]
        %v2533 = vld [vmem:[#allocation2 + $0x80] sm:$0x1f]
        %s2534 = scalar_lea.vmem %s3, 2816
        %v2535 = vld [vmem:[%s2534] sm:$0xff]
        %v2536 = vld [vmem:[%s2534 + $0x8] sm:$0xff]
        %v2537 = vld [vmem:[%s2534 + $0x10] sm:$0xff]
        %v2538 = vld [vmem:[%s2534 + $0x18] sm:$0xff]
        %v2539 = vld [vmem:[%s2534 + $0x20] sm:$0xff]
        %v2540 = vld [vmem:[%s2534 + $0x28] sm:$0xff]
        %v2541 = vld [vmem:[%s2534 + $0x30] sm:$0xff]
        %v2542 = vld [vmem:[%s2534 + $0x38] sm:$0xff]
        %v2543 = vld [vmem:[%s2534 + $0x40] sm:$0xff]
        %v2544 = vld [vmem:[%s2534 + $0x48] sm:$0xff]
        %v2545 = vld [vmem:[%s2534 + $0x50] sm:$0xff]
        %v2546 = vld [vmem:[%s2534 + $0x58] sm:$0xff]
        %v2547 = vld [vmem:[%s2534 + $0x60] sm:$0xff]
        %v2548 = vld [vmem:[%s2534 + $0x68] sm:$0xff]
        %v2549 = vld [vmem:[%s2534 + $0x70] sm:$0xff]
        %v2550 = vld [vmem:[%s2534 + $0x78] sm:$0x1f]
        %v2551 = vmul.f32 %v2518, %v2535
        %v2552 = vmul.f32 %v2519, %v2536
        %v2553 = vmul.f32 %v2520, %v2537
        %v2554 = vmul.f32 %v2521, %v2538
        %v2555 = vmul.f32 %v2522, %v2539
        %v2556 = vmul.f32 %v2523, %v2540
        %v2557 = vmul.f32 %v2524, %v2541
        %v2558 = vmul.f32 %v2525, %v2542
        %v2559 = vmul.f32 %v2526, %v2543
        %v2560 = vmul.f32 %v2527, %v2544
        %v2561 = vmul.f32 %v2528, %v2545
        %v2562 = vmul.f32 %v2529, %v2546
        %v2563 = vmul.f32 %v2530, %v2547
        %v2564 = vmul.f32 %v2531, %v2548
        %v2565 = vmul.f32 %v2532, %v2549
        %v2566 = vmul.f32 %v2533, %v2550
        %v2567 = vadd.f32 %v2502, %v2551
        %v2568 = vadd.f32 %v2503, %v2552
        %v2569 = vadd.f32 %v2504, %v2553
        %v2570 = vadd.f32 %v2505, %v2554
        %v2571 = vadd.f32 %v2506, %v2555
        %v2572 = vadd.f32 %v2507, %v2556
        %v2573 = vadd.f32 %v2508, %v2557
        %v2574 = vadd.f32 %v2509, %v2558
        %v2575 = vadd.f32 %v2510, %v2559
        %v2576 = vadd.f32 %v2511, %v2560
        %v2577 = vadd.f32 %v2512, %v2561
        %v2578 = vadd.f32 %v2513, %v2562
        %v2579 = vadd.f32 %v2514, %v2563
        %v2580 = vadd.f32 %v2515, %v2564
        %v2581 = vadd.f32 %v2516, %v2565
        %v2582 = vadd.f32 %v2517, %v2566
        %v2583 = vld [vmem:[#allocation2 + $0x9] sm:$0xff]
        %v2584 = vld [vmem:[#allocation2 + $0x11] sm:$0xff]
        %v2585 = vld [vmem:[#allocation2 + $0x19] sm:$0xff]
        %v2586 = vld [vmem:[#allocation2 + $0x21] sm:$0xff]
        %v2587 = vld [vmem:[#allocation2 + $0x29] sm:$0xff]
        %v2588 = vld [vmem:[#allocation2 + $0x31] sm:$0xff]
        %v2589 = vld [vmem:[#allocation2 + $0x39] sm:$0xff]
        %v2590 = vld [vmem:[#allocation2 + $0x41] sm:$0xff]
        %v2591 = vld [vmem:[#allocation2 + $0x49] sm:$0xff]
        %v2592 = vld [vmem:[#allocation2 + $0x51] sm:$0xff]
        %v2593 = vld [vmem:[#allocation2 + $0x59] sm:$0xff]
        %v2594 = vld [vmem:[#allocation2 + $0x61] sm:$0xff]
        %v2595 = vld [vmem:[#allocation2 + $0x69] sm:$0xff]
        %v2596 = vld [vmem:[#allocation2 + $0x71] sm:$0xff]
        %v2597 = vld [vmem:[#allocation2 + $0x79] sm:$0xff]
        %v2598 = vld [vmem:[#allocation2 + $0x81] sm:$0x1f]
        %s2599 = scalar_lea.vmem %s3, 2944
        %v2600 = vld [vmem:[%s2599] sm:$0xff]
        %v2601 = vld [vmem:[%s2599 + $0x8] sm:$0xff]
        %v2602 = vld [vmem:[%s2599 + $0x10] sm:$0xff]
        %v2603 = vld [vmem:[%s2599 + $0x18] sm:$0xff]
        %v2604 = vld [vmem:[%s2599 + $0x20] sm:$0xff]
        %v2605 = vld [vmem:[%s2599 + $0x28] sm:$0xff]
        %v2606 = vld [vmem:[%s2599 + $0x30] sm:$0xff]
        %v2607 = vld [vmem:[%s2599 + $0x38] sm:$0xff]
        %v2608 = vld [vmem:[%s2599 + $0x40] sm:$0xff]
        %v2609 = vld [vmem:[%s2599 + $0x48] sm:$0xff]
        %v2610 = vld [vmem:[%s2599 + $0x50] sm:$0xff]
        %v2611 = vld [vmem:[%s2599 + $0x58] sm:$0xff]
        %v2612 = vld [vmem:[%s2599 + $0x60] sm:$0xff]
        %v2613 = vld [vmem:[%s2599 + $0x68] sm:$0xff]
        %v2614 = vld [vmem:[%s2599 + $0x70] sm:$0xff]
        %v2615 = vld [vmem:[%s2599 + $0x78] sm:$0x1f]
        %v2616 = vmul.f32 %v2583, %v2600
        %v2617 = vmul.f32 %v2584, %v2601
        %v2618 = vmul.f32 %v2585, %v2602
        %v2619 = vmul.f32 %v2586, %v2603
        %v2620 = vmul.f32 %v2587, %v2604
        %v2621 = vmul.f32 %v2588, %v2605
        %v2622 = vmul.f32 %v2589, %v2606
        %v2623 = vmul.f32 %v2590, %v2607
        %v2624 = vmul.f32 %v2591, %v2608
        %v2625 = vmul.f32 %v2592, %v2609
        %v2626 = vmul.f32 %v2593, %v2610
        %v2627 = vmul.f32 %v2594, %v2611
        %v2628 = vmul.f32 %v2595, %v2612
        %v2629 = vmul.f32 %v2596, %v2613
        %v2630 = vmul.f32 %v2597, %v2614
        %v2631 = vmul.f32 %v2598, %v2615
        %v2632 = vadd.f32 %v2567, %v2616
        %v2633 = vadd.f32 %v2568, %v2617
        %v2634 = vadd.f32 %v2569, %v2618
        %v2635 = vadd.f32 %v2570, %v2619
        %v2636 = vadd.f32 %v2571, %v2620
        %v2637 = vadd.f32 %v2572, %v2621
        %v2638 = vadd.f32 %v2573, %v2622
        %v2639 = vadd.f32 %v2574, %v2623
        %v2640 = vadd.f32 %v2575, %v2624
        %v2641 = vadd.f32 %v2576, %v2625
        %v2642 = vadd.f32 %v2577, %v2626
        %v2643 = vadd.f32 %v2578, %v2627
        %v2644 = vadd.f32 %v2579, %v2628
        %v2645 = vadd.f32 %v2580, %v2629
        %v2646 = vadd.f32 %v2581, %v2630
        %v2647 = vadd.f32 %v2582, %v2631
        %v2648 = vld [vmem:[#allocation2 + $0x7c] sm:$0xff]
        %v2649 = vld [vmem:[#allocation2 + $0x84] sm:$0x1f]
        %s2650 = scalar_lea.vmem %s3, 3072
        %v2651 = vld [vmem:[%s2650] sm:$0xff]
        %v2652 = vld [vmem:[%s2650 + $0x8] sm:$0xff]
        %v2653 = vld [vmem:[%s2650 + $0x10] sm:$0xff]
        %v2654 = vld [vmem:[%s2650 + $0x18] sm:$0xff]
        %v2655 = vld [vmem:[%s2650 + $0x20] sm:$0xff]
        %v2656 = vld [vmem:[%s2650 + $0x28] sm:$0xff]
        %v2657 = vld [vmem:[%s2650 + $0x30] sm:$0xff]
        %v2658 = vld [vmem:[%s2650 + $0x38] sm:$0xff]
        %v2659 = vld [vmem:[%s2650 + $0x40] sm:$0xff]
        %v2660 = vld [vmem:[%s2650 + $0x48] sm:$0xff]
        %v2661 = vld [vmem:[%s2650 + $0x50] sm:$0xff]
        %v2662 = vld [vmem:[%s2650 + $0x58] sm:$0xff]
        %v2663 = vld [vmem:[%s2650 + $0x60] sm:$0xff]
        %v2664 = vld [vmem:[%s2650 + $0x68] sm:$0xff]
        %v2665 = vld [vmem:[%s2650 + $0x70] sm:$0xff]
        %v2666 = vld [vmem:[%s2650 + $0x78] sm:$0x1f]
        %v2667 = vmul.f32 %v2389, %v2651
        %v2668 = vmul.f32 %v2390, %v2652
        %v2669 = vmul.f32 %v2391, %v2653
        %v2670 = vmul.f32 %v2392, %v2654
        %v2671 = vmul.f32 %v2393, %v2655
        %v2672 = vmul.f32 %v2394, %v2656
        %v2673 = vmul.f32 %v2395, %v2657
        %v2674 = vmul.f32 %v2396, %v2658
        %v2675 = vmul.f32 %v2397, %v2659
        %v2676 = vmul.f32 %v2398, %v2660
        %v2677 = vmul.f32 %v2399, %v2661
        %v2678 = vmul.f32 %v2400, %v2662
        %v2679 = vmul.f32 %v2401, %v2663
        %v2680 = vmul.f32 %v2402, %v2664
        %v2681 = vmul.f32 %v2648, %v2665
        %v2682 = vmul.f32 %v2649, %v2666
        %v2683 = vadd.f32 %v2632, %v2667
        %v2684 = vadd.f32 %v2633, %v2668
        %v2685 = vadd.f32 %v2634, %v2669
        %v2686 = vadd.f32 %v2635, %v2670
        %v2687 = vadd.f32 %v2636, %v2671
        %v2688 = vadd.f32 %v2637, %v2672
        %v2689 = vadd.f32 %v2638, %v2673
        %v2690 = vadd.f32 %v2639, %v2674
        %v2691 = vadd.f32 %v2640, %v2675
        %v2692 = vadd.f32 %v2641, %v2676
        %v2693 = vadd.f32 %v2642, %v2677
        %v2694 = vadd.f32 %v2643, %v2678
        %v2695 = vadd.f32 %v2644, %v2679
        %v2696 = vadd.f32 %v2645, %v2680
        %v2697 = vadd.f32 %v2646, %v2681
        %v2698 = vadd.f32 %v2647, %v2682
        %v2699 = vld [vmem:[#allocation2 + $0xd] sm:$0xff]
        %v2700 = vld [vmem:[#allocation2 + $0x15] sm:$0xff]
        %v2701 = vld [vmem:[#allocation2 + $0x1d] sm:$0xff]
        %v2702 = vld [vmem:[#allocation2 + $0x25] sm:$0xff]
        %v2703 = vld [vmem:[#allocation2 + $0x2d] sm:$0xff]
        %v2704 = vld [vmem:[#allocation2 + $0x35] sm:$0xff]
        %v2705 = vld [vmem:[#allocation2 + $0x3d] sm:$0xff]
        %v2706 = vld [vmem:[#allocation2 + $0x45] sm:$0xff]
        %v2707 = vld [vmem:[#allocation2 + $0x4d] sm:$0xff]
        %v2708 = vld [vmem:[#allocation2 + $0x55] sm:$0xff]
        %v2709 = vld [vmem:[#allocation2 + $0x5d] sm:$0xff]
        %v2710 = vld [vmem:[#allocation2 + $0x65] sm:$0xff]
        %v2711 = vld [vmem:[#allocation2 + $0x6d] sm:$0xff]
        %v2712 = vld [vmem:[#allocation2 + $0x75] sm:$0xff]
        %v2713 = vld [vmem:[#allocation2 + $0x7d] sm:$0xff]
        %v2714 = vld [vmem:[#allocation2 + $0x85] sm:$0x1f]
        %s2715 = scalar_lea.vmem %s3, 3200
        %v2716 = vld [vmem:[%s2715] sm:$0xff]
        %v2717 = vld [vmem:[%s2715 + $0x8] sm:$0xff]
        %v2718 = vld [vmem:[%s2715 + $0x10] sm:$0xff]
        %v2719 = vld [vmem:[%s2715 + $0x18] sm:$0xff]
        %v2720 = vld [vmem:[%s2715 + $0x20] sm:$0xff]
        %v2721 = vld [vmem:[%s2715 + $0x28] sm:$0xff]
        %v2722 = vld [vmem:[%s2715 + $0x30] sm:$0xff]
        %v2723 = vld [vmem:[%s2715 + $0x38] sm:$0xff]
        %v2724 = vld [vmem:[%s2715 + $0x40] sm:$0xff]
        %v2725 = vld [vmem:[%s2715 + $0x48] sm:$0xff]
        %v2726 = vld [vmem:[%s2715 + $0x50] sm:$0xff]
        %v2727 = vld [vmem:[%s2715 + $0x58] sm:$0xff]
        %v2728 = vld [vmem:[%s2715 + $0x60] sm:$0xff]
        %v2729 = vld [vmem:[%s2715 + $0x68] sm:$0xff]
        %v2730 = vld [vmem:[%s2715 + $0x70] sm:$0xff]
        %v2731 = vld [vmem:[%s2715 + $0x78] sm:$0x1f]
        %v2732 = vmul.f32 %v2699, %v2716
        %v2733 = vmul.f32 %v2700, %v2717
        %v2734 = vmul.f32 %v2701, %v2718
        %v2735 = vmul.f32 %v2702, %v2719
        %v2736 = vmul.f32 %v2703, %v2720
        %v2737 = vmul.f32 %v2704, %v2721
        %v2738 = vmul.f32 %v2705, %v2722
        %v2739 = vmul.f32 %v2706, %v2723
        %v2740 = vmul.f32 %v2707, %v2724
        %v2741 = vmul.f32 %v2708, %v2725
        %v2742 = vmul.f32 %v2709, %v2726
        %v2743 = vmul.f32 %v2710, %v2727
        %v2744 = vmul.f32 %v2711, %v2728
        %v2745 = vmul.f32 %v2712, %v2729
        %v2746 = vmul.f32 %v2713, %v2730
        %v2747 = vmul.f32 %v2714, %v2731
        %v2748 = vadd.f32 %v2683, %v2732
        %v2749 = vadd.f32 %v2684, %v2733
        %v2750 = vadd.f32 %v2685, %v2734
        %v2751 = vadd.f32 %v2686, %v2735
        %v2752 = vadd.f32 %v2687, %v2736
        %v2753 = vadd.f32 %v2688, %v2737
        %v2754 = vadd.f32 %v2689, %v2738
        %v2755 = vadd.f32 %v2690, %v2739
        %v2756 = vadd.f32 %v2691, %v2740
        %v2757 = vadd.f32 %v2692, %v2741
        %v2758 = vadd.f32 %v2693, %v2742
        %v2759 = vadd.f32 %v2694, %v2743
        %v2760 = vadd.f32 %v2695, %v2744
        %v2761 = vadd.f32 %v2696, %v2745
        %v2762 = vadd.f32 %v2697, %v2746
        %v2763 = vadd.f32 %v2698, %v2747
        %v2764 = vld [vmem:[#allocation2 + $0xe] sm:$0xff]
        %v2765 = vld [vmem:[#allocation2 + $0x16] sm:$0xff]
        %v2766 = vld [vmem:[#allocation2 + $0x1e] sm:$0xff]
        %v2767 = vld [vmem:[#allocation2 + $0x26] sm:$0xff]
        %v2768 = vld [vmem:[#allocation2 + $0x2e] sm:$0xff]
        %v2769 = vld [vmem:[#allocation2 + $0x36] sm:$0xff]
        %v2770 = vld [vmem:[#allocation2 + $0x3e] sm:$0xff]
        %v2771 = vld [vmem:[#allocation2 + $0x46] sm:$0xff]
        %v2772 = vld [vmem:[#allocation2 + $0x4e] sm:$0xff]
        %v2773 = vld [vmem:[#allocation2 + $0x56] sm:$0xff]
        %v2774 = vld [vmem:[#allocation2 + $0x5e] sm:$0xff]
        %v2775 = vld [vmem:[#allocation2 + $0x66] sm:$0xff]
        %v2776 = vld [vmem:[#allocation2 + $0x6e] sm:$0xff]
        %v2777 = vld [vmem:[#allocation2 + $0x76] sm:$0xff]
        %v2778 = vld [vmem:[#allocation2 + $0x7e] sm:$0xff]
        %v2779 = vld [vmem:[#allocation2 + $0x86] sm:$0x1f]
        %s2780 = scalar_lea.vmem %s3, 3328
        %v2781 = vld [vmem:[%s2780] sm:$0xff]
        %v2782 = vld [vmem:[%s2780 + $0x8] sm:$0xff]
        %v2783 = vld [vmem:[%s2780 + $0x10] sm:$0xff]
        %v2784 = vld [vmem:[%s2780 + $0x18] sm:$0xff]
        %v2785 = vld [vmem:[%s2780 + $0x20] sm:$0xff]
        %v2786 = vld [vmem:[%s2780 + $0x28] sm:$0xff]
        %v2787 = vld [vmem:[%s2780 + $0x30] sm:$0xff]
        %v2788 = vld [vmem:[%s2780 + $0x38] sm:$0xff]
        %v2789 = vld [vmem:[%s2780 + $0x40] sm:$0xff]
        %v2790 = vld [vmem:[%s2780 + $0x48] sm:$0xff]
        %v2791 = vld [vmem:[%s2780 + $0x50] sm:$0xff]
        %v2792 = vld [vmem:[%s2780 + $0x58] sm:$0xff]
        %v2793 = vld [vmem:[%s2780 + $0x60] sm:$0xff]
        %v2794 = vld [vmem:[%s2780 + $0x68] sm:$0xff]
        %v2795 = vld [vmem:[%s2780 + $0x70] sm:$0xff]
        %v2796 = vld [vmem:[%s2780 + $0x78] sm:$0x1f]
        %v2797 = vmul.f32 %v2764, %v2781
        %v2798 = vmul.f32 %v2765, %v2782
        %v2799 = vmul.f32 %v2766, %v2783
        %v2800 = vmul.f32 %v2767, %v2784
        %v2801 = vmul.f32 %v2768, %v2785
        %v2802 = vmul.f32 %v2769, %v2786
        %v2803 = vmul.f32 %v2770, %v2787
        %v2804 = vmul.f32 %v2771, %v2788
        %v2805 = vmul.f32 %v2772, %v2789
        %v2806 = vmul.f32 %v2773, %v2790
        %v2807 = vmul.f32 %v2774, %v2791
        %v2808 = vmul.f32 %v2775, %v2792
        %v2809 = vmul.f32 %v2776, %v2793
        %v2810 = vmul.f32 %v2777, %v2794
        %v2811 = vmul.f32 %v2778, %v2795
        %v2812 = vmul.f32 %v2779, %v2796
        %v2813 = vadd.f32 %v2748, %v2797
        %v2814 = vadd.f32 %v2749, %v2798
        %v2815 = vadd.f32 %v2750, %v2799
        %v2816 = vadd.f32 %v2751, %v2800
        %v2817 = vadd.f32 %v2752, %v2801
        %v2818 = vadd.f32 %v2753, %v2802
        %v2819 = vadd.f32 %v2754, %v2803
        %v2820 = vadd.f32 %v2755, %v2804
        %v2821 = vadd.f32 %v2756, %v2805
        %v2822 = vadd.f32 %v2757, %v2806
        %v2823 = vadd.f32 %v2758, %v2807
        %v2824 = vadd.f32 %v2759, %v2808
        %v2825 = vadd.f32 %v2760, %v2809
        %v2826 = vadd.f32 %v2761, %v2810
        %v2827 = vadd.f32 %v2762, %v2811
        %v2828 = vadd.f32 %v2763, %v2812
        %s2829 = scalar_lea.vmem %s4, 2
        %v2830 = vld [vmem:[%s2829] sm:$0x1]
        %v2832 = vlaneseq
        %v2833 = vshrl.u32 %v2832, 7
        %v2834 = vsub.s32 0, %v2833
        %v2835 = vrot.slane %v2830, %v2834
        %v2837 = vadd.f32 %v2813, %v2835
        %v2838 = vadd.f32 %v2814, %v2835
        %v2839 = vadd.f32 %v2815, %v2835
        %v2840 = vadd.f32 %v2816, %v2835
        %v2841 = vadd.f32 %v2817, %v2835
        %v2842 = vadd.f32 %v2818, %v2835
        %v2843 = vadd.f32 %v2819, %v2835
        %v2844 = vadd.f32 %v2820, %v2835
        %v2845 = vadd.f32 %v2821, %v2835
        %v2846 = vadd.f32 %v2822, %v2835
        %v2847 = vadd.f32 %v2823, %v2835
        %v2848 = vadd.f32 %v2824, %v2835
        %v2849 = vadd.f32 %v2825, %v2835
        %v2850 = vadd.f32 %v2826, %v2835
        %v2851 = vadd.f32 %v2827, %v2835
        %v2852 = vadd.f32 %v2828, %v2835
        %v2853 = vmax.f32 %v2837, 0.0
        %v2854 = vmax.f32 %v2838, 0.0
        %v2855 = vmax.f32 %v2839, 0.0
        %v2856 = vmax.f32 %v2840, 0.0
        %v2857 = vmax.f32 %v2841, 0.0
        %v2858 = vmax.f32 %v2842, 0.0
        %v2859 = vmax.f32 %v2843, 0.0
        %v2860 = vmax.f32 %v2844, 0.0
        %v2861 = vmax.f32 %v2845, 0.0
        %v2862 = vmax.f32 %v2846, 0.0
        %v2863 = vmax.f32 %v2847, 0.0
        %v2864 = vmax.f32 %v2848, 0.0
        %v2865 = vmax.f32 %v2849, 0.0
        %v2866 = vmax.f32 %v2850, 0.0
        %v2867 = vmax.f32 %v2851, 0.0
        %v2868 = vmax.f32 %v2852, 0.0
        %s2869 = scalar_lea.vmem %s5, 128
        %v2870 = vld [vmem:[%s2869] sm:$0xff]
        %v2871 = vld [vmem:[%s2869 + $0x8] sm:$0xff]
        %v2872 = vld [vmem:[%s2869 + $0x10] sm:$0xff]
        %v2873 = vld [vmem:[%s2869 + $0x18] sm:$0xff]
        %v2874 = vld [vmem:[%s2869 + $0x20] sm:$0xff]
        %v2875 = vld [vmem:[%s2869 + $0x28] sm:$0xff]
        %v2876 = vld [vmem:[%s2869 + $0x30] sm:$0xff]
        %v2877 = vld [vmem:[%s2869 + $0x38] sm:$0xff]
        %s2878 = scalar_lea.vmem %s6, 2
        %v2879 = vld [vmem:[%s2878] sm:$0x1]
        %v2881 = vlaneseq
        %v2882 = vshrl.u32 %v2881, 7
        %v2883 = vsub.s32 0, %v2882
        %v2884 = vrot.slane %v2879, %v2883
        %v2887 = vsel %vm330, %v2853, 0
        %v2890 = vsel %vm330, %v2854, 0
        %v2893 = vsel %vm330, %v2855, 0
        %v2896 = vsel %vm330, %v2856, 0
        %v2899 = vsel %vm330, %v2857, 0
        %v2902 = vsel %vm330, %v2858, 0
        %v2905 = vsel %vm330, %v2859, 0
        %v2908 = vsel %vm330, %v2860, 0
        %v2911 = vsel %vm330, %v2861, 0
        %v2914 = vsel %vm330, %v2862, 0
        %v2917 = vsel %vm330, %v2863, 0
        %v2920 = vsel %vm330, %v2864, 0
        %v2923 = vsel %vm330, %v2865, 0
        %v2926 = vsel %vm330, %v2866, 0
        %v2929 = vsel %vm330, %v2867, 0
        %v2932 = vsel %vm330, %v2868, 0
        %2934 = vmatprep.subr.mxu0 0.0
        %2935 = vmatpush1.msra.mxu0 %v2870
        %2936 = vmatprep.subr.mxu0 0.0
        %2937 = vmatpush1.msra.mxu0 %v2871
        %2938 = vmatprep.subr.mxu0 0.0
        %2939 = vmatpush1.msra.mxu0 %v2872
        %2940 = vmatprep.subr.mxu0 0.0
        %2941 = vmatpush1.msra.mxu0 %v2873
        %2942 = vmatprep.subr.mxu0 0.0
        %2943 = vmatpush1.msra.mxu0 %v2874
        %2944 = vmatprep.subr.mxu0 0.0
        %2945 = vmatpush1.msra.mxu0 %v2875
        %2946 = vmatprep.subr.mxu0 0.0
        %2947 = vmatpush1.msra.mxu0 %v2876
        %2948 = vmatprep.subr.mxu0 0.0
        %2949 = vmatpush1.msra.mxu0 %v2877
        %2950 = vmatprep.subr.mxu0 0.0
        %2951 = vmatpush1.msra.mxu0 0.0
        %2952 = vmatprep.subr.mxu0 0.0
        %2953 = vmatpush1.msra.mxu0 0.0
        %2954 = vmatprep.subr.mxu0 0.0
        %2955 = vmatpush1.msra.mxu0 0.0
        %2956 = vmatprep.subr.mxu0 0.0
        %2957 = vmatpush1.msra.mxu0 0.0
        %2958 = vmatprep.subr.mxu0 0.0
        %2959 = vmatpush1.msra.mxu0 0.0
        %2960 = vmatprep.subr.mxu0 0.0
        %2961 = vmatpush1.msra.mxu0 0.0
        %2962 = vmatprep.subr.mxu0 0.0
        %2963 = vmatpush1.msra.mxu0 0.0
        %2964 = vmatprep.subr.mxu0 0.0
        %2965 = vmatpush1.msra.mxu0 0.0
        %2966 = vmatprep.subr.mxu0 0.0
        %2967 = vmatpush1.msra.mxu0 0.0
        %2968 = vmatprep.subr.mxu0 0.0
        %2969 = vmatpush1.msra.mxu0 0.0
        %2970 = vmatprep.subr.mxu0 0.0
        %2971 = vmatpush1.msra.mxu0 0.0
        %2972 = vmatprep.subr.mxu0 0.0
        %2973 = vmatpush1.msra.mxu0 0.0
        %2974 = vmatprep.subr.mxu0 0.0
        %2975 = vmatpush1.msra.mxu0 0.0
        %2976 = vmatprep.subr.mxu0 0.0
        %2977 = vmatpush1.msra.mxu0 0.0
        %2978 = vmatprep.subr.mxu0 0.0
        %2979 = vmatpush1.msra.mxu0 0.0
        %2980 = vmatprep.subr.mxu0 0.0
        %2981 = vmatpush1.msra.mxu0 0.0
        %2982 = vmatprep.subr.mxu0 0.0
        %2983 = vmatpush1.msra.mxu0 0.0
        %2984 = vmatprep.subr.mxu0 0.0
        %2985 = vmatpush1.msra.mxu0 0.0
        %2986 = vmatprep.subr.mxu0 0.0
        %2987 = vmatpush1.msra.mxu0 0.0
        %2988 = vmatprep.subr.mxu0 0.0
        %2989 = vmatpush1.msra.mxu0 0.0
        %2990 = vmatprep.subr.mxu0 0.0
        %2991 = vmatpush1.msra.mxu0 0.0
        %2992 = vmatprep.subr.mxu0 0.0
        %2993 = vmatpush1.msra.mxu0 0.0
        %2994 = vmatprep.subr.mxu0 0.0
        %2995 = vmatpush1.msra.mxu0 0.0
        %2996 = vmatprep.subr.mxu0 0.0
        %2997 = vmatpush1.msra.mxu0 0.0
        %2998 = vmatprep.mubr.f32.mxu0 0.0
        %2999 = vmatmul.mubr.f32.gmra.mrb[0].mxu0 %v2887
        %v3000 = vpop.f32.mrb[0].mxu0
        %v3001 = vadd.f32 %v2884, %v3000
        %v3002 = vpop.f32.mrb[0].mxu0
        %3003 = vmatprep.mubr.f32.mxu0 0.0
        %3004 = vmatmul.mubr.f32.gmra.mrb[0].mxu0 %v2890
        %v3005 = vpop.f32.mrb[0].mxu0
        %v3006 = vadd.f32 %v2884, %v3005
        %v3007 = vpop.f32.mrb[0].mxu0
        %3008 = vmatprep.mubr.f32.mxu0 0.0
        %3009 = vmatmul.mubr.f32.gmra.mrb[0].mxu0 %v2893
        %v3010 = vpop.f32.mrb[0].mxu0
        %v3011 = vadd.f32 %v2884, %v3010
        %v3012 = vpop.f32.mrb[0].mxu0
        %3013 = vmatprep.mubr.f32.mxu0 0.0
        %3014 = vmatmul.mubr.f32.gmra.mrb[0].mxu0 %v2896
        %v3015 = vpop.f32.mrb[0].mxu0
        %v3016 = vadd.f32 %v2884, %v3015
        %v3017 = vpop.f32.mrb[0].mxu0
        %3018 = vmatprep.mubr.f32.mxu0 0.0
        %3019 = vmatmul.mubr.f32.gmra.mrb[0].mxu0 %v2899
        %v3020 = vpop.f32.mrb[0].mxu0
        %v3021 = vadd.f32 %v2884, %v3020
        %v3022 = vpop.f32.mrb[0].mxu0
        %3023 = vmatprep.mubr.f32.mxu0 0.0
        %3024 = vmatmul.mubr.f32.gmra.mrb[0].mxu0 %v2902
        %v3025 = vpop.f32.mrb[0].mxu0
        %v3026 = vadd.f32 %v2884, %v3025
        %v3027 = vpop.f32.mrb[0].mxu0
        %3028 = vmatprep.mubr.f32.mxu0 0.0
        %3029 = vmatmul.mubr.f32.gmra.mrb[0].mxu0 %v2905
        %v3030 = vpop.f32.mrb[0].mxu0
        %v3031 = vadd.f32 %v2884, %v3030
        %v3032 = vpop.f32.mrb[0].mxu0
        %3033 = vmatprep.mubr.f32.mxu0 0.0
        %3034 = vmatmul.mubr.f32.gmra.mrb[0].mxu0 %v2908
        %v3035 = vpop.f32.mrb[0].mxu0
        %v3036 = vadd.f32 %v2884, %v3035
        %v3037 = vpop.f32.mrb[0].mxu0
        %3038 = vmatprep.mubr.f32.mxu0 0.0
        %3039 = vmatmul.mubr.f32.gmra.mrb[0].mxu0 %v2911
        %v3040 = vpop.f32.mrb[0].mxu0
        %v3041 = vadd.f32 %v2884, %v3040
        %v3042 = vpop.f32.mrb[0].mxu0
        %3043 = vmatprep.mubr.f32.mxu0 0.0
        %3044 = vmatmul.mubr.f32.gmra.mrb[0].mxu0 %v2914
        %v3045 = vpop.f32.mrb[0].mxu0
        %v3046 = vadd.f32 %v2884, %v3045
        %v3047 = vpop.f32.mrb[0].mxu0
        %3048 = vmatprep.mubr.f32.mxu0 0.0
        %3049 = vmatmul.mubr.f32.gmra.mrb[0].mxu0 %v2917
        %v3050 = vpop.f32.mrb[0].mxu0
        %v3051 = vadd.f32 %v2884, %v3050
        %v3052 = vpop.f32.mrb[0].mxu0
        %3053 = vmatprep.mubr.f32.mxu0 0.0
        %3054 = vmatmul.mubr.f32.gmra.mrb[0].mxu0 %v2920
        %v3055 = vpop.f32.mrb[0].mxu0
        %v3056 = vadd.f32 %v2884, %v3055
        %v3057 = vpop.f32.mrb[0].mxu0
        %3058 = vmatprep.mubr.f32.mxu0 0.0
        %3059 = vmatmul.mubr.f32.gmra.mrb[0].mxu0 %v2923
        %v3060 = vpop.f32.mrb[0].mxu0
        %v3061 = vadd.f32 %v2884, %v3060
        %v3062 = vpop.f32.mrb[0].mxu0
        %3063 = vmatprep.mubr.f32.mxu0 0.0
        %3064 = vmatmul.mubr.f32.gmra.mrb[0].mxu0 %v2926
        %v3065 = vpop.f32.mrb[0].mxu0
        %v3066 = vadd.f32 %v2884, %v3065
        %v3067 = vpop.f32.mrb[0].mxu0
        %3068 = vmatprep.mubr.f32.mxu0 0.0
        %3069 = vmatmul.mubr.f32.gmra.mrb[0].mxu0 %v2929
        %v3070 = vpop.f32.mrb[0].mxu0
        %v3071 = vadd.f32 %v2884, %v3070
        %v3072 = vpop.f32.mrb[0].mxu0
        %3073 = vmatprep.mubr.f32.mxu0 0.0
        %3074 = vmatmul.mubr.f32.gmra.mrb[0].mxu0 %v2932
        %v3075 = vpop.f32.mrb[0].mxu0
        %v3076 = vadd.f32 %v2884, %v3075
        %v3077 = vpop.f32.mrb[0].mxu0
        %3078 = vdwg.mxu0
        %v3079 = vmax.f32 %v3001, 0.0
        %v3080 = vmax.f32 %v3006, 0.0
        %v3081 = vmax.f32 %v3011, 0.0
        %v3082 = vmax.f32 %v3016, 0.0
        %v3083 = vmax.f32 %v3021, 0.0
        %v3084 = vmax.f32 %v3026, 0.0
        %v3085 = vmax.f32 %v3031, 0.0
        %v3086 = vmax.f32 %v3036, 0.0
        %v3087 = vmax.f32 %v3041, 0.0
        %v3088 = vmax.f32 %v3046, 0.0
        %v3089 = vmax.f32 %v3051, 0.0
        %v3090 = vmax.f32 %v3056, 0.0
        %v3091 = vmax.f32 %v3061, 0.0
        %v3092 = vmax.f32 %v3066, 0.0
        %v3093 = vmax.f32 %v3071, 0.0
        %v3094 = vmax.f32 %v3076, 0.0
        %3095 = vst.msk [vmem:[#allocation2 + $0x8] sm:$0xff] %vm330, %v3079
        %3096 = vst.msk [vmem:[#allocation2 + $0x10] sm:$0xff] %vm330, %v3080
        %3097 = vst.msk [vmem:[#allocation2 + $0x18] sm:$0xff] %vm330, %v3081
        %3098 = vst.msk [vmem:[#allocation2 + $0x20] sm:$0xff] %vm330, %v3082
        %3099 = vst.msk [vmem:[#allocation2 + $0x28] sm:$0xff] %vm330, %v3083
        %3100 = vst.msk [vmem:[#allocation2 + $0x30] sm:$0xff] %vm330, %v3084
        %3101 = vst.msk [vmem:[#allocation2 + $0x38] sm:$0xff] %vm330, %v3085
        %3102 = vst.msk [vmem:[#allocation2 + $0x40] sm:$0xff] %vm330, %v3086
        %3103 = vst.msk [vmem:[#allocation2 + $0x48] sm:$0xff] %vm330, %v3087
        %3104 = vst.msk [vmem:[#allocation2 + $0x50] sm:$0xff] %vm330, %v3088
        %3105 = vst.msk [vmem:[#allocation2 + $0x58] sm:$0xff] %vm330, %v3089
        %3106 = vst.msk [vmem:[#allocation2 + $0x60] sm:$0xff] %vm330, %v3090
        %3107 = vst.msk [vmem:[#allocation2 + $0x68] sm:$0xff] %vm330, %v3091
        %3108 = vst.msk [vmem:[#allocation2 + $0x70] sm:$0xff] %vm330, %v3092
        %3109 = vst.msk [vmem:[#allocation2 + $0x78] sm:$0xff] %vm330, %v3093
        %3110 = vst.msk [vmem:[#allocation2 + $0x80] sm:$0x1f] %vm348, %v3094
        %v3111 = vld [vmem:[#allocation2 + $0x2] sm:$0xff]
        %v3112 = vld [vmem:[#allocation2 + $0xa] sm:$0xff]
        %v3113 = vld [vmem:[#allocation2 + $0x12] sm:$0xff]
        %v3114 = vld [vmem:[#allocation2 + $0x1a] sm:$0xff]
        %v3115 = vld [vmem:[#allocation2 + $0x22] sm:$0xff]
        %v3116 = vld [vmem:[#allocation2 + $0x2a] sm:$0xff]
        %v3117 = vld [vmem:[#allocation2 + $0x32] sm:$0xff]
        %v3118 = vld [vmem:[#allocation2 + $0x3a] sm:$0xff]
        %v3119 = vld [vmem:[#allocation2 + $0x42] sm:$0xff]
        %v3120 = vld [vmem:[#allocation2 + $0x4a] sm:$0xff]
        %v3121 = vld [vmem:[#allocation2 + $0x52] sm:$0xff]
        %v3122 = vld [vmem:[#allocation2 + $0x5a] sm:$0xff]
        %v3123 = vld [vmem:[#allocation2 + $0x62] sm:$0xff]
        %v3124 = vld [vmem:[#allocation2 + $0x6a] sm:$0xff]
        %v3125 = vld [vmem:[#allocation2 + $0x72] sm:$0xff]
        %v3126 = vld [vmem:[#allocation2 + $0x7a] sm:$0x1f]
        %s3127 = scalar_lea.vmem %s3, 3456
        %v3128 = vld [vmem:[%s3127] sm:$0xff]
        %v3129 = vld [vmem:[%s3127 + $0x8] sm:$0xff]
        %v3130 = vld [vmem:[%s3127 + $0x10] sm:$0xff]
        %v3131 = vld [vmem:[%s3127 + $0x18] sm:$0xff]
        %v3132 = vld [vmem:[%s3127 + $0x20] sm:$0xff]
        %v3133 = vld [vmem:[%s3127 + $0x28] sm:$0xff]
        %v3134 = vld [vmem:[%s3127 + $0x30] sm:$0xff]
        %v3135 = vld [vmem:[%s3127 + $0x38] sm:$0xff]
        %v3136 = vld [vmem:[%s3127 + $0x40] sm:$0xff]
        %v3137 = vld [vmem:[%s3127 + $0x48] sm:$0xff]
        %v3138 = vld [vmem:[%s3127 + $0x50] sm:$0xff]
        %v3139 = vld [vmem:[%s3127 + $0x58] sm:$0xff]
        %v3140 = vld [vmem:[%s3127 + $0x60] sm:$0xff]
        %v3141 = vld [vmem:[%s3127 + $0x68] sm:$0xff]
        %v3142 = vld [vmem:[%s3127 + $0x70] sm:$0xff]
        %v3143 = vld [vmem:[%s3127 + $0x78] sm:$0x1f]
        %v3144 = vmul.f32 %v3111, %v3128
        %v3145 = vmul.f32 %v3112, %v3129
        %v3146 = vmul.f32 %v3113, %v3130
        %v3147 = vmul.f32 %v3114, %v3131
        %v3148 = vmul.f32 %v3115, %v3132
        %v3149 = vmul.f32 %v3116, %v3133
        %v3150 = vmul.f32 %v3117, %v3134
        %v3151 = vmul.f32 %v3118, %v3135
        %v3152 = vmul.f32 %v3119, %v3136
        %v3153 = vmul.f32 %v3120, %v3137
        %v3154 = vmul.f32 %v3121, %v3138
        %v3155 = vmul.f32 %v3122, %v3139
        %v3156 = vmul.f32 %v3123, %v3140
        %v3157 = vmul.f32 %v3124, %v3141
        %v3158 = vmul.f32 %v3125, %v3142
        %v3159 = vmul.f32 %v3126, %v3143
        %v3160 = vld [vmem:[#allocation2 + $0x3] sm:$0xff]
        %v3161 = vld [vmem:[#allocation2 + $0xb] sm:$0xff]
        %v3162 = vld [vmem:[#allocation2 + $0x13] sm:$0xff]
        %v3163 = vld [vmem:[#allocation2 + $0x1b] sm:$0xff]
        %v3164 = vld [vmem:[#allocation2 + $0x23] sm:$0xff]
        %v3165 = vld [vmem:[#allocation2 + $0x2b] sm:$0xff]
        %v3166 = vld [vmem:[#allocation2 + $0x33] sm:$0xff]
        %v3167 = vld [vmem:[#allocation2 + $0x3b] sm:$0xff]
        %v3168 = vld [vmem:[#allocation2 + $0x43] sm:$0xff]
        %v3169 = vld [vmem:[#allocation2 + $0x4b] sm:$0xff]
        %v3170 = vld [vmem:[#allocation2 + $0x53] sm:$0xff]
        %v3171 = vld [vmem:[#allocation2 + $0x5b] sm:$0xff]
        %v3172 = vld [vmem:[#allocation2 + $0x63] sm:$0xff]
        %v3173 = vld [vmem:[#allocation2 + $0x6b] sm:$0xff]
        %v3174 = vld [vmem:[#allocation2 + $0x73] sm:$0xff]
        %v3175 = vld [vmem:[#allocation2 + $0x7b] sm:$0x1f]
        %s3176 = scalar_lea.vmem %s3, 3584
        %v3177 = vld [vmem:[%s3176] sm:$0xff]
        %v3178 = vld [vmem:[%s3176 + $0x8] sm:$0xff]
        %v3179 = vld [vmem:[%s3176 + $0x10] sm:$0xff]
        %v3180 = vld [vmem:[%s3176 + $0x18] sm:$0xff]
        %v3181 = vld [vmem:[%s3176 + $0x20] sm:$0xff]
        %v3182 = vld [vmem:[%s3176 + $0x28] sm:$0xff]
        %v3183 = vld [vmem:[%s3176 + $0x30] sm:$0xff]
        %v3184 = vld [vmem:[%s3176 + $0x38] sm:$0xff]
        %v3185 = vld [vmem:[%s3176 + $0x40] sm:$0xff]
        %v3186 = vld [vmem:[%s3176 + $0x48] sm:$0xff]
        %v3187 = vld [vmem:[%s3176 + $0x50] sm:$0xff]
        %v3188 = vld [vmem:[%s3176 + $0x58] sm:$0xff]
        %v3189 = vld [vmem:[%s3176 + $0x60] sm:$0xff]
        %v3190 = vld [vmem:[%s3176 + $0x68] sm:$0xff]
        %v3191 = vld [vmem:[%s3176 + $0x70] sm:$0xff]
        %v3192 = vld [vmem:[%s3176 + $0x78] sm:$0x1f]
        %v3193 = vmul.f32 %v3160, %v3177
        %v3194 = vmul.f32 %v3161, %v3178
        %v3195 = vmul.f32 %v3162, %v3179
        %v3196 = vmul.f32 %v3163, %v3180
        %v3197 = vmul.f32 %v3164, %v3181
        %v3198 = vmul.f32 %v3165, %v3182
        %v3199 = vmul.f32 %v3166, %v3183
        %v3200 = vmul.f32 %v3167, %v3184
        %v3201 = vmul.f32 %v3168, %v3185
        %v3202 = vmul.f32 %v3169, %v3186
        %v3203 = vmul.f32 %v3170, %v3187
        %v3204 = vmul.f32 %v3171, %v3188
        %v3205 = vmul.f32 %v3172, %v3189
        %v3206 = vmul.f32 %v3173, %v3190
        %v3207 = vmul.f32 %v3174, %v3191
        %v3208 = vmul.f32 %v3175, %v3192
        %v3209 = vadd.f32 %v3144, %v3193
        %v3210 = vadd.f32 %v3145, %v3194
        %v3211 = vadd.f32 %v3146, %v3195
        %v3212 = vadd.f32 %v3147, %v3196
        %v3213 = vadd.f32 %v3148, %v3197
        %v3214 = vadd.f32 %v3149, %v3198
        %v3215 = vadd.f32 %v3150, %v3199
        %v3216 = vadd.f32 %v3151, %v3200
        %v3217 = vadd.f32 %v3152, %v3201
        %v3218 = vadd.f32 %v3153, %v3202
        %v3219 = vadd.f32 %v3154, %v3203
        %v3220 = vadd.f32 %v3155, %v3204
        %v3221 = vadd.f32 %v3156, %v3205
        %v3222 = vadd.f32 %v3157, %v3206
        %v3223 = vadd.f32 %v3158, %v3207
        %v3224 = vadd.f32 %v3159, %v3208
        %v3225 = vld [vmem:[#allocation2 + $0x4] sm:$0xff]
        %v3226 = vld [vmem:[#allocation2 + $0xc] sm:$0xff]
        %v3227 = vld [vmem:[#allocation2 + $0x14] sm:$0xff]
        %v3228 = vld [vmem:[#allocation2 + $0x1c] sm:$0xff]
        %v3229 = vld [vmem:[#allocation2 + $0x24] sm:$0xff]
        %v3230 = vld [vmem:[#allocation2 + $0x2c] sm:$0xff]
        %v3231 = vld [vmem:[#allocation2 + $0x34] sm:$0xff]
        %v3232 = vld [vmem:[#allocation2 + $0x3c] sm:$0xff]
        %v3233 = vld [vmem:[#allocation2 + $0x44] sm:$0xff]
        %v3234 = vld [vmem:[#allocation2 + $0x4c] sm:$0xff]
        %v3235 = vld [vmem:[#allocation2 + $0x54] sm:$0xff]
        %v3236 = vld [vmem:[#allocation2 + $0x5c] sm:$0xff]
        %v3237 = vld [vmem:[#allocation2 + $0x64] sm:$0xff]
        %v3238 = vld [vmem:[#allocation2 + $0x6c] sm:$0xff]
        %v3239 = vld [vmem:[#allocation2 + $0x74] sm:$0xff]
        %v3240 = vld [vmem:[#allocation2 + $0x7c] sm:$0x1f]
        %s3241 = scalar_lea.vmem %s3, 3712
        %v3242 = vld [vmem:[%s3241] sm:$0xff]
        %v3243 = vld [vmem:[%s3241 + $0x8] sm:$0xff]
        %v3244 = vld [vmem:[%s3241 + $0x10] sm:$0xff]
        %v3245 = vld [vmem:[%s3241 + $0x18] sm:$0xff]
        %v3246 = vld [vmem:[%s3241 + $0x20] sm:$0xff]
        %v3247 = vld [vmem:[%s3241 + $0x28] sm:$0xff]
        %v3248 = vld [vmem:[%s3241 + $0x30] sm:$0xff]
        %v3249 = vld [vmem:[%s3241 + $0x38] sm:$0xff]
        %v3250 = vld [vmem:[%s3241 + $0x40] sm:$0xff]
        %v3251 = vld [vmem:[%s3241 + $0x48] sm:$0xff]
        %v3252 = vld [vmem:[%s3241 + $0x50] sm:$0xff]
        %v3253 = vld [vmem:[%s3241 + $0x58] sm:$0xff]
        %v3254 = vld [vmem:[%s3241 + $0x60] sm:$0xff]
        %v3255 = vld [vmem:[%s3241 + $0x68] sm:$0xff]
        %v3256 = vld [vmem:[%s3241 + $0x70] sm:$0xff]
        %v3257 = vld [vmem:[%s3241 + $0x78] sm:$0x1f]
        %v3258 = vmul.f32 %v3225, %v3242
        %v3259 = vmul.f32 %v3226, %v3243
        %v3260 = vmul.f32 %v3227, %v3244
        %v3261 = vmul.f32 %v3228, %v3245
        %v3262 = vmul.f32 %v3229, %v3246
        %v3263 = vmul.f32 %v3230, %v3247
        %v3264 = vmul.f32 %v3231, %v3248
        %v3265 = vmul.f32 %v3232, %v3249
        %v3266 = vmul.f32 %v3233, %v3250
        %v3267 = vmul.f32 %v3234, %v3251
        %v3268 = vmul.f32 %v3235, %v3252
        %v3269 = vmul.f32 %v3236, %v3253
        %v3270 = vmul.f32 %v3237, %v3254
        %v3271 = vmul.f32 %v3238, %v3255
        %v3272 = vmul.f32 %v3239, %v3256
        %v3273 = vmul.f32 %v3240, %v3257
        %v3274 = vadd.f32 %v3209, %v3258
        %v3275 = vadd.f32 %v3210, %v3259
        %v3276 = vadd.f32 %v3211, %v3260
        %v3277 = vadd.f32 %v3212, %v3261
        %v3278 = vadd.f32 %v3213, %v3262
        %v3279 = vadd.f32 %v3214, %v3263
        %v3280 = vadd.f32 %v3215, %v3264
        %v3281 = vadd.f32 %v3216, %v3265
        %v3282 = vadd.f32 %v3217, %v3266
        %v3283 = vadd.f32 %v3218, %v3267
        %v3284 = vadd.f32 %v3219, %v3268
        %v3285 = vadd.f32 %v3220, %v3269
        %v3286 = vadd.f32 %v3221, %v3270
        %v3287 = vadd.f32 %v3222, %v3271
        %v3288 = vadd.f32 %v3223, %v3272
        %v3289 = vadd.f32 %v3224, %v3273
        %v3290 = vld [vmem:[#allocation2 + $0x7] sm:$0xff]
        %v3291 = vld [vmem:[#allocation2 + $0xf] sm:$0xff]
        %v3292 = vld [vmem:[#allocation2 + $0x17] sm:$0xff]
        %v3293 = vld [vmem:[#allocation2 + $0x1f] sm:$0xff]
        %v3294 = vld [vmem:[#allocation2 + $0x27] sm:$0xff]
        %v3295 = vld [vmem:[#allocation2 + $0x2f] sm:$0xff]
        %v3296 = vld [vmem:[#allocation2 + $0x37] sm:$0xff]
        %v3297 = vld [vmem:[#allocation2 + $0x3f] sm:$0xff]
        %v3298 = vld [vmem:[#allocation2 + $0x47] sm:$0xff]
        %v3299 = vld [vmem:[#allocation2 + $0x4f] sm:$0xff]
        %v3300 = vld [vmem:[#allocation2 + $0x57] sm:$0xff]
        %v3301 = vld [vmem:[#allocation2 + $0x5f] sm:$0xff]
        %v3302 = vld [vmem:[#allocation2 + $0x67] sm:$0xff]
        %v3303 = vld [vmem:[#allocation2 + $0x6f] sm:$0xff]
        %v3304 = vld [vmem:[#allocation2 + $0x77] sm:$0xff]
        %v3305 = vld [vmem:[#allocation2 + $0x7f] sm:$0x1f]
        %s3306 = scalar_lea.vmem %s3, 3840
        %v3307 = vld [vmem:[%s3306] sm:$0xff]
        %v3308 = vld [vmem:[%s3306 + $0x8] sm:$0xff]
        %v3309 = vld [vmem:[%s3306 + $0x10] sm:$0xff]
        %v3310 = vld [vmem:[%s3306 + $0x18] sm:$0xff]
        %v3311 = vld [vmem:[%s3306 + $0x20] sm:$0xff]
        %v3312 = vld [vmem:[%s3306 + $0x28] sm:$0xff]
        %v3313 = vld [vmem:[%s3306 + $0x30] sm:$0xff]
        %v3314 = vld [vmem:[%s3306 + $0x38] sm:$0xff]
        %v3315 = vld [vmem:[%s3306 + $0x40] sm:$0xff]
        %v3316 = vld [vmem:[%s3306 + $0x48] sm:$0xff]
        %v3317 = vld [vmem:[%s3306 + $0x50] sm:$0xff]
        %v3318 = vld [vmem:[%s3306 + $0x58] sm:$0xff]
        %v3319 = vld [vmem:[%s3306 + $0x60] sm:$0xff]
        %v3320 = vld [vmem:[%s3306 + $0x68] sm:$0xff]
        %v3321 = vld [vmem:[%s3306 + $0x70] sm:$0xff]
        %v3322 = vld [vmem:[%s3306 + $0x78] sm:$0x1f]
        %v3323 = vmul.f32 %v3290, %v3307
        %v3324 = vmul.f32 %v3291, %v3308
        %v3325 = vmul.f32 %v3292, %v3309
        %v3326 = vmul.f32 %v3293, %v3310
        %v3327 = vmul.f32 %v3294, %v3311
        %v3328 = vmul.f32 %v3295, %v3312
        %v3329 = vmul.f32 %v3296, %v3313
        %v3330 = vmul.f32 %v3297, %v3314
        %v3331 = vmul.f32 %v3298, %v3315
        %v3332 = vmul.f32 %v3299, %v3316
        %v3333 = vmul.f32 %v3300, %v3317
        %v3334 = vmul.f32 %v3301, %v3318
        %v3335 = vmul.f32 %v3302, %v3319
        %v3336 = vmul.f32 %v3303, %v3320
        %v3337 = vmul.f32 %v3304, %v3321
        %v3338 = vmul.f32 %v3305, %v3322
        %v3339 = vadd.f32 %v3274, %v3323
        %v3340 = vadd.f32 %v3275, %v3324
        %v3341 = vadd.f32 %v3276, %v3325
        %v3342 = vadd.f32 %v3277, %v3326
        %v3343 = vadd.f32 %v3278, %v3327
        %v3344 = vadd.f32 %v3279, %v3328
        %v3345 = vadd.f32 %v3280, %v3329
        %v3346 = vadd.f32 %v3281, %v3330
        %v3347 = vadd.f32 %v3282, %v3331
        %v3348 = vadd.f32 %v3283, %v3332
        %v3349 = vadd.f32 %v3284, %v3333
        %v3350 = vadd.f32 %v3285, %v3334
        %v3351 = vadd.f32 %v3286, %v3335
        %v3352 = vadd.f32 %v3287, %v3336
        %v3353 = vadd.f32 %v3288, %v3337
        %v3354 = vadd.f32 %v3289, %v3338
        %v3355 = vld [vmem:[#allocation2 + $0x8] sm:$0xff]
        %v3356 = vld [vmem:[#allocation2 + $0x10] sm:$0xff]
        %v3357 = vld [vmem:[#allocation2 + $0x18] sm:$0xff]
        %v3358 = vld [vmem:[#allocation2 + $0x20] sm:$0xff]
        %v3359 = vld [vmem:[#allocation2 + $0x28] sm:$0xff]
        %v3360 = vld [vmem:[#allocation2 + $0x30] sm:$0xff]
        %v3361 = vld [vmem:[#allocation2 + $0x38] sm:$0xff]
        %v3362 = vld [vmem:[#allocation2 + $0x40] sm:$0xff]
        %v3363 = vld [vmem:[#allocation2 + $0x48] sm:$0xff]
        %v3364 = vld [vmem:[#allocation2 + $0x50] sm:$0xff]
        %v3365 = vld [vmem:[#allocation2 + $0x58] sm:$0xff]
        %v3366 = vld [vmem:[#allocation2 + $0x60] sm:$0xff]
        %v3367 = vld [vmem:[#allocation2 + $0x68] sm:$0xff]
        %v3368 = vld [vmem:[#allocation2 + $0x70] sm:$0xff]
        %v3369 = vld [vmem:[#allocation2 + $0x78] sm:$0xff]
        %v3370 = vld [vmem:[#allocation2 + $0x80] sm:$0x1f]
        %s3371 = scalar_lea.vmem %s3, 3968
        %v3372 = vld [vmem:[%s3371] sm:$0xff]
        %v3373 = vld [vmem:[%s3371 + $0x8] sm:$0xff]
        %v3374 = vld [vmem:[%s3371 + $0x10] sm:$0xff]
        %v3375 = vld [vmem:[%s3371 + $0x18] sm:$0xff]
        %v3376 = vld [vmem:[%s3371 + $0x20] sm:$0xff]
        %v3377 = vld [vmem:[%s3371 + $0x28] sm:$0xff]
        %v3378 = vld [vmem:[%s3371 + $0x30] sm:$0xff]
        %v3379 = vld [vmem:[%s3371 + $0x38] sm:$0xff]
        %v3380 = vld [vmem:[%s3371 + $0x40] sm:$0xff]
        %v3381 = vld [vmem:[%s3371 + $0x48] sm:$0xff]
        %v3382 = vld [vmem:[%s3371 + $0x50] sm:$0xff]
        %v3383 = vld [vmem:[%s3371 + $0x58] sm:$0xff]
        %v3384 = vld [vmem:[%s3371 + $0x60] sm:$0xff]
        %v3385 = vld [vmem:[%s3371 + $0x68] sm:$0xff]
        %v3386 = vld [vmem:[%s3371 + $0x70] sm:$0xff]
        %v3387 = vld [vmem:[%s3371 + $0x78] sm:$0x1f]
        %v3388 = vmul.f32 %v3355, %v3372
        %v3389 = vmul.f32 %v3356, %v3373
        %v3390 = vmul.f32 %v3357, %v3374
        %v3391 = vmul.f32 %v3358, %v3375
        %v3392 = vmul.f32 %v3359, %v3376
        %v3393 = vmul.f32 %v3360, %v3377
        %v3394 = vmul.f32 %v3361, %v3378
        %v3395 = vmul.f32 %v3362, %v3379
        %v3396 = vmul.f32 %v3363, %v3380
        %v3397 = vmul.f32 %v3364, %v3381
        %v3398 = vmul.f32 %v3365, %v3382
        %v3399 = vmul.f32 %v3366, %v3383
        %v3400 = vmul.f32 %v3367, %v3384
        %v3401 = vmul.f32 %v3368, %v3385
        %v3402 = vmul.f32 %v3369, %v3386
        %v3403 = vmul.f32 %v3370, %v3387
        %v3404 = vadd.f32 %v3339, %v3388
        %v3405 = vadd.f32 %v3340, %v3389
        %v3406 = vadd.f32 %v3341, %v3390
        %v3407 = vadd.f32 %v3342, %v3391
        %v3408 = vadd.f32 %v3343, %v3392
        %v3409 = vadd.f32 %v3344, %v3393
        %v3410 = vadd.f32 %v3345, %v3394
        %v3411 = vadd.f32 %v3346, %v3395
        %v3412 = vadd.f32 %v3347, %v3396
        %v3413 = vadd.f32 %v3348, %v3397
        %v3414 = vadd.f32 %v3349, %v3398
        %v3415 = vadd.f32 %v3350, %v3399
        %v3416 = vadd.f32 %v3351, %v3400
        %v3417 = vadd.f32 %v3352, %v3401
        %v3418 = vadd.f32 %v3353, %v3402
        %v3419 = vadd.f32 %v3354, %v3403
        %v3420 = vld [vmem:[#allocation2 + $0x9] sm:$0xff]
        %v3421 = vld [vmem:[#allocation2 + $0x11] sm:$0xff]
        %v3422 = vld [vmem:[#allocation2 + $0x19] sm:$0xff]
        %v3423 = vld [vmem:[#allocation2 + $0x21] sm:$0xff]
        %v3424 = vld [vmem:[#allocation2 + $0x29] sm:$0xff]
        %v3425 = vld [vmem:[#allocation2 + $0x31] sm:$0xff]
        %v3426 = vld [vmem:[#allocation2 + $0x39] sm:$0xff]
        %v3427 = vld [vmem:[#allocation2 + $0x41] sm:$0xff]
        %v3428 = vld [vmem:[#allocation2 + $0x49] sm:$0xff]
        %v3429 = vld [vmem:[#allocation2 + $0x51] sm:$0xff]
        %v3430 = vld [vmem:[#allocation2 + $0x59] sm:$0xff]
        %v3431 = vld [vmem:[#allocation2 + $0x61] sm:$0xff]
        %v3432 = vld [vmem:[#allocation2 + $0x69] sm:$0xff]
        %v3433 = vld [vmem:[#allocation2 + $0x71] sm:$0xff]
        %v3434 = vld [vmem:[#allocation2 + $0x79] sm:$0xff]
        %v3435 = vld [vmem:[#allocation2 + $0x81] sm:$0x1f]
        %s3436 = scalar_lea.vmem %s3, 4096
        %v3437 = vld [vmem:[%s3436] sm:$0xff]
        %v3438 = vld [vmem:[%s3436 + $0x8] sm:$0xff]
        %v3439 = vld [vmem:[%s3436 + $0x10] sm:$0xff]
        %v3440 = vld [vmem:[%s3436 + $0x18] sm:$0xff]
        %v3441 = vld [vmem:[%s3436 + $0x20] sm:$0xff]
        %v3442 = vld [vmem:[%s3436 + $0x28] sm:$0xff]
        %v3443 = vld [vmem:[%s3436 + $0x30] sm:$0xff]
        %v3444 = vld [vmem:[%s3436 + $0x38] sm:$0xff]
        %v3445 = vld [vmem:[%s3436 + $0x40] sm:$0xff]
        %v3446 = vld [vmem:[%s3436 + $0x48] sm:$0xff]
        %v3447 = vld [vmem:[%s3436 + $0x50] sm:$0xff]
        %v3448 = vld [vmem:[%s3436 + $0x58] sm:$0xff]
        %v3449 = vld [vmem:[%s3436 + $0x60] sm:$0xff]
        %v3450 = vld [vmem:[%s3436 + $0x68] sm:$0xff]
        %v3451 = vld [vmem:[%s3436 + $0x70] sm:$0xff]
        %v3452 = vld [vmem:[%s3436 + $0x78] sm:$0x1f]
        %v3453 = vmul.f32 %v3420, %v3437
        %v3454 = vmul.f32 %v3421, %v3438
        %v3455 = vmul.f32 %v3422, %v3439
        %v3456 = vmul.f32 %v3423, %v3440
        %v3457 = vmul.f32 %v3424, %v3441
        %v3458 = vmul.f32 %v3425, %v3442
        %v3459 = vmul.f32 %v3426, %v3443
        %v3460 = vmul.f32 %v3427, %v3444
        %v3461 = vmul.f32 %v3428, %v3445
        %v3462 = vmul.f32 %v3429, %v3446
        %v3463 = vmul.f32 %v3430, %v3447
        %v3464 = vmul.f32 %v3431, %v3448
        %v3465 = vmul.f32 %v3432, %v3449
        %v3466 = vmul.f32 %v3433, %v3450
        %v3467 = vmul.f32 %v3434, %v3451
        %v3468 = vmul.f32 %v3435, %v3452
        %v3469 = vadd.f32 %v3404, %v3453
        %v3470 = vadd.f32 %v3405, %v3454
        %v3471 = vadd.f32 %v3406, %v3455
        %v3472 = vadd.f32 %v3407, %v3456
        %v3473 = vadd.f32 %v3408, %v3457
        %v3474 = vadd.f32 %v3409, %v3458
        %v3475 = vadd.f32 %v3410, %v3459
        %v3476 = vadd.f32 %v3411, %v3460
        %v3477 = vadd.f32 %v3412, %v3461
        %v3478 = vadd.f32 %v3413, %v3462
        %v3479 = vadd.f32 %v3414, %v3463
        %v3480 = vadd.f32 %v3415, %v3464
        %v3481 = vadd.f32 %v3416, %v3465
        %v3482 = vadd.f32 %v3417, %v3466
        %v3483 = vadd.f32 %v3418, %v3467
        %v3484 = vadd.f32 %v3419, %v3468
        %v3485 = vld [vmem:[#allocation2 + $0x7c] sm:$0xff]
        %v3486 = vld [vmem:[#allocation2 + $0x84] sm:$0x1f]
        %s3487 = scalar_lea.vmem %s3, 4224
        %v3488 = vld [vmem:[%s3487] sm:$0xff]
        %v3489 = vld [vmem:[%s3487 + $0x8] sm:$0xff]
        %v3490 = vld [vmem:[%s3487 + $0x10] sm:$0xff]
        %v3491 = vld [vmem:[%s3487 + $0x18] sm:$0xff]
        %v3492 = vld [vmem:[%s3487 + $0x20] sm:$0xff]
        %v3493 = vld [vmem:[%s3487 + $0x28] sm:$0xff]
        %v3494 = vld [vmem:[%s3487 + $0x30] sm:$0xff]
        %v3495 = vld [vmem:[%s3487 + $0x38] sm:$0xff]
        %v3496 = vld [vmem:[%s3487 + $0x40] sm:$0xff]
        %v3497 = vld [vmem:[%s3487 + $0x48] sm:$0xff]
        %v3498 = vld [vmem:[%s3487 + $0x50] sm:$0xff]
        %v3499 = vld [vmem:[%s3487 + $0x58] sm:$0xff]
        %v3500 = vld [vmem:[%s3487 + $0x60] sm:$0xff]
        %v3501 = vld [vmem:[%s3487 + $0x68] sm:$0xff]
        %v3502 = vld [vmem:[%s3487 + $0x70] sm:$0xff]
        %v3503 = vld [vmem:[%s3487 + $0x78] sm:$0x1f]
        %v3504 = vmul.f32 %v3226, %v3488
        %v3505 = vmul.f32 %v3227, %v3489
        %v3506 = vmul.f32 %v3228, %v3490
        %v3507 = vmul.f32 %v3229, %v3491
        %v3508 = vmul.f32 %v3230, %v3492
        %v3509 = vmul.f32 %v3231, %v3493
        %v3510 = vmul.f32 %v3232, %v3494
        %v3511 = vmul.f32 %v3233, %v3495
        %v3512 = vmul.f32 %v3234, %v3496
        %v3513 = vmul.f32 %v3235, %v3497
        %v3514 = vmul.f32 %v3236, %v3498
        %v3515 = vmul.f32 %v3237, %v3499
        %v3516 = vmul.f32 %v3238, %v3500
        %v3517 = vmul.f32 %v3239, %v3501
        %v3518 = vmul.f32 %v3485, %v3502
        %v3519 = vmul.f32 %v3486, %v3503
        %v3520 = vadd.f32 %v3469, %v3504
        %v3521 = vadd.f32 %v3470, %v3505
        %v3522 = vadd.f32 %v3471, %v3506
        %v3523 = vadd.f32 %v3472, %v3507
        %v3524 = vadd.f32 %v3473, %v3508
        %v3525 = vadd.f32 %v3474, %v3509
        %v3526 = vadd.f32 %v3475, %v3510
        %v3527 = vadd.f32 %v3476, %v3511
        %v3528 = vadd.f32 %v3477, %v3512
        %v3529 = vadd.f32 %v3478, %v3513
        %v3530 = vadd.f32 %v3479, %v3514
        %v3531 = vadd.f32 %v3480, %v3515
        %v3532 = vadd.f32 %v3481, %v3516
        %v3533 = vadd.f32 %v3482, %v3517
        %v3534 = vadd.f32 %v3483, %v3518
        %v3535 = vadd.f32 %v3484, %v3519
        %v3536 = vld [vmem:[#allocation2 + $0xd] sm:$0xff]
        %v3537 = vld [vmem:[#allocation2 + $0x15] sm:$0xff]
        %v3538 = vld [vmem:[#allocation2 + $0x1d] sm:$0xff]
        %v3539 = vld [vmem:[#allocation2 + $0x25] sm:$0xff]
        %v3540 = vld [vmem:[#allocation2 + $0x2d] sm:$0xff]
        %v3541 = vld [vmem:[#allocation2 + $0x35] sm:$0xff]
        %v3542 = vld [vmem:[#allocation2 + $0x3d] sm:$0xff]
        %v3543 = vld [vmem:[#allocation2 + $0x45] sm:$0xff]
        %v3544 = vld [vmem:[#allocation2 + $0x4d] sm:$0xff]
        %v3545 = vld [vmem:[#allocation2 + $0x55] sm:$0xff]
        %v3546 = vld [vmem:[#allocation2 + $0x5d] sm:$0xff]
        %v3547 = vld [vmem:[#allocation2 + $0x65] sm:$0xff]
        %v3548 = vld [vmem:[#allocation2 + $0x6d] sm:$0xff]
        %v3549 = vld [vmem:[#allocation2 + $0x75] sm:$0xff]
        %v3550 = vld [vmem:[#allocation2 + $0x7d] sm:$0xff]
        %v3551 = vld [vmem:[#allocation2 + $0x85] sm:$0x1f]
        %s3552 = scalar_lea.vmem %s3, 4352
        %v3553 = vld [vmem:[%s3552] sm:$0xff]
        %v3554 = vld [vmem:[%s3552 + $0x8] sm:$0xff]
        %v3555 = vld [vmem:[%s3552 + $0x10] sm:$0xff]
        %v3556 = vld [vmem:[%s3552 + $0x18] sm:$0xff]
        %v3557 = vld [vmem:[%s3552 + $0x20] sm:$0xff]
        %v3558 = vld [vmem:[%s3552 + $0x28] sm:$0xff]
        %v3559 = vld [vmem:[%s3552 + $0x30] sm:$0xff]
        %v3560 = vld [vmem:[%s3552 + $0x38] sm:$0xff]
        %v3561 = vld [vmem:[%s3552 + $0x40] sm:$0xff]
        %v3562 = vld [vmem:[%s3552 + $0x48] sm:$0xff]
        %v3563 = vld [vmem:[%s3552 + $0x50] sm:$0xff]
        %v3564 = vld [vmem:[%s3552 + $0x58] sm:$0xff]
        %v3565 = vld [vmem:[%s3552 + $0x60] sm:$0xff]
        %v3566 = vld [vmem:[%s3552 + $0x68] sm:$0xff]
        %v3567 = vld [vmem:[%s3552 + $0x70] sm:$0xff]
        %v3568 = vld [vmem:[%s3552 + $0x78] sm:$0x1f]
        %v3569 = vmul.f32 %v3536, %v3553
        %v3570 = vmul.f32 %v3537, %v3554
        %v3571 = vmul.f32 %v3538, %v3555
        %v3572 = vmul.f32 %v3539, %v3556
        %v3573 = vmul.f32 %v3540, %v3557
        %v3574 = vmul.f32 %v3541, %v3558
        %v3575 = vmul.f32 %v3542, %v3559
        %v3576 = vmul.f32 %v3543, %v3560
        %v3577 = vmul.f32 %v3544, %v3561
        %v3578 = vmul.f32 %v3545, %v3562
        %v3579 = vmul.f32 %v3546, %v3563
        %v3580 = vmul.f32 %v3547, %v3564
        %v3581 = vmul.f32 %v3548, %v3565
        %v3582 = vmul.f32 %v3549, %v3566
        %v3583 = vmul.f32 %v3550, %v3567
        %v3584 = vmul.f32 %v3551, %v3568
        %v3585 = vadd.f32 %v3520, %v3569
        %v3586 = vadd.f32 %v3521, %v3570
        %v3587 = vadd.f32 %v3522, %v3571
        %v3588 = vadd.f32 %v3523, %v3572
        %v3589 = vadd.f32 %v3524, %v3573
        %v3590 = vadd.f32 %v3525, %v3574
        %v3591 = vadd.f32 %v3526, %v3575
        %v3592 = vadd.f32 %v3527, %v3576
        %v3593 = vadd.f32 %v3528, %v3577
        %v3594 = vadd.f32 %v3529, %v3578
        %v3595 = vadd.f32 %v3530, %v3579
        %v3596 = vadd.f32 %v3531, %v3580
        %v3597 = vadd.f32 %v3532, %v3581
        %v3598 = vadd.f32 %v3533, %v3582
        %v3599 = vadd.f32 %v3534, %v3583
        %v3600 = vadd.f32 %v3535, %v3584
        %v3601 = vld [vmem:[#allocation2 + $0xe] sm:$0xff]
        %v3602 = vld [vmem:[#allocation2 + $0x16] sm:$0xff]
        %v3603 = vld [vmem:[#allocation2 + $0x1e] sm:$0xff]
        %v3604 = vld [vmem:[#allocation2 + $0x26] sm:$0xff]
        %v3605 = vld [vmem:[#allocation2 + $0x2e] sm:$0xff]
        %v3606 = vld [vmem:[#allocation2 + $0x36] sm:$0xff]
        %v3607 = vld [vmem:[#allocation2 + $0x3e] sm:$0xff]
        %v3608 = vld [vmem:[#allocation2 + $0x46] sm:$0xff]
        %v3609 = vld [vmem:[#allocation2 + $0x4e] sm:$0xff]
        %v3610 = vld [vmem:[#allocation2 + $0x56] sm:$0xff]
        %v3611 = vld [vmem:[#allocation2 + $0x5e] sm:$0xff]
        %v3612 = vld [vmem:[#allocation2 + $0x66] sm:$0xff]
        %v3613 = vld [vmem:[#allocation2 + $0x6e] sm:$0xff]
        %v3614 = vld [vmem:[#allocation2 + $0x76] sm:$0xff]
        %v3615 = vld [vmem:[#allocation2 + $0x7e] sm:$0xff]
        %v3616 = vld [vmem:[#allocation2 + $0x86] sm:$0x1f]
        %s3617 = scalar_lea.vmem %s3, 4480
        %v3618 = vld [vmem:[%s3617] sm:$0xff]
        %v3619 = vld [vmem:[%s3617 + $0x8] sm:$0xff]
        %v3620 = vld [vmem:[%s3617 + $0x10] sm:$0xff]
        %v3621 = vld [vmem:[%s3617 + $0x18] sm:$0xff]
        %v3622 = vld [vmem:[%s3617 + $0x20] sm:$0xff]
        %v3623 = vld [vmem:[%s3617 + $0x28] sm:$0xff]
        %v3624 = vld [vmem:[%s3617 + $0x30] sm:$0xff]
        %v3625 = vld [vmem:[%s3617 + $0x38] sm:$0xff]
        %v3626 = vld [vmem:[%s3617 + $0x40] sm:$0xff]
        %v3627 = vld [vmem:[%s3617 + $0x48] sm:$0xff]
        %v3628 = vld [vmem:[%s3617 + $0x50] sm:$0xff]
        %v3629 = vld [vmem:[%s3617 + $0x58] sm:$0xff]
        %v3630 = vld [vmem:[%s3617 + $0x60] sm:$0xff]
        %v3631 = vld [vmem:[%s3617 + $0x68] sm:$0xff]
        %v3632 = vld [vmem:[%s3617 + $0x70] sm:$0xff]
        %v3633 = vld [vmem:[%s3617 + $0x78] sm:$0x1f]
        %v3634 = vmul.f32 %v3601, %v3618
        %v3635 = vmul.f32 %v3602, %v3619
        %v3636 = vmul.f32 %v3603, %v3620
        %v3637 = vmul.f32 %v3604, %v3621
        %v3638 = vmul.f32 %v3605, %v3622
        %v3639 = vmul.f32 %v3606, %v3623
        %v3640 = vmul.f32 %v3607, %v3624
        %v3641 = vmul.f32 %v3608, %v3625
        %v3642 = vmul.f32 %v3609, %v3626
        %v3643 = vmul.f32 %v3610, %v3627
        %v3644 = vmul.f32 %v3611, %v3628
        %v3645 = vmul.f32 %v3612, %v3629
        %v3646 = vmul.f32 %v3613, %v3630
        %v3647 = vmul.f32 %v3614, %v3631
        %v3648 = vmul.f32 %v3615, %v3632
        %v3649 = vmul.f32 %v3616, %v3633
        %v3650 = vadd.f32 %v3585, %v3634
        %v3651 = vadd.f32 %v3586, %v3635
        %v3652 = vadd.f32 %v3587, %v3636
        %v3653 = vadd.f32 %v3588, %v3637
        %v3654 = vadd.f32 %v3589, %v3638
        %v3655 = vadd.f32 %v3590, %v3639
        %v3656 = vadd.f32 %v3591, %v3640
        %v3657 = vadd.f32 %v3592, %v3641
        %v3658 = vadd.f32 %v3593, %v3642
        %v3659 = vadd.f32 %v3594, %v3643
        %v3660 = vadd.f32 %v3595, %v3644
        %v3661 = vadd.f32 %v3596, %v3645
        %v3662 = vadd.f32 %v3597, %v3646
        %v3663 = vadd.f32 %v3598, %v3647
        %v3664 = vadd.f32 %v3599, %v3648
        %v3665 = vadd.f32 %v3600, %v3649
        %s3666 = scalar_lea.vmem %s4, 3
        %v3667 = vld [vmem:[%s3666] sm:$0x1]
        %v3669 = vlaneseq
        %v3670 = vshrl.u32 %v3669, 7
        %v3671 = vsub.s32 0, %v3670
        %v3672 = vrot.slane %v3667, %v3671
        %v3674 = vadd.f32 %v3650, %v3672
        %v3675 = vadd.f32 %v3651, %v3672
        %v3676 = vadd.f32 %v3652, %v3672
        %v3677 = vadd.f32 %v3653, %v3672
        %v3678 = vadd.f32 %v3654, %v3672
        %v3679 = vadd.f32 %v3655, %v3672
        %v3680 = vadd.f32 %v3656, %v3672
        %v3681 = vadd.f32 %v3657, %v3672
        %v3682 = vadd.f32 %v3658, %v3672
        %v3683 = vadd.f32 %v3659, %v3672
        %v3684 = vadd.f32 %v3660, %v3672
        %v3685 = vadd.f32 %v3661, %v3672
        %v3686 = vadd.f32 %v3662, %v3672
        %v3687 = vadd.f32 %v3663, %v3672
        %v3688 = vadd.f32 %v3664, %v3672
        %v3689 = vadd.f32 %v3665, %v3672
        %v3690 = vmax.f32 %v3674, 0.0
        %v3691 = vmax.f32 %v3675, 0.0
        %v3692 = vmax.f32 %v3676, 0.0
        %v3693 = vmax.f32 %v3677, 0.0
        %v3694 = vmax.f32 %v3678, 0.0
        %v3695 = vmax.f32 %v3679, 0.0
        %v3696 = vmax.f32 %v3680, 0.0
        %v3697 = vmax.f32 %v3681, 0.0
        %v3698 = vmax.f32 %v3682, 0.0
        %v3699 = vmax.f32 %v3683, 0.0
        %v3700 = vmax.f32 %v3684, 0.0
        %v3701 = vmax.f32 %v3685, 0.0
        %v3702 = vmax.f32 %v3686, 0.0
        %v3703 = vmax.f32 %v3687, 0.0
        %v3704 = vmax.f32 %v3688, 0.0
        %v3705 = vmax.f32 %v3689, 0.0
        %s3706 = scalar_lea.vmem %s5, 192
        %v3707 = vld [vmem:[%s3706] sm:$0xff]
        %v3708 = vld [vmem:[%s3706 + $0x8] sm:$0xff]
        %v3709 = vld [vmem:[%s3706 + $0x10] sm:$0xff]
        %v3710 = vld [vmem:[%s3706 + $0x18] sm:$0xff]
        %v3711 = vld [vmem:[%s3706 + $0x20] sm:$0xff]
        %v3712 = vld [vmem:[%s3706 + $0x28] sm:$0xff]
        %v3713 = vld [vmem:[%s3706 + $0x30] sm:$0xff]
        %v3714 = vld [vmem:[%s3706 + $0x38] sm:$0xff]
        %s3715 = scalar_lea.vmem %s6, 3
        %v3716 = vld [vmem:[%s3715] sm:$0x1]
        %v3718 = vlaneseq
        %v3719 = vshrl.u32 %v3718, 7
        %v3720 = vsub.s32 0, %v3719
        %v3721 = vrot.slane %v3716, %v3720
        %v3724 = vsel %vm330, %v3690, 0
        %v3727 = vsel %vm330, %v3691, 0
        %v3730 = vsel %vm330, %v3692, 0
        %v3733 = vsel %vm330, %v3693, 0
        %v3736 = vsel %vm330, %v3694, 0
        %v3739 = vsel %vm330, %v3695, 0
        %v3742 = vsel %vm330, %v3696, 0
        %v3745 = vsel %vm330, %v3697, 0
        %v3748 = vsel %vm330, %v3698, 0
        %v3751 = vsel %vm330, %v3699, 0
        %v3754 = vsel %vm330, %v3700, 0
        %v3757 = vsel %vm330, %v3701, 0
        %v3760 = vsel %vm330, %v3702, 0
        %v3763 = vsel %vm330, %v3703, 0
        %v3766 = vsel %vm330, %v3704, 0
        %v3769 = vsel %vm330, %v3705, 0
        %3771 = vmatprep.subr.mxu0 0.0
        %3772 = vmatpush1.msra.mxu0 %v3707
        %3773 = vmatprep.subr.mxu0 0.0
        %3774 = vmatpush1.msra.mxu0 %v3708
        %3775 = vmatprep.subr.mxu0 0.0
        %3776 = vmatpush1.msra.mxu0 %v3709
        %3777 = vmatprep.subr.mxu0 0.0
        %3778 = vmatpush1.msra.mxu0 %v3710
        %3779 = vmatprep.subr.mxu0 0.0
        %3780 = vmatpush1.msra.mxu0 %v3711
        %3781 = vmatprep.subr.mxu0 0.0
        %3782 = vmatpush1.msra.mxu0 %v3712
        %3783 = vmatprep.subr.mxu0 0.0
        %3784 = vmatpush1.msra.mxu0 %v3713
        %3785 = vmatprep.subr.mxu0 0.0
        %3786 = vmatpush1.msra.mxu0 %v3714
        %3787 = vmatprep.subr.mxu0 0.0
        %3788 = vmatpush1.msra.mxu0 0.0
        %3789 = vmatprep.subr.mxu0 0.0
        %3790 = vmatpush1.msra.mxu0 0.0
        %3791 = vmatprep.subr.mxu0 0.0
        %3792 = vmatpush1.msra.mxu0 0.0
        %3793 = vmatprep.subr.mxu0 0.0
        %3794 = vmatpush1.msra.mxu0 0.0
        %3795 = vmatprep.subr.mxu0 0.0
        %3796 = vmatpush1.msra.mxu0 0.0
        %3797 = vmatprep.subr.mxu0 0.0
        %3798 = vmatpush1.msra.mxu0 0.0
        %3799 = vmatprep.subr.mxu0 0.0
        %3800 = vmatpush1.msra.mxu0 0.0
        %3801 = vmatprep.subr.mxu0 0.0
        %3802 = vmatpush1.msra.mxu0 0.0
        %3803 = vmatprep.subr.mxu0 0.0
        %3804 = vmatpush1.msra.mxu0 0.0
        %3805 = vmatprep.subr.mxu0 0.0
        %3806 = vmatpush1.msra.mxu0 0.0
        %3807 = vmatprep.subr.mxu0 0.0
        %3808 = vmatpush1.msra.mxu0 0.0
        %3809 = vmatprep.subr.mxu0 0.0
        %3810 = vmatpush1.msra.mxu0 0.0
        %3811 = vmatprep.subr.mxu0 0.0
        %3812 = vmatpush1.msra.mxu0 0.0
        %3813 = vmatprep.subr.mxu0 0.0
        %3814 = vmatpush1.msra.mxu0 0.0
        %3815 = vmatprep.subr.mxu0 0.0
        %3816 = vmatpush1.msra.mxu0 0.0
        %3817 = vmatprep.subr.mxu0 0.0
        %3818 = vmatpush1.msra.mxu0 0.0
        %3819 = vmatprep.subr.mxu0 0.0
        %3820 = vmatpush1.msra.mxu0 0.0
        %3821 = vmatprep.subr.mxu0 0.0
        %3822 = vmatpush1.msra.mxu0 0.0
        %3823 = vmatprep.subr.mxu0 0.0
        %3824 = vmatpush1.msra.mxu0 0.0
        %3825 = vmatprep.subr.mxu0 0.0
        %3826 = vmatpush1.msra.mxu0 0.0
        %3827 = vmatprep.subr.mxu0 0.0
        %3828 = vmatpush1.msra.mxu0 0.0
        %3829 = vmatprep.subr.mxu0 0.0
        %3830 = vmatpush1.msra.mxu0 0.0
        %3831 = vmatprep.subr.mxu0 0.0
        %3832 = vmatpush1.msra.mxu0 0.0
        %3833 = vmatprep.subr.mxu0 0.0
        %3834 = vmatpush1.msra.mxu0 0.0
        %3835 = vmatprep.mubr.f32.mxu0 0.0
        %3836 = vmatmul.mubr.f32.gmra.mrb[0].mxu0 %v3724
        %v3837 = vpop.f32.mrb[0].mxu0
        %v3838 = vadd.f32 %v3721, %v3837
        %v3839 = vpop.f32.mrb[0].mxu0
        %3840 = vmatprep.mubr.f32.mxu0 0.0
        %3841 = vmatmul.mubr.f32.gmra.mrb[0].mxu0 %v3727
        %v3842 = vpop.f32.mrb[0].mxu0
        %v3843 = vadd.f32 %v3721, %v3842
        %v3844 = vpop.f32.mrb[0].mxu0
        %3845 = vmatprep.mubr.f32.mxu0 0.0
        %3846 = vmatmul.mubr.f32.gmra.mrb[0].mxu0 %v3730
        %v3847 = vpop.f32.mrb[0].mxu0
        %v3848 = vadd.f32 %v3721, %v3847
        %v3849 = vpop.f32.mrb[0].mxu0
        %3850 = vmatprep.mubr.f32.mxu0 0.0
        %3851 = vmatmul.mubr.f32.gmra.mrb[0].mxu0 %v3733
        %v3852 = vpop.f32.mrb[0].mxu0
        %v3853 = vadd.f32 %v3721, %v3852
        %v3854 = vpop.f32.mrb[0].mxu0
        %3855 = vmatprep.mubr.f32.mxu0 0.0
        %3856 = vmatmul.mubr.f32.gmra.mrb[0].mxu0 %v3736
        %v3857 = vpop.f32.mrb[0].mxu0
        %v3858 = vadd.f32 %v3721, %v3857
        %v3859 = vpop.f32.mrb[0].mxu0
        %3860 = vmatprep.mubr.f32.mxu0 0.0
        %3861 = vmatmul.mubr.f32.gmra.mrb[0].mxu0 %v3739
        %v3862 = vpop.f32.mrb[0].mxu0
        %v3863 = vadd.f32 %v3721, %v3862
        %v3864 = vpop.f32.mrb[0].mxu0
        %3865 = vmatprep.mubr.f32.mxu0 0.0
        %3866 = vmatmul.mubr.f32.gmra.mrb[0].mxu0 %v3742
        %v3867 = vpop.f32.mrb[0].mxu0
        %v3868 = vadd.f32 %v3721, %v3867
        %v3869 = vpop.f32.mrb[0].mxu0
        %3870 = vmatprep.mubr.f32.mxu0 0.0
        %3871 = vmatmul.mubr.f32.gmra.mrb[0].mxu0 %v3745
        %v3872 = vpop.f32.mrb[0].mxu0
        %v3873 = vadd.f32 %v3721, %v3872
        %v3874 = vpop.f32.mrb[0].mxu0
        %3875 = vmatprep.mubr.f32.mxu0 0.0
        %3876 = vmatmul.mubr.f32.gmra.mrb[0].mxu0 %v3748
        %v3877 = vpop.f32.mrb[0].mxu0
        %v3878 = vadd.f32 %v3721, %v3877
        %v3879 = vpop.f32.mrb[0].mxu0
        %3880 = vmatprep.mubr.f32.mxu0 0.0
        %3881 = vmatmul.mubr.f32.gmra.mrb[0].mxu0 %v3751
        %v3882 = vpop.f32.mrb[0].mxu0
        %v3883 = vadd.f32 %v3721, %v3882
        %v3884 = vpop.f32.mrb[0].mxu0
        %3885 = vmatprep.mubr.f32.mxu0 0.0
        %3886 = vmatmul.mubr.f32.gmra.mrb[0].mxu0 %v3754
        %v3887 = vpop.f32.mrb[0].mxu0
        %v3888 = vadd.f32 %v3721, %v3887
        %v3889 = vpop.f32.mrb[0].mxu0
        %3890 = vmatprep.mubr.f32.mxu0 0.0
        %3891 = vmatmul.mubr.f32.gmra.mrb[0].mxu0 %v3757
        %v3892 = vpop.f32.mrb[0].mxu0
        %v3893 = vadd.f32 %v3721, %v3892
        %v3894 = vpop.f32.mrb[0].mxu0
        %3895 = vmatprep.mubr.f32.mxu0 0.0
        %3896 = vmatmul.mubr.f32.gmra.mrb[0].mxu0 %v3760
        %v3897 = vpop.f32.mrb[0].mxu0
        %v3898 = vadd.f32 %v3721, %v3897
        %v3899 = vpop.f32.mrb[0].mxu0
        %3900 = vmatprep.mubr.f32.mxu0 0.0
        %3901 = vmatmul.mubr.f32.gmra.mrb[0].mxu0 %v3763
        %v3902 = vpop.f32.mrb[0].mxu0
        %v3903 = vadd.f32 %v3721, %v3902
        %v3904 = vpop.f32.mrb[0].mxu0
        %3905 = vmatprep.mubr.f32.mxu0 0.0
        %3906 = vmatmul.mubr.f32.gmra.mrb[0].mxu0 %v3766
        %v3907 = vpop.f32.mrb[0].mxu0
        %v3908 = vadd.f32 %v3721, %v3907
        %v3909 = vpop.f32.mrb[0].mxu0
        %3910 = vmatprep.mubr.f32.mxu0 0.0
        %3911 = vmatmul.mubr.f32.gmra.mrb[0].mxu0 %v3769
        %v3912 = vpop.f32.mrb[0].mxu0
        %v3913 = vadd.f32 %v3721, %v3912
        %v3914 = vpop.f32.mrb[0].mxu0
        %3915 = vdwg.mxu0
        %v3916 = vmax.f32 %v3838, 0.0
        %v3917 = vmax.f32 %v3843, 0.0
        %v3918 = vmax.f32 %v3848, 0.0
        %v3919 = vmax.f32 %v3853, 0.0
        %v3920 = vmax.f32 %v3858, 0.0
        %v3921 = vmax.f32 %v3863, 0.0
        %v3922 = vmax.f32 %v3868, 0.0
        %v3923 = vmax.f32 %v3873, 0.0
        %v3924 = vmax.f32 %v3878, 0.0
        %v3925 = vmax.f32 %v3883, 0.0
        %v3926 = vmax.f32 %v3888, 0.0
        %v3927 = vmax.f32 %v3893, 0.0
        %v3928 = vmax.f32 %v3898, 0.0
        %v3929 = vmax.f32 %v3903, 0.0
        %v3930 = vmax.f32 %v3908, 0.0
        %v3931 = vmax.f32 %v3913, 0.0
        %v3932 = vsel %vm330, %v3916, 0.0
        %v3933 = vsel %vm330, %v3917, 0.0
        %v3934 = vadd.f32 %v3932, %v3933
        %v3935 = vsel %vm330, %v3918, 0.0
        %v3936 = vadd.f32 %v3934, %v3935
        %v3937 = vsel %vm330, %v3919, 0.0
        %v3938 = vadd.f32 %v3936, %v3937
        %v3939 = vsel %vm330, %v3920, 0.0
        %v3940 = vadd.f32 %v3938, %v3939
        %v3941 = vsel %vm330, %v3921, 0.0
        %v3942 = vadd.f32 %v3940, %v3941
        %v3943 = vsel %vm330, %v3922, 0.0
        %v3944 = vadd.f32 %v3942, %v3943
        %v3945 = vsel %vm330, %v3923, 0.0
        %v3946 = vadd.f32 %v3944, %v3945
        %v3947 = vsel %vm330, %v3924, 0.0
        %v3948 = vadd.f32 %v3946, %v3947
        %v3949 = vsel %vm330, %v3925, 0.0
        %v3950 = vadd.f32 %v3948, %v3949
        %v3951 = vsel %vm330, %v3926, 0.0
        %v3952 = vadd.f32 %v3950, %v3951
        %v3953 = vsel %vm330, %v3927, 0.0
        %v3954 = vadd.f32 %v3952, %v3953
        %v3955 = vsel %vm330, %v3928, 0.0
        %v3956 = vadd.f32 %v3954, %v3955
        %v3957 = vsel %vm330, %v3929, 0.0
        %v3958 = vadd.f32 %v3956, %v3957
        %v3959 = vsel %vm330, %v3930, 0.0
        %v3960 = vadd.f32 %v3958, %v3959
        %v3961 = vsel %vm348, %v3931, 0.0
        %v3962 = vadd.f32 %v3960, %v3961
        %v3963 = vrot.slane %v3962, 4
        %v3964 = vadd.f32 %v3962, %v3963
        %v3965 = vrot.slane %v3964, 2
        %v3966 = vadd.f32 %v3964, %v3965
        %v3967 = vrot.slane %v3966, 1
        %v3968 = vadd.f32 %v3966, %v3967
        %v3969 = vmul.f32 %v3968, 0.008
        %v3970 = vld [vmem:[%s7] sm:$0xff]
        %v3971 = vld [vmem:[%s7 + $0x8] sm:$0xff]
        %v3972 = vld [vmem:[%s7 + $0x10] sm:$0xff]
        %v3973 = vld [vmem:[%s7 + $0x18] sm:$0xff]
        %v3974 = vld [vmem:[%s7 + $0x20] sm:$0xff]
        %v3975 = vld [vmem:[%s7 + $0x28] sm:$0xff]
        %v3976 = vld [vmem:[%s7 + $0x30] sm:$0xff]
        %v3977 = vld [vmem:[%s7 + $0x38] sm:$0xff]
        %v3978 = vld [vmem:[%s8] sm:$0x1]
        %v3980 = vsel %vm330, %v3969, 0
        %3982 = vmatprep.subr.mxu0 0.0
        %3983 = vmatpush1.msra.mxu0 %v3970
        %3984 = vmatprep.subr.mxu0 0.0
        %3985 = vmatpush1.msra.mxu0 %v3971
        %3986 = vmatprep.subr.mxu0 0.0
        %3987 = vmatpush1.msra.mxu0 %v3972
        %3988 = vmatprep.subr.mxu0 0.0
        %3989 = vmatpush1.msra.mxu0 %v3973
        %3990 = vmatprep.subr.mxu0 0.0
        %3991 = vmatpush1.msra.mxu0 %v3974
        %3992 = vmatprep.subr.mxu0 0.0
        %3993 = vmatpush1.msra.mxu0 %v3975
        %3994 = vmatprep.subr.mxu0 0.0
        %3995 = vmatpush1.msra.mxu0 %v3976
        %3996 = vmatprep.subr.mxu0 0.0
        %3997 = vmatpush1.msra.mxu0 %v3977
        %3998 = vmatprep.subr.mxu0 0.0
        %3999 = vmatpush1.msra.mxu0 0.0
        %4000 = vmatprep.subr.mxu0 0.0
        %4001 = vmatpush1.msra.mxu0 0.0
        %4002 = vmatprep.subr.mxu0 0.0
        %4003 = vmatpush1.msra.mxu0 0.0
        %4004 = vmatprep.subr.mxu0 0.0
        %4005 = vmatpush1.msra.mxu0 0.0
        %4006 = vmatprep.subr.mxu0 0.0
        %4007 = vmatpush1.msra.mxu0 0.0
        %4008 = vmatprep.subr.mxu0 0.0
        %4009 = vmatpush1.msra.mxu0 0.0
        %4010 = vmatprep.subr.mxu0 0.0
        %4011 = vmatpush1.msra.mxu0 0.0
        %4012 = vmatprep.subr.mxu0 0.0
        %4013 = vmatpush1.msra.mxu0 0.0
        %4014 = vmatprep.subr.mxu0 0.0
        %4015 = vmatpush1.msra.mxu0 0.0
        %4016 = vmatprep.subr.mxu0 0.0
        %4017 = vmatpush1.msra.mxu0 0.0
        %4018 = vmatprep.subr.mxu0 0.0
        %4019 = vmatpush1.msra.mxu0 0.0
        %4020 = vmatprep.subr.mxu0 0.0
        %4021 = vmatpush1.msra.mxu0 0.0
        %4022 = vmatprep.subr.mxu0 0.0
        %4023 = vmatpush1.msra.mxu0 0.0
        %4024 = vmatprep.subr.mxu0 0.0
        %4025 = vmatpush1.msra.mxu0 0.0
        %4026 = vmatprep.subr.mxu0 0.0
        %4027 = vmatpush1.msra.mxu0 0.0
        %4028 = vmatprep.subr.mxu0 0.0
        %4029 = vmatpush1.msra.mxu0 0.0
        %4030 = vmatprep.subr.mxu0 0.0
        %4031 = vmatpush1.msra.mxu0 0.0
        %4032 = vmatprep.subr.mxu0 0.0
        %4033 = vmatpush1.msra.mxu0 0.0
        %4034 = vmatprep.subr.mxu0 0.0
        %4035 = vmatpush1.msra.mxu0 0.0
        %4036 = vmatprep.subr.mxu0 0.0
        %4037 = vmatpush1.msra.mxu0 0.0
        %4038 = vmatprep.subr.mxu0 0.0
        %4039 = vmatpush1.msra.mxu0 0.0
        %4040 = vmatprep.subr.mxu0 0.0
        %4041 = vmatpush1.msra.mxu0 0.0
        %4042 = vmatprep.subr.mxu0 0.0
        %4043 = vmatpush1.msra.mxu0 0.0
        %4044 = vmatprep.subr.mxu0 0.0
        %4045 = vmatpush1.msra.mxu0 0.0
        %4046 = vmatprep.mubr.f32.mxu0 0.0
        %4047 = vmatmul.mubr.f32.gmra.mrb[0].mxu0 %v3980
        %v4048 = vpop.f32.mrb[0].mxu0
        %v4049 = vadd.f32 %v3978, %v4048
        %v4050 = vpop.f32.mrb[0].mxu0
        %4051 = vdwg.mxu0
        %vm4052 = vcmask 90112
        %4053 = vst.msk [vmem:[%s324] sm:$0x1] %vm4052, %v4049
        %s4054 = sand.u32 %s225, 1
        %s4055 = scalar_lea.sflag [#allocation4], %s4054
        %s4056 = sand.u32 %s225, 1
        %s4057 = scalar_lea.vmem [#allocation3], %s4056
        // Predicated region
        $region57: #{dscnn_forward_pallas.1} parent=55 // pred_check
          %p4058 = pneg %p235
        $region58: #{dscnn_forward_pallas.1} parent=55 // pred_check_branch
          %4060 = sbr.rel (%p4058) target = $region60
        $region59: #{dscnn_forward_pallas.1} parent=55 // pred_region
          %s4062 = ssub.s32 16, 16
          %4063 = vsyncadd %s4055, %s4062
          %s4064 = smul.addr %s23, 16
          %s4065 = scalar_lea.hbm %s9, %s4064
          %s4067 = sshll.u32 %s4057, 4
          %s4068 = int_to_ptr.vmem [resolvable:$true] %s4067
          %4070 = dma.vmem_to_hbm [thread:$0]  %s4068, 16, %s4065, %s4055
        $region60: #{dscnn_forward_pallas.1} parent=55 // pred_fallthru
          _
      $region56: #{dscnn_forward_pallas.1} parent=5 // pred_fallthru
        _
      %p4071 = scmp.le.s32.totalorder 2, %s18
      // Predicated region
      $region61: #{dscnn_forward_pallas.1} parent=5 // pred_check
        %p4072 = pneg %p4071
      $region62: #{dscnn_forward_pallas.1} parent=5 // pred_check_branch
        %4074 = sbr.rel (%p4072) target = $region64
      $region63: #{dscnn_forward_pallas.1} parent=5 // pred_region
        %s4075 = ssub.s32 %s18, 2
        // Predicated region
        $region65: #{dscnn_forward_pallas.1} parent=63 // pred_check
          %p4076 = pneg %p241
        $region66: #{dscnn_forward_pallas.1} parent=63 // pred_check_branch
          %4078 = sbr.rel (%p4076) target = $region68
        $region67: #{dscnn_forward_pallas.1} parent=63 // pred_region
          %s4079 = sand.u32 %s226, 1
          %s4080 = scalar_lea.sflag [#allocation4], %s4079
          %s4081 = sand.u32 %s226, 1
          %s4082 = scalar_lea.vmem [#allocation3], %s4081
          %4083 = dma.done %s4080, 16
        $region68: #{dscnn_forward_pallas.1} parent=63 // pred_fallthru
          _
      $region64: #{dscnn_forward_pallas.1} parent=5 // pred_fallthru
        _
    $region6: #{dscnn_forward_pallas.1} parent=1 // loop_footer
      %s22 = sadd.s32 1, %s18
    $region7: #{dscnn_forward_pallas.1} parent=1 // loop_footer_branch
      %17 = sbr.rel target = $region3
    $region8: #{dscnn_forward_pallas.1} parent=1 // loop_exit
      _
    %4084 = vsyncpa [#allocation4], 1
    %s4085 = scalar_lea.sflag [#allocation4], 1
    %4086 = vsyncpa %s4085, 1

</llo_original>
